<compile_context>
chip_gen: v7x
topology: tpu7x:2x2x1
jax: 0.10.0
libtpu: 0.0.40
codegen_flags: <defaults>
</compile_context>

<pallas_src>
import math

import jax
import jax.numpy as jnp
from jax import lax
from jax.experimental import pallas as pl
from jax.experimental.pallas import tpu as pltpu  # noqa: F401  (kept for TPU-specific tuning hooks)

# ---- small "bert-base"-like config (scaled down) ----------------------------
HIDDEN = 32
NUM_HEADS = 2
HEAD_DIM = HIDDEN // NUM_HEADS
NUM_LAYERS = 2
INTERMEDIATE = 64
VOCAB = 128
MAX_POS = 16
NUM_CLASSES = 8          # self.fc = nn.Linear(hidden, 8)
LN_EPS = 1e-12
NEG_INF = -1e9


# ----------------------------------------------------------------------------
# in-kernel math helpers (all f32 elementwise; v5e-friendly)
# ----------------------------------------------------------------------------
def _gelu(x):
    # TODO(synk): HF BERT uses exact erf GELU; tanh approximation kept here
    # (erf has no guaranteed Mosaic lowering) -> tiny systematic drift.
    c = math.sqrt(2.0 / math.pi)
    return 0.5 * x * (1.0 + jnp.tanh(c * (x + 0.044715 * x * x * x)))


def _ln(x, g, b):
    mean = jnp.mean(x, axis=-1, keepdims=True)
    xc = x - mean
    var = jnp.mean(xc * xc, axis=-1, keepdims=True)
    return xc * jax.lax.rsqrt(var + LN_EPS) * g + b


# ----------------------------------------------------------------------------
# The single fused Pallas kernel
# ----------------------------------------------------------------------------
def _bert_fused_kernel(emb_ref, bias_ref, embg_ref, embb_ref,
                       wq_ref, wk_ref, wv_ref, bq_ref, bk_ref, bv_ref,
                       wo_ref, bo_ref, ln1g_ref, ln1b_ref,
                       w1_ref, b1_ref, w2_ref, b2_ref,
                       ln2g_ref, ln2b_ref,
                       pool_ref, fcw_ref, fcb_ref, o_ref):
    """Embedding LayerNorm -> NUM_LAYERS encoder layers -> CLS pool -> FC."""
    x = _ln(emb_ref[...], embg_ref[...], embb_ref[...])          # (M, H)
    bias = bias_ref[...]                                          # (M, M) additive mask
    scale = 1.0 / math.sqrt(HEAD_DIM)

    for l in range(NUM_LAYERS):                                   # static unroll
        attn = None
        for h in range(NUM_HEADS):                                # static unroll
            q = jnp.dot(x, wq_ref[l, h], preferred_element_type=jnp.float32) + bq_ref[l, h]
            k = jnp.dot(x, wk_ref[l, h], preferred_element_type=jnp.float32) + bk_ref[l, h]
            v = jnp.dot(x, wv_ref[l, h], preferred_element_type=jnp.float32) + bv_ref[l, h]
            # contract last dims of q and k -> no explicit k transpose
            scores = lax.dot_general(q, k, (((1,), (1,)), ((), ())),
                                     preferred_element_type=jnp.float32) * scale + bias
            m = jnp.max(scores, axis=-1, keepdims=True)
            p = jnp.exp(scores - m)
            # EUP reciprocal instead of a VALU divide
            p = p * pl.reciprocal(jnp.sum(p, axis=-1, keepdims=True), approx=True)
            ctx = jnp.dot(p, v, preferred_element_type=jnp.float32)            # (M, HD)
            part = jnp.dot(ctx, wo_ref[l, h], preferred_element_type=jnp.float32)  # (M, H)
            attn = part if attn is None else attn + part

        # residual + LayerNorm + FFN + residual + LayerNorm, all in-register
        h1 = _ln(x + attn + bo_ref[l], ln1g_ref[l], ln1b_ref[l])
        inter = _gelu(jnp.dot(h1, w1_ref[l], preferred_element_type=jnp.float32) + b1_ref[l])
        ffn = jnp.dot(inter, w2_ref[l], preferred_element_type=jnp.float32) + b2_ref[l]
        x = _ln(h1 + ffn, ln2g_ref[l], ln2b_ref[l])

    # pool_ref @ x gathers CLS rows and does the masked mean in one matmul
    pooled = jnp.dot(pool_ref[...], x, preferred_element_type=jnp.float32)     # (B, H)
    logits = jnp.dot(pooled, fcw_ref[...], preferred_element_type=jnp.float32) + fcb_ref[...]
    o_ref[...] = logits.astype(o_ref.dtype)


def _cost_estimate(M, B, args):
    mm_layer = (3 * 2 * M * HIDDEN * HIDDEN            # q/k/v projections
                + 2 * 2 * M * M * HIDDEN               # scores + p@v (all heads)
                + 2 * M * HIDDEN * HIDDEN              # output projection
                + 2 * 2 * M * HIDDEN * INTERMEDIATE)   # FFN
    flops = (NUM_LAYERS * mm_layer
             + 2 * B * M * HIDDEN + 2 * B * HIDDEN * NUM_CLASSES)
    trans = NUM_LAYERS * (NUM_HEADS * M * M            # exp
                          + M * INTERMEDIATE           # tanh (gelu)
                          + 3 * M) + M                 # rsqrt / reciprocal
    bytes_accessed = 4 * (sum(int(a.size) for a in args) + B * NUM_CLASSES)
    return pl.CostEstimate(flops=int(flops), transcendentals=int(trans),
                           bytes_accessed=int(bytes_accessed))


def bert_fused_forward(emb, bias, pool_mat, params):
    """emb: [M, H] flattened token embeddings; bias: [M, M]; pool_mat: [B, M]."""
    M = emb.shape[0]
    B = pool_mat.shape[0]
    args = (emb, bias, params["emb_ln_g"], params["emb_ln_b"],
            params["wq"], params["wk"], params["wv"],
            params["bq"], params["bk"], params["bv"],
            params["wo"], params["bo"], params["ln1_g"], params["ln1_b"],
            params["w1"], params["b1"], params["w2"], params["b2"],
            params["ln2_g"], params["ln2_b"],
            pool_mat, params["fc_w"], params["fc_b"])
    return pl.pallas_call(
        _bert_fused_kernel,
        out_shape=jax.ShapeDtypeStruct((B, NUM_CLASSES), jnp.float32),
        cost_estimate=_cost_estimate(M, B, args),
    )(*args)


# ----------------------------------------------------------------------------
# plain-JAX glue (mask/bias precompute, embedding gather, reshapes)
# ----------------------------------------------------------------------------
def _build_attention_bias(attention_mask):
    """Block-diagonal additive mask over the flattened S*L token rows.

    A query row may attend to a key row only if the key is a real (non-pad)
    token belonging to the same subsequence (standard key-side BERT mask)."""
    S, L = attention_mask.shape
    rows = S * L
    seq_of_row = jnp.repeat(jnp.arange(S), L)                      # (rows,)
    same_seq = seq_of_row[:, None] == seq_of_row[None, :]          # (rows, rows)
    key_real = attention_mask.reshape(rows) > 0.0                  # (rows,)
    allowed = same_seq & key_real[None, :]
    return jnp.where(allowed, 0.0, NEG_INF).astype(jnp.float32)


def _build_pool_matrix(post_mask, num_sub, max_len):
    """(B, S*L) matrix: picks the CLS row of each subsequence and averages them
    weighted by post_mask.
    # TODO(synk): AveragePooler source not given; assumed masked mean with a
    # clamp to avoid div-by-zero when a post has no valid subsequence."""
    B, N = post_mask.shape
    SL = B * N * max_len
    count = jnp.maximum(jnp.sum(post_mask, axis=-1, keepdims=True), 1.0)
    w_sub = post_mask / count                                      # (B, N)
    cls_rows = (jnp.arange(B)[:, None] * N + jnp.arange(N)[None, :]) * max_len
    onehot = jax.nn.one_hot(cls_rows, SL, dtype=jnp.float32)       # (B, N, SL)
    return jnp.einsum("bn,bns->bs", w_sub, onehot)


def bert_module_forward(params, post_tokens_ids):
    """Mirrors BERT.forward(post_tokens_ids) from the PyTorch module."""
    pad_id = 0
    batch_size, num_subsequence, max_len = post_tokens_ids.shape
    attention_mask = (post_tokens_ids != pad_id).astype(jnp.float32)        # (B, N, L)
    post_mask = (attention_mask.sum(-1) > 0).astype(jnp.float32)            # (B, N)
    input_ids = post_tokens_ids.reshape(-1, max_len)                        # (S, L)
    attention_mask2 = attention_mask.reshape(-1, max_len)                   # (S, L)

    S, L = input_ids.shape
    # Embedding-table gather + adds stay in plain JAX (a gather has no clean
    # BlockSpec expression at this size); embedding LayerNorm runs in-kernel.
    word = jnp.take(params["word_emb"], input_ids, axis=0)                  # (S, L, H)
    pos = params["pos_emb"][:L][None, :, :]
    typ = params["type_emb"][0][None, None, :]
    emb = (word + pos + typ).reshape(S * L, HIDDEN)

    bias = _build_attention_bias(attention_mask2)                           # (S*L, S*L)
    pool_mat = _build_pool_matrix(post_mask, num_subsequence, max_len)      # (B, S*L)

    # dropout_prob = 0.0 -> identity; nn.ReLU is declared but unused in forward.
    logits = bert_fused_forward(emb, bias, pool_mat, params)                # (B, 8)
    logits_list = jnp.transpose(logits.reshape(batch_size, -1, 2), (1, 0, 2))  # (4, B, 2)
    return {"logits_list": [logits_list[i] for i in range(logits_list.shape[0])]}


# ----------------------------------------------------------------------------
# Deterministic synthetic parameters (stand-in for pretrained BERT), stored in
# the layer-stacked / head-split layout the fused kernel consumes directly.
# ----------------------------------------------------------------------------
def init_params(key):
    keys = iter(jax.random.split(key, 8 + 8 * NUM_LAYERS))

    def w(shape):
        return jax.random.normal(next(keys), shape, jnp.float32) * 0.02

    def split_heads_cols(m):   # (H, H) -> (NH, H, HD): column block per head
        return m.reshape(HIDDEN, NUM_HEADS, HEAD_DIM).transpose(1, 0, 2)

    wq, wk, wv, wo, bo = [], [], [], [], []
    ln1g, ln1b, w1s, b1s, w2s, b2s, ln2g, ln2b = [], [], [], [], [], [], [], []
    for _ in range(NUM_LAYERS):
        wq.append(split_heads_cols(w((HIDDEN, HIDDEN))))
        wk.append(split_heads_cols(w((HIDDEN, HIDDEN))))
        wv.append(split_heads_cols(w((HIDDEN, HIDDEN))))
        wo.append(w((HIDDEN, HIDDEN)).reshape(NUM_HEADS, HEAD_DIM, HIDDEN))  # row block per head
        bo.append(jnp.zeros((1, HIDDEN), jnp.float32))
        ln1g.append(jnp.ones((1, HIDDEN), jnp.float32))
        ln1b.append(jnp.zeros((1, HIDDEN), jnp.float32))
        w1s.append(w((HIDDEN, INTERMEDIATE)))
        b1s.append(jnp.zeros((1, INTERMEDIATE), jnp.float32))
        w2s.append(w((INTERMEDIATE, HIDDEN)))
        b2s.append(jnp.zeros((1, HIDDEN), jnp.float32))
        ln2g.append(jnp.ones((1, HIDDEN), jnp.float32))
        ln2b.append(jnp.zeros((1, HIDDEN), jnp.float32))

    return {
        "word_emb": w((VOCAB, HIDDEN)),
        "pos_emb": w((MAX_POS, HIDDEN)),
        "type_emb": w((2, HIDDEN)),
        "emb_ln_g": jnp.ones((1, HIDDEN), jnp.float32),
        "emb_ln_b": jnp.zeros((1, HIDDEN), jnp.float32),
        "wq": jnp.stack(wq), "wk": jnp.stack(wk), "wv": jnp.stack(wv),
        "bq": jnp.zeros((NUM_LAYERS, NUM_HEADS, 1, HEAD_DIM), jnp.float32),
        "bk": jnp.zeros((NUM_LAYERS, NUM_HEADS, 1, HEAD_DIM), jnp.float32),
        "bv": jnp.zeros((NUM_LAYERS, NUM_HEADS, 1, HEAD_DIM), jnp.float32),
        "wo": jnp.stack(wo), "bo": jnp.stack(bo),
        "ln1_g": jnp.stack(ln1g), "ln1_b": jnp.stack(ln1b),
        "w1": jnp.stack(w1s), "b1": jnp.stack(b1s),
        "w2": jnp.stack(w2s), "b2": jnp.stack(b2s),
        "ln2_g": jnp.stack(ln2g), "ln2_b": jnp.stack(ln2b),
        "fc_w": w((HIDDEN, NUM_CLASSES)),
        "fc_b": jnp.zeros((1, NUM_CLASSES), jnp.float32),
    }


# ----------------------------------------------------------------------------
if __name__ == "__main__":
    key = jax.random.PRNGKey(0)
    pkey, ikey = jax.random.split(key)
    params = init_params(pkey)

    batch, num_sub, max_len = 2, 3, 8
    post_tokens_ids = jax.random.randint(
        ikey, (batch, num_sub, max_len), minval=1, maxval=VOCAB, dtype=jnp.int32)
    # introduce padding and one fully-padded subsequence to exercise the masks
    post_tokens_ids = post_tokens_ids.at[:, :, 6:].set(0)
    post_tokens_ids = post_tokens_ids.at[1, 2, :].set(0)

    fwd = jax.jit(bert_module_forward)
    out = fwd(params, post_tokens_ids)
    jax.block_until_ready(out["logits_list"])

    assert len(out["logits_list"]) == NUM_CLASSES // 2
    assert all(l.shape == (batch, 2) for l in out["logits_list"])
    print("KERNEL_OK")
</pallas_src>

<mosaic_0001>
module attributes {stable_mosaic.version = 11 : i64} {
  func.func @_bert_fused_kernel(%arg0: memref<48x32xf32, #tpu.memory_space<vmem>>, %arg1: memref<48x48xf32, #tpu.memory_space<vmem>>, %arg2: memref<1x32xf32, #tpu.memory_space<vmem>>, %arg3: memref<1x32xf32, #tpu.memory_space<vmem>>, %arg4: memref<2x2x32x16xf32, #tpu.memory_space<vmem>>, %arg5: memref<2x2x32x16xf32, #tpu.memory_space<vmem>>, %arg6: memref<2x2x32x16xf32, #tpu.memory_space<vmem>>, %arg7: memref<2x2x1x16xf32, #tpu.memory_space<vmem>>, %arg8: memref<2x2x1x16xf32, #tpu.memory_space<vmem>>, %arg9: memref<2x2x1x16xf32, #tpu.memory_space<vmem>>, %arg10: memref<2x2x16x32xf32, #tpu.memory_space<vmem>>, %arg11: memref<2x1x32xf32, #tpu.memory_space<vmem>>, %arg12: memref<2x1x32xf32, #tpu.memory_space<vmem>>, %arg13: memref<2x1x32xf32, #tpu.memory_space<vmem>>, %arg14: memref<2x32x64xf32, #tpu.memory_space<vmem>>, %arg15: memref<2x1x64xf32, #tpu.memory_space<vmem>>, %arg16: memref<2x64x32xf32, #tpu.memory_space<vmem>>, %arg17: memref<2x1x32xf32, #tpu.memory_space<vmem>>, %arg18: memref<2x1x32xf32, #tpu.memory_space<vmem>>, %arg19: memref<2x1x32xf32, #tpu.memory_space<vmem>>, %arg20: memref<2x48xf32, #tpu.memory_space<vmem>>, %arg21: memref<32x8xf32, #tpu.memory_space<vmem>>, %arg22: memref<1x8xf32, #tpu.memory_space<vmem>>, %arg23: memref<2x8xf32, #tpu.memory_space<vmem>>) attributes {dimension_semantics = [], scalar_prefetch = 0 : i64, scratch_operands = 0 : i64, tpu.core_type = #tpu.core_type<tc>} {
    %c0 = arith.constant 0 : index
    %c0_0 = arith.constant 0 : index
    %0 = vector.load %arg0[%c0, %c0_0] : memref<48x32xf32, #tpu.memory_space<vmem>>, vector<48x32xf32>
    %c0_1 = arith.constant 0 : index
    %c0_2 = arith.constant 0 : index
    %1 = vector.load %arg2[%c0_1, %c0_2] : memref<1x32xf32, #tpu.memory_space<vmem>>, vector<1x32xf32>
    %c0_3 = arith.constant 0 : index
    %c0_4 = arith.constant 0 : index
    %2 = vector.load %arg3[%c0_3, %c0_4] : memref<1x32xf32, #tpu.memory_space<vmem>>, vector<1x32xf32>
    %cst = arith.constant dense<0.000000e+00> : vector<48xf32>
    %3 = vector.multi_reduction <add>, %0, %cst [1] : vector<48x32xf32> to vector<48xf32>
    %4 = vector.shape_cast %3 : vector<48xf32> to vector<48x1xf32>
    %cst_5 = arith.constant 3.200000e+01 : f32
    %5 = vector.broadcast %cst_5 : f32 to vector<48x1xf32>
    %6 = arith.divf %4, %5 : vector<48x1xf32>
    %7 = vector.broadcast %6 : vector<48x1xf32> to vector<48x32xf32>
    %8 = arith.subf %0, %7 : vector<48x32xf32>
    %9 = arith.mulf %8, %8 : vector<48x32xf32>
    %cst_6 = arith.constant dense<0.000000e+00> : vector<48xf32>
    %10 = vector.multi_reduction <add>, %9, %cst_6 [1] : vector<48x32xf32> to vector<48xf32>
    %11 = vector.shape_cast %10 : vector<48xf32> to vector<48x1xf32>
    %cst_7 = arith.constant 3.200000e+01 : f32
    %12 = vector.broadcast %cst_7 : f32 to vector<48x1xf32>
    %13 = arith.divf %11, %12 : vector<48x1xf32>
    %cst_8 = arith.constant 9.99999996E-13 : f32
    %14 = vector.broadcast %cst_8 : f32 to vector<48x1xf32>
    %15 = arith.addf %13, %14 : vector<48x1xf32>
    %16 = math.rsqrt %15 : vector<48x1xf32>
    %17 = vector.broadcast %16 : vector<48x1xf32> to vector<48x32xf32>
    %18 = arith.mulf %8, %17 : vector<48x32xf32>
    %19 = vector.broadcast %1 : vector<1x32xf32> to vector<48x32xf32>
    %20 = arith.mulf %18, %19 : vector<48x32xf32>
    %21 = vector.broadcast %2 : vector<1x32xf32> to vector<48x32xf32>
    %22 = arith.addf %20, %21 : vector<48x32xf32>
    %c0_9 = arith.constant 0 : index
    %c0_10 = arith.constant 0 : index
    %23 = vector.load %arg1[%c0_9, %c0_10] : memref<48x48xf32, #tpu.memory_space<vmem>>, vector<48x48xf32>
    %c0_11 = arith.constant 0 : index
    %c0_12 = arith.constant 0 : index
    %c0_13 = arith.constant 0 : index
    %c0_14 = arith.constant 0 : index
    %24 = vector.load %arg4[%c0_11, %c0_12, %c0_13, %c0_14] : memref<2x2x32x16xf32, #tpu.memory_space<vmem>>, vector<1x1x32x16xf32>
    %25 = vector.shape_cast %24 : vector<1x1x32x16xf32> to vector<32x16xf32>
    %cst_15 = arith.constant dense<0.000000e+00> : vector<48x16xf32>
    %26 = tpu.matmul %22, %25, %cst_15 {dimension_numbers = #tpu.dot_dimension_numbers<[1], [0], [0], [1], [0, 0, 1, 1], [], []>} : vector<48x32xf32>, vector<32x16xf32>, vector<48x16xf32> -> vector<48x16xf32>
    %c0_16 = arith.constant 0 : index
    %c0_17 = arith.constant 0 : index
    %c0_18 = arith.constant 0 : index
    %c0_19 = arith.constant 0 : index
    %27 = vector.load %arg7[%c0_16, %c0_17, %c0_18, %c0_19] : memref<2x2x1x16xf32, #tpu.memory_space<vmem>>, vector<1x1x1x16xf32>
    %28 = vector.shape_cast %27 : vector<1x1x1x16xf32> to vector<1x16xf32>
    %29 = vector.broadcast %28 : vector<1x16xf32> to vector<48x16xf32>
    %30 = arith.addf %26, %29 : vector<48x16xf32>
    %c0_20 = arith.constant 0 : index
    %c0_21 = arith.constant 0 : index
    %c0_22 = arith.constant 0 : index
    %c0_23 = arith.constant 0 : index
    %31 = vector.load %arg5[%c0_20, %c0_21, %c0_22, %c0_23] : memref<2x2x32x16xf32, #tpu.memory_space<vmem>>, vector<1x1x32x16xf32>
    %32 = vector.shape_cast %31 : vector<1x1x32x16xf32> to vector<32x16xf32>
    %cst_24 = arith.constant dense<0.000000e+00> : vector<48x16xf32>
    %33 = tpu.matmul %22, %32, %cst_24 {dimension_numbers = #tpu.dot_dimension_numbers<[1], [0], [0], [1], [0, 0, 1, 1], [], []>} : vector<48x32xf32>, vector<32x16xf32>, vector<48x16xf32> -> vector<48x16xf32>
    %c0_25 = arith.constant 0 : index
    %c0_26 = arith.constant 0 : index
    %c0_27 = arith.constant 0 : index
    %c0_28 = arith.constant 0 : index
    %34 = vector.load %arg8[%c0_25, %c0_26, %c0_27, %c0_28] : memref<2x2x1x16xf32, #tpu.memory_space<vmem>>, vector<1x1x1x16xf32>
    %35 = vector.shape_cast %34 : vector<1x1x1x16xf32> to vector<1x16xf32>
    %36 = vector.broadcast %35 : vector<1x16xf32> to vector<48x16xf32>
    %37 = arith.addf %33, %36 : vector<48x16xf32>
    %c0_29 = arith.constant 0 : index
    %c0_30 = arith.constant 0 : index
    %c0_31 = arith.constant 0 : index
    %c0_32 = arith.constant 0 : index
    %38 = vector.load %arg6[%c0_29, %c0_30, %c0_31, %c0_32] : memref<2x2x32x16xf32, #tpu.memory_space<vmem>>, vector<1x1x32x16xf32>
    %39 = vector.shape_cast %38 : vector<1x1x32x16xf32> to vector<32x16xf32>
    %cst_33 = arith.constant dense<0.000000e+00> : vector<48x16xf32>
    %40 = tpu.matmul %22, %39, %cst_33 {dimension_numbers = #tpu.dot_dimension_numbers<[1], [0], [0], [1], [0, 0, 1, 1], [], []>} : vector<48x32xf32>, vector<32x16xf32>, vector<48x16xf32> -> vector<48x16xf32>
    %c0_34 = arith.constant 0 : index
    %c0_35 = arith.constant 0 : index
    %c0_36 = arith.constant 0 : index
    %c0_37 = arith.constant 0 : index
    %41 = vector.load %arg9[%c0_34, %c0_35, %c0_36, %c0_37] : memref<2x2x1x16xf32, #tpu.memory_space<vmem>>, vector<1x1x1x16xf32>
    %42 = vector.shape_cast %41 : vector<1x1x1x16xf32> to vector<1x16xf32>
    %43 = vector.broadcast %42 : vector<1x16xf32> to vector<48x16xf32>
    %44 = arith.addf %40, %43 : vector<48x16xf32>
    %cst_38 = arith.constant dense<0.000000e+00> : vector<48x48xf32>
    %45 = tpu.matmul %30, %37, %cst_38 {dimension_numbers = #tpu.dot_dimension_numbers<[1], [1], [0], [0], [0, 0, 1, 0], [], []>} : vector<48x16xf32>, vector<48x16xf32>, vector<48x48xf32> -> vector<48x48xf32>
    %cst_39 = arith.constant 2.500000e-01 : f32
    %46 = vector.broadcast %cst_39 : f32 to vector<48x48xf32>
    %47 = arith.mulf %45, %46 : vector<48x48xf32>
    %48 = arith.addf %47, %23 : vector<48x48xf32>
    %cst_40 = arith.constant dense<0xFF800000> : vector<48xf32>
    %49 = vector.multi_reduction <maximumf>, %48, %cst_40 [1] : vector<48x48xf32> to vector<48xf32>
    %50 = vector.shape_cast %49 : vector<48xf32> to vector<48x1xf32>
    %51 = vector.broadcast %50 : vector<48x1xf32> to vector<48x48xf32>
    %52 = arith.subf %48, %51 : vector<48x48xf32>
    %53 = math.exp %52 : vector<48x48xf32>
    %cst_41 = arith.constant dense<0.000000e+00> : vector<48xf32>
    %54 = vector.multi_reduction <add>, %53, %cst_41 [1] : vector<48x48xf32> to vector<48xf32>
    %55 = vector.shape_cast %54 : vector<48xf32> to vector<48x1xf32>
    %56 = tpu.reciprocal %55 {approx = true} : vector<48x1xf32> -> vector<48x1xf32>
    %57 = vector.broadcast %56 : vector<48x1xf32> to vector<48x48xf32>
    %58 = arith.mulf %53, %57 : vector<48x48xf32>
    %cst_42 = arith.constant dense<0.000000e+00> : vector<48x16xf32>
    %59 = tpu.matmul %58, %44, %cst_42 {dimension_numbers = #tpu.dot_dimension_numbers<[1], [0], [0], [1], [0, 0, 1, 1], [], []>} : vector<48x48xf32>, vector<48x16xf32>, vector<48x16xf32> -> vector<48x16xf32>
    %c0_43 = arith.constant 0 : index
    %c0_44 = arith.constant 0 : index
    %c0_45 = arith.constant 0 : index
    %c0_46 = arith.constant 0 : index
    %60 = vector.load %arg10[%c0_43, %c0_44, %c0_45, %c0_46] : memref<2x2x16x32xf32, #tpu.memory_space<vmem>>, vector<1x1x16x32xf32>
    %61 = vector.shape_cast %60 : vector<1x1x16x32xf32> to vector<16x32xf32>
    %cst_47 = arith.constant dense<0.000000e+00> : vector<48x32xf32>
    %62 = tpu.matmul %59, %61, %cst_47 {dimension_numbers = #tpu.dot_dimension_numbers<[1], [0], [0], [1], [0, 0, 1, 1], [], []>} : vector<48x16xf32>, vector<16x32xf32>, vector<48x32xf32> -> vector<48x32xf32>
    %c0_48 = arith.constant 0 : index
    %c1 = arith.constant 1 : index
    %c0_49 = arith.constant 0 : index
    %c0_50 = arith.constant 0 : index
    %63 = vector.load %arg4[%c0_48, %c1, %c0_49, %c0_50] : memref<2x2x32x16xf32, #tpu.memory_space<vmem>>, vector<1x1x32x16xf32>
    %64 = vector.shape_cast %63 : vector<1x1x32x16xf32> to vector<32x16xf32>
    %cst_51 = arith.constant dense<0.000000e+00> : vector<48x16xf32>
    %65 = tpu.matmul %22, %64, %cst_51 {dimension_numbers = #tpu.dot_dimension_numbers<[1], [0], [0], [1], [0, 0, 1, 1], [], []>} : vector<48x32xf32>, vector<32x16xf32>, vector<48x16xf32> -> vector<48x16xf32>
    %c0_52 = arith.constant 0 : index
    %c1_53 = arith.constant 1 : index
    %c0_54 = arith.constant 0 : index
    %c0_55 = arith.constant 0 : index
    %66 = vector.load %arg7[%c0_52, %c1_53, %c0_54, %c0_55] : memref<2x2x1x16xf32, #tpu.memory_space<vmem>>, vector<1x1x1x16xf32>
    %67 = vector.shape_cast %66 : vector<1x1x1x16xf32> to vector<1x16xf32>
    %68 = vector.broadcast %67 : vector<1x16xf32> to vector<48x16xf32>
    %69 = arith.addf %65, %68 : vector<48x16xf32>
    %c0_56 = arith.constant 0 : index
    %c1_57 = arith.constant 1 : index
    %c0_58 = arith.constant 0 : index
    %c0_59 = arith.constant 0 : index
    %70 = vector.load %arg5[%c0_56, %c1_57, %c0_58, %c0_59] : memref<2x2x32x16xf32, #tpu.memory_space<vmem>>, vector<1x1x32x16xf32>
    %71 = vector.shape_cast %70 : vector<1x1x32x16xf32> to vector<32x16xf32>
    %cst_60 = arith.constant dense<0.000000e+00> : vector<48x16xf32>
    %72 = tpu.matmul %22, %71, %cst_60 {dimension_numbers = #tpu.dot_dimension_numbers<[1], [0], [0], [1], [0, 0, 1, 1], [], []>} : vector<48x32xf32>, vector<32x16xf32>, vector<48x16xf32> -> vector<48x16xf32>
    %c0_61 = arith.constant 0 : index
    %c1_62 = arith.constant 1 : index
    %c0_63 = arith.constant 0 : index
    %c0_64 = arith.constant 0 : index
    %73 = vector.load %arg8[%c0_61, %c1_62, %c0_63, %c0_64] : memref<2x2x1x16xf32, #tpu.memory_space<vmem>>, vector<1x1x1x16xf32>
    %74 = vector.shape_cast %73 : vector<1x1x1x16xf32> to vector<1x16xf32>
    %75 = vector.broadcast %74 : vector<1x16xf32> to vector<48x16xf32>
    %76 = arith.addf %72, %75 : vector<48x16xf32>
    %c0_65 = arith.constant 0 : index
    %c1_66 = arith.constant 1 : index
    %c0_67 = arith.constant 0 : index
    %c0_68 = arith.constant 0 : index
    %77 = vector.load %arg6[%c0_65, %c1_66, %c0_67, %c0_68] : memref<2x2x32x16xf32, #tpu.memory_space<vmem>>, vector<1x1x32x16xf32>
    %78 = vector.shape_cast %77 : vector<1x1x32x16xf32> to vector<32x16xf32>
    %cst_69 = arith.constant dense<0.000000e+00> : vector<48x16xf32>
    %79 = tpu.matmul %22, %78, %cst_69 {dimension_numbers = #tpu.dot_dimension_numbers<[1], [0], [0], [1], [0, 0, 1, 1], [], []>} : vector<48x32xf32>, vector<32x16xf32>, vector<48x16xf32> -> vector<48x16xf32>
    %c0_70 = arith.constant 0 : index
    %c1_71 = arith.constant 1 : index
    %c0_72 = arith.constant 0 : index
    %c0_73 = arith.constant 0 : index
    %80 = vector.load %arg9[%c0_70, %c1_71, %c0_72, %c0_73] : memref<2x2x1x16xf32, #tpu.memory_space<vmem>>, vector<1x1x1x16xf32>
    %81 = vector.shape_cast %80 : vector<1x1x1x16xf32> to vector<1x16xf32>
    %82 = vector.broadcast %81 : vector<1x16xf32> to vector<48x16xf32>
    %83 = arith.addf %79, %82 : vector<48x16xf32>
    %cst_74 = arith.constant dense<0.000000e+00> : vector<48x48xf32>
    %84 = tpu.matmul %69, %76, %cst_74 {dimension_numbers = #tpu.dot_dimension_numbers<[1], [1], [0], [0], [0, 0, 1, 0], [], []>} : vector<48x16xf32>, vector<48x16xf32>, vector<48x48xf32> -> vector<48x48xf32>
    %cst_75 = arith.constant 2.500000e-01 : f32
    %85 = vector.broadcast %cst_75 : f32 to vector<48x48xf32>
    %86 = arith.mulf %84, %85 : vector<48x48xf32>
    %87 = arith.addf %86, %23 : vector<48x48xf32>
    %cst_76 = arith.constant dense<0xFF800000> : vector<48xf32>
    %88 = vector.multi_reduction <maximumf>, %87, %cst_76 [1] : vector<48x48xf32> to vector<48xf32>
    %89 = vector.shape_cast %88 : vector<48xf32> to vector<48x1xf32>
    %90 = vector.broadcast %89 : vector<48x1xf32> to vector<48x48xf32>
    %91 = arith.subf %87, %90 : vector<48x48xf32>
    %92 = math.exp %91 : vector<48x48xf32>
    %cst_77 = arith.constant dense<0.000000e+00> : vector<48xf32>
    %93 = vector.multi_reduction <add>, %92, %cst_77 [1] : vector<48x48xf32> to vector<48xf32>
    %94 = vector.shape_cast %93 : vector<48xf32> to vector<48x1xf32>
    %95 = tpu.reciprocal %94 {approx = true} : vector<48x1xf32> -> vector<48x1xf32>
    %96 = vector.broadcast %95 : vector<48x1xf32> to vector<48x48xf32>
    %97 = arith.mulf %92, %96 : vector<48x48xf32>
    %cst_78 = arith.constant dense<0.000000e+00> : vector<48x16xf32>
    %98 = tpu.matmul %97, %83, %cst_78 {dimension_numbers = #tpu.dot_dimension_numbers<[1], [0], [0], [1], [0, 0, 1, 1], [], []>} : vector<48x48xf32>, vector<48x16xf32>, vector<48x16xf32> -> vector<48x16xf32>
    %c0_79 = arith.constant 0 : index
    %c1_80 = arith.constant 1 : index
    %c0_81 = arith.constant 0 : index
    %c0_82 = arith.constant 0 : index
    %99 = vector.load %arg10[%c0_79, %c1_80, %c0_81, %c0_82] : memref<2x2x16x32xf32, #tpu.memory_space<vmem>>, vector<1x1x16x32xf32>
    %100 = vector.shape_cast %99 : vector<1x1x16x32xf32> to vector<16x32xf32>
    %cst_83 = arith.constant dense<0.000000e+00> : vector<48x32xf32>
    %101 = tpu.matmul %98, %100, %cst_83 {dimension_numbers = #tpu.dot_dimension_numbers<[1], [0], [0], [1], [0, 0, 1, 1], [], []>} : vector<48x16xf32>, vector<16x32xf32>, vector<48x32xf32> -> vector<48x32xf32>
    %102 = arith.addf %62, %101 : vector<48x32xf32>
    %103 = arith.addf %22, %102 : vector<48x32xf32>
    %c0_84 = arith.constant 0 : index
    %c0_85 = arith.constant 0 : index
    %c0_86 = arith.constant 0 : index
    %104 = vector.load %arg11[%c0_84, %c0_85, %c0_86] : memref<2x1x32xf32, #tpu.memory_space<vmem>>, vector<1x1x32xf32>
    %105 = vector.shape_cast %104 : vector<1x1x32xf32> to vector<1x32xf32>
    %106 = vector.broadcast %105 : vector<1x32xf32> to vector<48x32xf32>
    %107 = arith.addf %103, %106 : vector<48x32xf32>
    %c0_87 = arith.constant 0 : index
    %c0_88 = arith.constant 0 : index
    %c0_89 = arith.constant 0 : index
    %108 = vector.load %arg12[%c0_87, %c0_88, %c0_89] : memref<2x1x32xf32, #tpu.memory_space<vmem>>, vector<1x1x32xf32>
    %109 = vector.shape_cast %108 : vector<1x1x32xf32> to vector<1x32xf32>
    %c0_90 = arith.constant 0 : index
    %c0_91 = arith.constant 0 : index
    %c0_92 = arith.constant 0 : index
    %110 = vector.load %arg13[%c0_90, %c0_91, %c0_92] : memref<2x1x32xf32, #tpu.memory_space<vmem>>, vector<1x1x32xf32>
    %111 = vector.shape_cast %110 : vector<1x1x32xf32> to vector<1x32xf32>
    %cst_93 = arith.constant dense<0.000000e+00> : vector<48xf32>
    %112 = vector.multi_reduction <add>, %107, %cst_93 [1] : vector<48x32xf32> to vector<48xf32>
    %113 = vector.shape_cast %112 : vector<48xf32> to vector<48x1xf32>
    %cst_94 = arith.constant 3.200000e+01 : f32
    %114 = vector.broadcast %cst_94 : f32 to vector<48x1xf32>
    %115 = arith.divf %113, %114 : vector<48x1xf32>
    %116 = vector.broadcast %115 : vector<48x1xf32> to vector<48x32xf32>
    %117 = arith.subf %107, %116 : vector<48x32xf32>
    %118 = arith.mulf %117, %117 : vector<48x32xf32>
    %cst_95 = arith.constant dense<0.000000e+00> : vector<48xf32>
    %119 = vector.multi_reduction <add>, %118, %cst_95 [1] : vector<48x32xf32> to vector<48xf32>
    %120 = vector.shape_cast %119 : vector<48xf32> to vector<48x1xf32>
    %cst_96 = arith.constant 3.200000e+01 : f32
    %121 = vector.broadcast %cst_96 : f32 to vector<48x1xf32>
    %122 = arith.divf %120, %121 : vector<48x1xf32>
    %cst_97 = arith.constant 9.99999996E-13 : f32
    %123 = vector.broadcast %cst_97 : f32 to vector<48x1xf32>
    %124 = arith.addf %122, %123 : vector<48x1xf32>
    %125 = math.rsqrt %124 : vector<48x1xf32>
    %126 = vector.broadcast %125 : vector<48x1xf32> to vector<48x32xf32>
    %127 = arith.mulf %117, %126 : vector<48x32xf32>
    %128 = vector.broadcast %109 : vector<1x32xf32> to vector<48x32xf32>
    %129 = arith.mulf %127, %128 : vector<48x32xf32>
    %130 = vector.broadcast %111 : vector<1x32xf32> to vector<48x32xf32>
    %131 = arith.addf %129, %130 : vector<48x32xf32>
    %c0_98 = arith.constant 0 : index
    %c0_99 = arith.constant 0 : index
    %c0_100 = arith.constant 0 : index
    %132 = vector.load %arg14[%c0_98, %c0_99, %c0_100] : memref<2x32x64xf32, #tpu.memory_space<vmem>>, vector<1x32x64xf32>
    %133 = vector.shape_cast %132 : vector<1x32x64xf32> to vector<32x64xf32>
    %cst_101 = arith.constant dense<0.000000e+00> : vector<48x64xf32>
    %134 = tpu.matmul %131, %133, %cst_101 {dimension_numbers = #tpu.dot_dimension_numbers<[1], [0], [0], [1], [0, 0, 1, 1], [], []>} : vector<48x32xf32>, vector<32x64xf32>, vector<48x64xf32> -> vector<48x64xf32>
    %c0_102 = arith.constant 0 : index
    %c0_103 = arith.constant 0 : index
    %c0_104 = arith.constant 0 : index
    %135 = vector.load %arg15[%c0_102, %c0_103, %c0_104] : memref<2x1x64xf32, #tpu.memory_space<vmem>>, vector<1x1x64xf32>
    %136 = vector.shape_cast %135 : vector<1x1x64xf32> to vector<1x64xf32>
    %137 = vector.broadcast %136 : vector<1x64xf32> to vector<48x64xf32>
    %138 = arith.addf %134, %137 : vector<48x64xf32>
    %cst_105 = arith.constant 5.000000e-01 : f32
    %139 = vector.broadcast %cst_105 : f32 to vector<48x64xf32>
    %140 = arith.mulf %139, %138 : vector<48x64xf32>
    %cst_106 = arith.constant 4.471500e-02 : f32
    %141 = vector.broadcast %cst_106 : f32 to vector<48x64xf32>
    %142 = arith.mulf %141, %138 : vector<48x64xf32>
    %143 = arith.mulf %142, %138 : vector<48x64xf32>
    %144 = arith.mulf %143, %138 : vector<48x64xf32>
    %145 = arith.addf %138, %144 : vector<48x64xf32>
    %cst_107 = arith.constant 0.797884583 : f32
    %146 = vector.broadcast %cst_107 : f32 to vector<48x64xf32>
    %147 = arith.mulf %146, %145 : vector<48x64xf32>
    %148 = math.tanh %147 : vector<48x64xf32>
    %cst_108 = arith.constant 1.000000e+00 : f32
    %149 = vector.broadcast %cst_108 : f32 to vector<48x64xf32>
    %150 = arith.addf %149, %148 : vector<48x64xf32>
    %151 = arith.mulf %140, %150 : vector<48x64xf32>
    %c0_109 = arith.constant 0 : index
    %c0_110 = arith.constant 0 : index
    %c0_111 = arith.constant 0 : index
    %152 = vector.load %arg16[%c0_109, %c0_110, %c0_111] : memref<2x64x32xf32, #tpu.memory_space<vmem>>, vector<1x64x32xf32>
    %153 = vector.shape_cast %152 : vector<1x64x32xf32> to vector<64x32xf32>
    %cst_112 = arith.constant dense<0.000000e+00> : vector<48x32xf32>
    %154 = tpu.matmul %151, %153, %cst_112 {dimension_numbers = #tpu.dot_dimension_numbers<[1], [0], [0], [1], [0, 0, 1, 1], [], []>} : vector<48x64xf32>, vector<64x32xf32>, vector<48x32xf32> -> vector<48x32xf32>
    %c0_113 = arith.constant 0 : index
    %c0_114 = arith.constant 0 : index
    %c0_115 = arith.constant 0 : index
    %155 = vector.load %arg17[%c0_113, %c0_114, %c0_115] : memref<2x1x32xf32, #tpu.memory_space<vmem>>, vector<1x1x32xf32>
    %156 = vector.shape_cast %155 : vector<1x1x32xf32> to vector<1x32xf32>
    %157 = vector.broadcast %156 : vector<1x32xf32> to vector<48x32xf32>
    %158 = arith.addf %154, %157 : vector<48x32xf32>
    %159 = arith.addf %131, %158 : vector<48x32xf32>
    %c0_116 = arith.constant 0 : index
    %c0_117 = arith.constant 0 : index
    %c0_118 = arith.constant 0 : index
    %160 = vector.load %arg18[%c0_116, %c0_117, %c0_118] : memref<2x1x32xf32, #tpu.memory_space<vmem>>, vector<1x1x32xf32>
    %161 = vector.shape_cast %160 : vector<1x1x32xf32> to vector<1x32xf32>
    %c0_119 = arith.constant 0 : index
    %c0_120 = arith.constant 0 : index
    %c0_121 = arith.constant 0 : index
    %162 = vector.load %arg19[%c0_119, %c0_120, %c0_121] : memref<2x1x32xf32, #tpu.memory_space<vmem>>, vector<1x1x32xf32>
    %163 = vector.shape_cast %162 : vector<1x1x32xf32> to vector<1x32xf32>
    %cst_122 = arith.constant dense<0.000000e+00> : vector<48xf32>
    %164 = vector.multi_reduction <add>, %159, %cst_122 [1] : vector<48x32xf32> to vector<48xf32>
    %165 = vector.shape_cast %164 : vector<48xf32> to vector<48x1xf32>
    %cst_123 = arith.constant 3.200000e+01 : f32
    %166 = vector.broadcast %cst_123 : f32 to vector<48x1xf32>
    %167 = arith.divf %165, %166 : vector<48x1xf32>
    %168 = vector.broadcast %167 : vector<48x1xf32> to vector<48x32xf32>
    %169 = arith.subf %159, %168 : vector<48x32xf32>
    %170 = arith.mulf %169, %169 : vector<48x32xf32>
    %cst_124 = arith.constant dense<0.000000e+00> : vector<48xf32>
    %171 = vector.multi_reduction <add>, %170, %cst_124 [1] : vector<48x32xf32> to vector<48xf32>
    %172 = vector.shape_cast %171 : vector<48xf32> to vector<48x1xf32>
    %cst_125 = arith.constant 3.200000e+01 : f32
    %173 = vector.broadcast %cst_125 : f32 to vector<48x1xf32>
    %174 = arith.divf %172, %173 : vector<48x1xf32>
    %cst_126 = arith.constant 9.99999996E-13 : f32
    %175 = vector.broadcast %cst_126 : f32 to vector<48x1xf32>
    %176 = arith.addf %174, %175 : vector<48x1xf32>
    %177 = math.rsqrt %176 : vector<48x1xf32>
    %178 = vector.broadcast %177 : vector<48x1xf32> to vector<48x32xf32>
    %179 = arith.mulf %169, %178 : vector<48x32xf32>
    %180 = vector.broadcast %161 : vector<1x32xf32> to vector<48x32xf32>
    %181 = arith.mulf %179, %180 : vector<48x32xf32>
    %182 = vector.broadcast %163 : vector<1x32xf32> to vector<48x32xf32>
    %183 = arith.addf %181, %182 : vector<48x32xf32>
    %c1_127 = arith.constant 1 : index
    %c0_128 = arith.constant 0 : index
    %c0_129 = arith.constant 0 : index
    %c0_130 = arith.constant 0 : index
    %184 = vector.load %arg4[%c1_127, %c0_128, %c0_129, %c0_130] : memref<2x2x32x16xf32, #tpu.memory_space<vmem>>, vector<1x1x32x16xf32>
    %185 = vector.shape_cast %184 : vector<1x1x32x16xf32> to vector<32x16xf32>
    %cst_131 = arith.constant dense<0.000000e+00> : vector<48x16xf32>
    %186 = tpu.matmul %183, %185, %cst_131 {dimension_numbers = #tpu.dot_dimension_numbers<[1], [0], [0], [1], [0, 0, 1, 1], [], []>} : vector<48x32xf32>, vector<32x16xf32>, vector<48x16xf32> -> vector<48x16xf32>
    %c1_132 = arith.constant 1 : index
    %c0_133 = arith.constant 0 : index
    %c0_134 = arith.constant 0 : index
    %c0_135 = arith.constant 0 : index
    %187 = vector.load %arg7[%c1_132, %c0_133, %c0_134, %c0_135] : memref<2x2x1x16xf32, #tpu.memory_space<vmem>>, vector<1x1x1x16xf32>
    %188 = vector.shape_cast %187 : vector<1x1x1x16xf32> to vector<1x16xf32>
    %189 = vector.broadcast %188 : vector<1x16xf32> to vector<48x16xf32>
    %190 = arith.addf %186, %189 : vector<48x16xf32>
    %c1_136 = arith.constant 1 : index
    %c0_137 = arith.constant 0 : index
    %c0_138 = arith.constant 0 : index
    %c0_139 = arith.constant 0 : index
    %191 = vector.load %arg5[%c1_136, %c0_137, %c0_138, %c0_139] : memref<2x2x32x16xf32, #tpu.memory_space<vmem>>, vector<1x1x32x16xf32>
    %192 = vector.shape_cast %191 : vector<1x1x32x16xf32> to vector<32x16xf32>
    %cst_140 = arith.constant dense<0.000000e+00> : vector<48x16xf32>
    %193 = tpu.matmul %183, %192, %cst_140 {dimension_numbers = #tpu.dot_dimension_numbers<[1], [0], [0], [1], [0, 0, 1, 1], [], []>} : vector<48x32xf32>, vector<32x16xf32>, vector<48x16xf32> -> vector<48x16xf32>
    %c1_141 = arith.constant 1 : index
    %c0_142 = arith.constant 0 : index
    %c0_143 = arith.constant 0 : index
    %c0_144 = arith.constant 0 : index
    %194 = vector.load %arg8[%c1_141, %c0_142, %c0_143, %c0_144] : memref<2x2x1x16xf32, #tpu.memory_space<vmem>>, vector<1x1x1x16xf32>
    %195 = vector.shape_cast %194 : vector<1x1x1x16xf32> to vector<1x16xf32>
    %196 = vector.broadcast %195 : vector<1x16xf32> to vector<48x16xf32>
    %197 = arith.addf %193, %196 : vector<48x16xf32>
    %c1_145 = arith.constant 1 : index
    %c0_146 = arith.constant 0 : index
    %c0_147 = arith.constant 0 : index
    %c0_148 = arith.constant 0 : index
    %198 = vector.load %arg6[%c1_145, %c0_146, %c0_147, %c0_148] : memref<2x2x32x16xf32, #tpu.memory_space<vmem>>, vector<1x1x32x16xf32>
    %199 = vector.shape_cast %198 : vector<1x1x32x16xf32> to vector<32x16xf32>
    %cst_149 = arith.constant dense<0.000000e+00> : vector<48x16xf32>
    %200 = tpu.matmul %183, %199, %cst_149 {dimension_numbers = #tpu.dot_dimension_numbers<[1], [0], [0], [1], [0, 0, 1, 1], [], []>} : vector<48x32xf32>, vector<32x16xf32>, vector<48x16xf32> -> vector<48x16xf32>
    %c1_150 = arith.constant 1 : index
    %c0_151 = arith.constant 0 : index
    %c0_152 = arith.constant 0 : index
    %c0_153 = arith.constant 0 : index
    %201 = vector.load %arg9[%c1_150, %c0_151, %c0_152, %c0_153] : memref<2x2x1x16xf32, #tpu.memory_space<vmem>>, vector<1x1x1x16xf32>
    %202 = vector.shape_cast %201 : vector<1x1x1x16xf32> to vector<1x16xf32>
    %203 = vector.broadcast %202 : vector<1x16xf32> to vector<48x16xf32>
    %204 = arith.addf %200, %203 : vector<48x16xf32>
    %cst_154 = arith.constant dense<0.000000e+00> : vector<48x48xf32>
    %205 = tpu.matmul %190, %197, %cst_154 {dimension_numbers = #tpu.dot_dimension_numbers<[1], [1], [0], [0], [0, 0, 1, 0], [], []>} : vector<48x16xf32>, vector<48x16xf32>, vector<48x48xf32> -> vector<48x48xf32>
    %cst_155 = arith.constant 2.500000e-01 : f32
    %206 = vector.broadcast %cst_155 : f32 to vector<48x48xf32>
    %207 = arith.mulf %205, %206 : vector<48x48xf32>
    %208 = arith.addf %207, %23 : vector<48x48xf32>
    %cst_156 = arith.constant dense<0xFF800000> : vector<48xf32>
    %209 = vector.multi_reduction <maximumf>, %208, %cst_156 [1] : vector<48x48xf32> to vector<48xf32>
    %210 = vector.shape_cast %209 : vector<48xf32> to vector<48x1xf32>
    %211 = vector.broadcast %210 : vector<48x1xf32> to vector<48x48xf32>
    %212 = arith.subf %208, %211 : vector<48x48xf32>
    %213 = math.exp %212 : vector<48x48xf32>
    %cst_157 = arith.constant dense<0.000000e+00> : vector<48xf32>
    %214 = vector.multi_reduction <add>, %213, %cst_157 [1] : vector<48x48xf32> to vector<48xf32>
    %215 = vector.shape_cast %214 : vector<48xf32> to vector<48x1xf32>
    %216 = tpu.reciprocal %215 {approx = true} : vector<48x1xf32> -> vector<48x1xf32>
    %217 = vector.broadcast %216 : vector<48x1xf32> to vector<48x48xf32>
    %218 = arith.mulf %213, %217 : vector<48x48xf32>
    %cst_158 = arith.constant dense<0.000000e+00> : vector<48x16xf32>
    %219 = tpu.matmul %218, %204, %cst_158 {dimension_numbers = #tpu.dot_dimension_numbers<[1], [0], [0], [1], [0, 0, 1, 1], [], []>} : vector<48x48xf32>, vector<48x16xf32>, vector<48x16xf32> -> vector<48x16xf32>
    %c1_159 = arith.constant 1 : index
    %c0_160 = arith.constant 0 : index
    %c0_161 = arith.constant 0 : index
    %c0_162 = arith.constant 0 : index
    %220 = vector.load %arg10[%c1_159, %c0_160, %c0_161, %c0_162] : memref<2x2x16x32xf32, #tpu.memory_space<vmem>>, vector<1x1x16x32xf32>
    %221 = vector.shape_cast %220 : vector<1x1x16x32xf32> to vector<16x32xf32>
    %cst_163 = arith.constant dense<0.000000e+00> : vector<48x32xf32>
    %222 = tpu.matmul %219, %221, %cst_163 {dimension_numbers = #tpu.dot_dimension_numbers<[1], [0], [0], [1], [0, 0, 1, 1], [], []>} : vector<48x16xf32>, vector<16x32xf32>, vector<48x32xf32> -> vector<48x32xf32>
    %c1_164 = arith.constant 1 : index
    %c1_165 = arith.constant 1 : index
    %c0_166 = arith.constant 0 : index
    %c0_167 = arith.constant 0 : index
    %223 = vector.load %arg4[%c1_164, %c1_165, %c0_166, %c0_167] : memref<2x2x32x16xf32, #tpu.memory_space<vmem>>, vector<1x1x32x16xf32>
    %224 = vector.shape_cast %223 : vector<1x1x32x16xf32> to vector<32x16xf32>
    %cst_168 = arith.constant dense<0.000000e+00> : vector<48x16xf32>
    %225 = tpu.matmul %183, %224, %cst_168 {dimension_numbers = #tpu.dot_dimension_numbers<[1], [0], [0], [1], [0, 0, 1, 1], [], []>} : vector<48x32xf32>, vector<32x16xf32>, vector<48x16xf32> -> vector<48x16xf32>
    %c1_169 = arith.constant 1 : index
    %c1_170 = arith.constant 1 : index
    %c0_171 = arith.constant 0 : index
    %c0_172 = arith.constant 0 : index
    %226 = vector.load %arg7[%c1_169, %c1_170, %c0_171, %c0_172] : memref<2x2x1x16xf32, #tpu.memory_space<vmem>>, vector<1x1x1x16xf32>
    %227 = vector.shape_cast %226 : vector<1x1x1x16xf32> to vector<1x16xf32>
    %228 = vector.broadcast %227 : vector<1x16xf32> to vector<48x16xf32>
    %229 = arith.addf %225, %228 : vector<48x16xf32>
    %c1_173 = arith.constant 1 : index
    %c1_174 = arith.constant 1 : index
    %c0_175 = arith.constant 0 : index
    %c0_176 = arith.constant 0 : index
    %230 = vector.load %arg5[%c1_173, %c1_174, %c0_175, %c0_176] : memref<2x2x32x16xf32, #tpu.memory_space<vmem>>, vector<1x1x32x16xf32>
    %231 = vector.shape_cast %230 : vector<1x1x32x16xf32> to vector<32x16xf32>
    %cst_177 = arith.constant dense<0.000000e+00> : vector<48x16xf32>
    %232 = tpu.matmul %183, %231, %cst_177 {dimension_numbers = #tpu.dot_dimension_numbers<[1], [0], [0], [1], [0, 0, 1, 1], [], []>} : vector<48x32xf32>, vector<32x16xf32>, vector<48x16xf32> -> vector<48x16xf32>
    %c1_178 = arith.constant 1 : index
    %c1_179 = arith.constant 1 : index
    %c0_180 = arith.constant 0 : index
    %c0_181 = arith.constant 0 : index
    %233 = vector.load %arg8[%c1_178, %c1_179, %c0_180, %c0_181] : memref<2x2x1x16xf32, #tpu.memory_space<vmem>>, vector<1x1x1x16xf32>
    %234 = vector.shape_cast %233 : vector<1x1x1x16xf32> to vector<1x16xf32>
    %235 = vector.broadcast %234 : vector<1x16xf32> to vector<48x16xf32>
    %236 = arith.addf %232, %235 : vector<48x16xf32>
    %c1_182 = arith.constant 1 : index
    %c1_183 = arith.constant 1 : index
    %c0_184 = arith.constant 0 : index
    %c0_185 = arith.constant 0 : index
    %237 = vector.load %arg6[%c1_182, %c1_183, %c0_184, %c0_185] : memref<2x2x32x16xf32, #tpu.memory_space<vmem>>, vector<1x1x32x16xf32>
    %238 = vector.shape_cast %237 : vector<1x1x32x16xf32> to vector<32x16xf32>
    %cst_186 = arith.constant dense<0.000000e+00> : vector<48x16xf32>
    %239 = tpu.matmul %183, %238, %cst_186 {dimension_numbers = #tpu.dot_dimension_numbers<[1], [0], [0], [1], [0, 0, 1, 1], [], []>} : vector<48x32xf32>, vector<32x16xf32>, vector<48x16xf32> -> vector<48x16xf32>
    %c1_187 = arith.constant 1 : index
    %c1_188 = arith.constant 1 : index
    %c0_189 = arith.constant 0 : index
    %c0_190 = arith.constant 0 : index
    %240 = vector.load %arg9[%c1_187, %c1_188, %c0_189, %c0_190] : memref<2x2x1x16xf32, #tpu.memory_space<vmem>>, vector<1x1x1x16xf32>
    %241 = vector.shape_cast %240 : vector<1x1x1x16xf32> to vector<1x16xf32>
    %242 = vector.broadcast %241 : vector<1x16xf32> to vector<48x16xf32>
    %243 = arith.addf %239, %242 : vector<48x16xf32>
    %cst_191 = arith.constant dense<0.000000e+00> : vector<48x48xf32>
    %244 = tpu.matmul %229, %236, %cst_191 {dimension_numbers = #tpu.dot_dimension_numbers<[1], [1], [0], [0], [0, 0, 1, 0], [], []>} : vector<48x16xf32>, vector<48x16xf32>, vector<48x48xf32> -> vector<48x48xf32>
    %cst_192 = arith.constant 2.500000e-01 : f32
    %245 = vector.broadcast %cst_192 : f32 to vector<48x48xf32>
    %246 = arith.mulf %244, %245 : vector<48x48xf32>
    %247 = arith.addf %246, %23 : vector<48x48xf32>
    %cst_193 = arith.constant dense<0xFF800000> : vector<48xf32>
    %248 = vector.multi_reduction <maximumf>, %247, %cst_193 [1] : vector<48x48xf32> to vector<48xf32>
    %249 = vector.shape_cast %248 : vector<48xf32> to vector<48x1xf32>
    %250 = vector.broadcast %249 : vector<48x1xf32> to vector<48x48xf32>
    %251 = arith.subf %247, %250 : vector<48x48xf32>
    %252 = math.exp %251 : vector<48x48xf32>
    %cst_194 = arith.constant dense<0.000000e+00> : vector<48xf32>
    %253 = vector.multi_reduction <add>, %252, %cst_194 [1] : vector<48x48xf32> to vector<48xf32>
    %254 = vector.shape_cast %253 : vector<48xf32> to vector<48x1xf32>
    %255 = tpu.reciprocal %254 {approx = true} : vector<48x1xf32> -> vector<48x1xf32>
    %256 = vector.broadcast %255 : vector<48x1xf32> to vector<48x48xf32>
    %257 = arith.mulf %252, %256 : vector<48x48xf32>
    %cst_195 = arith.constant dense<0.000000e+00> : vector<48x16xf32>
    %258 = tpu.matmul %257, %243, %cst_195 {dimension_numbers = #tpu.dot_dimension_numbers<[1], [0], [0], [1], [0, 0, 1, 1], [], []>} : vector<48x48xf32>, vector<48x16xf32>, vector<48x16xf32> -> vector<48x16xf32>
    %c1_196 = arith.constant 1 : index
    %c1_197 = arith.constant 1 : index
    %c0_198 = arith.constant 0 : index
    %c0_199 = arith.constant 0 : index
    %259 = vector.load %arg10[%c1_196, %c1_197, %c0_198, %c0_199] : memref<2x2x16x32xf32, #tpu.memory_space<vmem>>, vector<1x1x16x32xf32>
    %260 = vector.shape_cast %259 : vector<1x1x16x32xf32> to vector<16x32xf32>
    %cst_200 = arith.constant dense<0.000000e+00> : vector<48x32xf32>
    %261 = tpu.matmul %258, %260, %cst_200 {dimension_numbers = #tpu.dot_dimension_numbers<[1], [0], [0], [1], [0, 0, 1, 1], [], []>} : vector<48x16xf32>, vector<16x32xf32>, vector<48x32xf32> -> vector<48x32xf32>
    %262 = arith.addf %222, %261 : vector<48x32xf32>
    %263 = arith.addf %183, %262 : vector<48x32xf32>
    %c1_201 = arith.constant 1 : index
    %c0_202 = arith.constant 0 : index
    %c0_203 = arith.constant 0 : index
    %264 = vector.load %arg11[%c1_201, %c0_202, %c0_203] : memref<2x1x32xf32, #tpu.memory_space<vmem>>, vector<1x1x32xf32>
    %265 = vector.shape_cast %264 : vector<1x1x32xf32> to vector<1x32xf32>
    %266 = vector.broadcast %265 : vector<1x32xf32> to vector<48x32xf32>
    %267 = arith.addf %263, %266 : vector<48x32xf32>
    %c1_204 = arith.constant 1 : index
    %c0_205 = arith.constant 0 : index
    %c0_206 = arith.constant 0 : index
    %268 = vector.load %arg12[%c1_204, %c0_205, %c0_206] : memref<2x1x32xf32, #tpu.memory_space<vmem>>, vector<1x1x32xf32>
    %269 = vector.shape_cast %268 : vector<1x1x32xf32> to vector<1x32xf32>
    %c1_207 = arith.constant 1 : index
    %c0_208 = arith.constant 0 : index
    %c0_209 = arith.constant 0 : index
    %270 = vector.load %arg13[%c1_207, %c0_208, %c0_209] : memref<2x1x32xf32, #tpu.memory_space<vmem>>, vector<1x1x32xf32>
    %271 = vector.shape_cast %270 : vector<1x1x32xf32> to vector<1x32xf32>
    %cst_210 = arith.constant dense<0.000000e+00> : vector<48xf32>
    %272 = vector.multi_reduction <add>, %267, %cst_210 [1] : vector<48x32xf32> to vector<48xf32>
    %273 = vector.shape_cast %272 : vector<48xf32> to vector<48x1xf32>
    %cst_211 = arith.constant 3.200000e+01 : f32
    %274 = vector.broadcast %cst_211 : f32 to vector<48x1xf32>
    %275 = arith.divf %273, %274 : vector<48x1xf32>
    %276 = vector.broadcast %275 : vector<48x1xf32> to vector<48x32xf32>
    %277 = arith.subf %267, %276 : vector<48x32xf32>
    %278 = arith.mulf %277, %277 : vector<48x32xf32>
    %cst_212 = arith.constant dense<0.000000e+00> : vector<48xf32>
    %279 = vector.multi_reduction <add>, %278, %cst_212 [1] : vector<48x32xf32> to vector<48xf32>
    %280 = vector.shape_cast %279 : vector<48xf32> to vector<48x1xf32>
    %cst_213 = arith.constant 3.200000e+01 : f32
    %281 = vector.broadcast %cst_213 : f32 to vector<48x1xf32>
    %282 = arith.divf %280, %281 : vector<48x1xf32>
    %cst_214 = arith.constant 9.99999996E-13 : f32
    %283 = vector.broadcast %cst_214 : f32 to vector<48x1xf32>
    %284 = arith.addf %282, %283 : vector<48x1xf32>
    %285 = math.rsqrt %284 : vector<48x1xf32>
    %286 = vector.broadcast %285 : vector<48x1xf32> to vector<48x32xf32>
    %287 = arith.mulf %277, %286 : vector<48x32xf32>
    %288 = vector.broadcast %269 : vector<1x32xf32> to vector<48x32xf32>
    %289 = arith.mulf %287, %288 : vector<48x32xf32>
    %290 = vector.broadcast %271 : vector<1x32xf32> to vector<48x32xf32>
    %291 = arith.addf %289, %290 : vector<48x32xf32>
    %c1_215 = arith.constant 1 : index
    %c0_216 = arith.constant 0 : index
    %c0_217 = arith.constant 0 : index
    %292 = vector.load %arg14[%c1_215, %c0_216, %c0_217] : memref<2x32x64xf32, #tpu.memory_space<vmem>>, vector<1x32x64xf32>
    %293 = vector.shape_cast %292 : vector<1x32x64xf32> to vector<32x64xf32>
    %cst_218 = arith.constant dense<0.000000e+00> : vector<48x64xf32>
    %294 = tpu.matmul %291, %293, %cst_218 {dimension_numbers = #tpu.dot_dimension_numbers<[1], [0], [0], [1], [0, 0, 1, 1], [], []>} : vector<48x32xf32>, vector<32x64xf32>, vector<48x64xf32> -> vector<48x64xf32>
    %c1_219 = arith.constant 1 : index
    %c0_220 = arith.constant 0 : index
    %c0_221 = arith.constant 0 : index
    %295 = vector.load %arg15[%c1_219, %c0_220, %c0_221] : memref<2x1x64xf32, #tpu.memory_space<vmem>>, vector<1x1x64xf32>
    %296 = vector.shape_cast %295 : vector<1x1x64xf32> to vector<1x64xf32>
    %297 = vector.broadcast %296 : vector<1x64xf32> to vector<48x64xf32>
    %298 = arith.addf %294, %297 : vector<48x64xf32>
    %cst_222 = arith.constant 5.000000e-01 : f32
    %299 = vector.broadcast %cst_222 : f32 to vector<48x64xf32>
    %300 = arith.mulf %299, %298 : vector<48x64xf32>
    %cst_223 = arith.constant 4.471500e-02 : f32
    %301 = vector.broadcast %cst_223 : f32 to vector<48x64xf32>
    %302 = arith.mulf %301, %298 : vector<48x64xf32>
    %303 = arith.mulf %302, %298 : vector<48x64xf32>
    %304 = arith.mulf %303, %298 : vector<48x64xf32>
    %305 = arith.addf %298, %304 : vector<48x64xf32>
    %cst_224 = arith.constant 0.797884583 : f32
    %306 = vector.broadcast %cst_224 : f32 to vector<48x64xf32>
    %307 = arith.mulf %306, %305 : vector<48x64xf32>
    %308 = math.tanh %307 : vector<48x64xf32>
    %cst_225 = arith.constant 1.000000e+00 : f32
    %309 = vector.broadcast %cst_225 : f32 to vector<48x64xf32>
    %310 = arith.addf %309, %308 : vector<48x64xf32>
    %311 = arith.mulf %300, %310 : vector<48x64xf32>
    %c1_226 = arith.constant 1 : index
    %c0_227 = arith.constant 0 : index
    %c0_228 = arith.constant 0 : index
    %312 = vector.load %arg16[%c1_226, %c0_227, %c0_228] : memref<2x64x32xf32, #tpu.memory_space<vmem>>, vector<1x64x32xf32>
    %313 = vector.shape_cast %312 : vector<1x64x32xf32> to vector<64x32xf32>
    %cst_229 = arith.constant dense<0.000000e+00> : vector<48x32xf32>
    %314 = tpu.matmul %311, %313, %cst_229 {dimension_numbers = #tpu.dot_dimension_numbers<[1], [0], [0], [1], [0, 0, 1, 1], [], []>} : vector<48x64xf32>, vector<64x32xf32>, vector<48x32xf32> -> vector<48x32xf32>
    %c1_230 = arith.constant 1 : index
    %c0_231 = arith.constant 0 : index
    %c0_232 = arith.constant 0 : index
    %315 = vector.load %arg17[%c1_230, %c0_231, %c0_232] : memref<2x1x32xf32, #tpu.memory_space<vmem>>, vector<1x1x32xf32>
    %316 = vector.shape_cast %315 : vector<1x1x32xf32> to vector<1x32xf32>
    %317 = vector.broadcast %316 : vector<1x32xf32> to vector<48x32xf32>
    %318 = arith.addf %314, %317 : vector<48x32xf32>
    %319 = arith.addf %291, %318 : vector<48x32xf32>
    %c1_233 = arith.constant 1 : index
    %c0_234 = arith.constant 0 : index
    %c0_235 = arith.constant 0 : index
    %320 = vector.load %arg18[%c1_233, %c0_234, %c0_235] : memref<2x1x32xf32, #tpu.memory_space<vmem>>, vector<1x1x32xf32>
    %321 = vector.shape_cast %320 : vector<1x1x32xf32> to vector<1x32xf32>
    %c1_236 = arith.constant 1 : index
    %c0_237 = arith.constant 0 : index
    %c0_238 = arith.constant 0 : index
    %322 = vector.load %arg19[%c1_236, %c0_237, %c0_238] : memref<2x1x32xf32, #tpu.memory_space<vmem>>, vector<1x1x32xf32>
    %323 = vector.shape_cast %322 : vector<1x1x32xf32> to vector<1x32xf32>
    %cst_239 = arith.constant dense<0.000000e+00> : vector<48xf32>
    %324 = vector.multi_reduction <add>, %319, %cst_239 [1] : vector<48x32xf32> to vector<48xf32>
    %325 = vector.shape_cast %324 : vector<48xf32> to vector<48x1xf32>
    %cst_240 = arith.constant 3.200000e+01 : f32
    %326 = vector.broadcast %cst_240 : f32 to vector<48x1xf32>
    %327 = arith.divf %325, %326 : vector<48x1xf32>
    %328 = vector.broadcast %327 : vector<48x1xf32> to vector<48x32xf32>
    %329 = arith.subf %319, %328 : vector<48x32xf32>
    %330 = arith.mulf %329, %329 : vector<48x32xf32>
    %cst_241 = arith.constant dense<0.000000e+00> : vector<48xf32>
    %331 = vector.multi_reduction <add>, %330, %cst_241 [1] : vector<48x32xf32> to vector<48xf32>
    %332 = vector.shape_cast %331 : vector<48xf32> to vector<48x1xf32>
    %cst_242 = arith.constant 3.200000e+01 : f32
    %333 = vector.broadcast %cst_242 : f32 to vector<48x1xf32>
    %334 = arith.divf %332, %333 : vector<48x1xf32>
    %cst_243 = arith.constant 9.99999996E-13 : f32
    %335 = vector.broadcast %cst_243 : f32 to vector<48x1xf32>
    %336 = arith.addf %334, %335 : vector<48x1xf32>
    %337 = math.rsqrt %336 : vector<48x1xf32>
    %338 = vector.broadcast %337 : vector<48x1xf32> to vector<48x32xf32>
    %339 = arith.mulf %329, %338 : vector<48x32xf32>
    %340 = vector.broadcast %321 : vector<1x32xf32> to vector<48x32xf32>
    %341 = arith.mulf %339, %340 : vector<48x32xf32>
    %342 = vector.broadcast %323 : vector<1x32xf32> to vector<48x32xf32>
    %343 = arith.addf %341, %342 : vector<48x32xf32>
    %c0_244 = arith.constant 0 : index
    %c0_245 = arith.constant 0 : index
    %344 = vector.load %arg20[%c0_244, %c0_245] : memref<2x48xf32, #tpu.memory_space<vmem>>, vector<2x48xf32>
    %cst_246 = arith.constant dense<0.000000e+00> : vector<2x32xf32>
    %345 = tpu.matmul %344, %343, %cst_246 {dimension_numbers = #tpu.dot_dimension_numbers<[1], [0], [0], [1], [0, 0, 1, 1], [], []>} : vector<2x48xf32>, vector<48x32xf32>, vector<2x32xf32> -> vector<2x32xf32>
    %c0_247 = arith.constant 0 : index
    %c0_248 = arith.constant 0 : index
    %346 = vector.load %arg21[%c0_247, %c0_248] : memref<32x8xf32, #tpu.memory_space<vmem>>, vector<32x8xf32>
    %cst_249 = arith.constant dense<0.000000e+00> : vector<2x8xf32>
    %347 = tpu.matmul %345, %346, %cst_249 {dimension_numbers = #tpu.dot_dimension_numbers<[1], [0], [0], [1], [0, 0, 1, 1], [], []>} : vector<2x32xf32>, vector<32x8xf32>, vector<2x8xf32> -> vector<2x8xf32>
    %c0_250 = arith.constant 0 : index
    %c0_251 = arith.constant 0 : index
    %348 = vector.load %arg22[%c0_250, %c0_251] : memref<1x8xf32, #tpu.memory_space<vmem>>, vector<1x8xf32>
    %349 = vector.broadcast %348 : vector<1x8xf32> to vector<2x8xf32>
    %350 = arith.addf %347, %349 : vector<2x8xf32>
    %c0_252 = arith.constant 0 : index
    %c0_253 = arith.constant 0 : index
    %351 = vector.load %arg23[%c0_252, %c0_253] : memref<2x8xf32, #tpu.memory_space<vmem>>, vector<2x8xf32>
    tpu.vector_store %arg23[%c0_252, %c0_253], %350 {strides = array<i32>} : memref<2x8xf32, #tpu.memory_space<vmem>>, vector<2x8xf32>,
    return
  }
}

</mosaic_0001>

<llo_original>
// kernel: eq.22
$region0: #{eq.22}
  %s0 = inlined_call_operand.vmem [shape: s32[6,8], index: 0, kind: input, shape index: {}]
  %s1 = inlined_call_operand.vmem [shape: s32[48], index: 1, kind: output, shape index: {}]
  $region1: #{eq.22} parent=0
    #allocation0 [shape = 'u8[4096]{0}', space=vmem, size = 0x1000, scoped, tag = 'scoped mem for output reshape']
    %v2 = vld [vmem:[%s0] sm:$0x1]
    %vm3 = vcmask 64512
    %4 = vst.msk [vmem:[#allocation0] sm:$0x1] %vm3, %v2
    %s5 = scalar_lea.vmem %s0, 5
    %v6 = vld [vmem:[%s5] sm:$0x1]
    %7 = vrot.lane.b32.xlu0 %v6, 40
    %v8 = vpop.permute.xlu0 %7
    %vm9 = vcmask 392512
    %10 = vst.msk [vmem:[#allocation0] sm:$0x1] %vm9, %v8
    %s11 = scalar_lea.vmem %s0, 4
    %v12 = vld [vmem:[%s11] sm:$0x1]
    %13 = vrot.lane.b32.xlu0 %v12, 32
    %v14 = vpop.permute.xlu0 %13
    %vm15 = vcmask 326912
    %16 = vst.msk [vmem:[#allocation0] sm:$0x1] %vm15, %v14
    %s17 = scalar_lea.vmem %s0, 3
    %v18 = vld [vmem:[%s17] sm:$0x1]
    %19 = vrot.lane.b32.xlu0 %v18, 24
    %v20 = vpop.permute.xlu0 %19
    %vm21 = vcmask 261312
    %22 = vst.msk [vmem:[#allocation0] sm:$0x1] %vm21, %v20
    %s23 = scalar_lea.vmem %s0, 2
    %v24 = vld [vmem:[%s23] sm:$0x1]
    %25 = vrot.lane.b32.xlu0 %v24, 16
    %v26 = vpop.permute.xlu0 %25
    %vm27 = vcmask 195712
    %28 = vst.msk [vmem:[#allocation0] sm:$0x1] %vm27, %v26
    %s29 = scalar_lea.vmem %s0, 1
    %v30 = vld [vmem:[%s29] sm:$0x1]
    %31 = vrot.lane.b32.xlu0 %v30, 8
    %v32 = vpop.permute.xlu0 %31
    %vm33 = vcmask 130112
    %34 = vst.msk [vmem:[#allocation0] sm:$0x1] %vm33, %v32
    %s36 = sshllo.u32 0, 1
    %v38 = vld [vmem:[#allocation0] sm:%s36]
    %s39 = sshllo.u32 0, 1
    %40 = vst [vmem:[%s1] sm:%s39] %v38

// kernel: bert_module_forward.1
$region0: #{bert_module_forward.1}
  #allocation0 [shape = 'u32[]', space=smem, size = 0x4, offset = 0x4, fixed_abs, tag = 'smem constant byte address 0x4 - core index']
  #allocation1 [shape = 'u32[144,128]{1,0:T(1,128)}', space=vmem, size = 0x12000, scoped, tag = 'internal scratch']
  %s0 = inlined_call_operand.vmem [shape: f32[48,32], index: 0, kind: input, shape index: {}]
  %s1 = inlined_call_operand.vmem [shape: f32[48,48], index: 1, kind: input, shape index: {}]
  %s2 = inlined_call_operand.vmem [shape: f32[1,32], index: 2, kind: input, shape index: {}]
  %s3 = inlined_call_operand.vmem [shape: f32[1,32], index: 3, kind: input, shape index: {}]
  %s4 = inlined_call_operand.vmem [shape: f32[2,2,32,16], index: 4, kind: input, shape index: {}]
  %s5 = inlined_call_operand.vmem [shape: f32[2,2,32,16], index: 5, kind: input, shape index: {}]
  %s6 = inlined_call_operand.vmem [shape: f32[2,2,32,16], index: 6, kind: input, shape index: {}]
  %s7 = inlined_call_operand.vmem [shape: f32[2,2,1,16], index: 7, kind: input, shape index: {}]
  %s8 = inlined_call_operand.vmem [shape: f32[2,2,1,16], index: 8, kind: input, shape index: {}]
  %s9 = inlined_call_operand.vmem [shape: f32[2,2,1,16], index: 9, kind: input, shape index: {}]
  %s10 = inlined_call_operand.vmem [shape: f32[2,2,16,32], index: 10, kind: input, shape index: {}]
  %s11 = inlined_call_operand.vmem [shape: f32[2,1,32], index: 11, kind: input, shape index: {}]
  %s12 = inlined_call_operand.vmem [shape: f32[2,1,32], index: 12, kind: input, shape index: {}]
  %s13 = inlined_call_operand.vmem [shape: f32[2,1,32], index: 13, kind: input, shape index: {}]
  %s14 = inlined_call_operand.vmem [shape: f32[2,32,64], index: 14, kind: input, shape index: {}]
  %s15 = inlined_call_operand.vmem [shape: f32[2,1,64], index: 15, kind: input, shape index: {}]
  %s16 = inlined_call_operand.vmem [shape: f32[2,64,32], index: 16, kind: input, shape index: {}]
  %s17 = inlined_call_operand.vmem [shape: f32[2,1,32], index: 17, kind: input, shape index: {}]
  %s18 = inlined_call_operand.vmem [shape: f32[2,1,32], index: 18, kind: input, shape index: {}]
  %s19 = inlined_call_operand.vmem [shape: f32[2,1,32], index: 19, kind: input, shape index: {}]
  %s20 = inlined_call_operand.vmem [shape: f32[2,48], index: 20, kind: input, shape index: {}]
  %s21 = inlined_call_operand.vmem [shape: f32[32,8], index: 21, kind: input, shape index: {}]
  %s22 = inlined_call_operand.vmem [shape: f32[1,8], index: 22, kind: input, shape index: {}]
  %s23 = inlined_call_operand.vmem [shape: f32[2,8], index: 23, kind: output, shape index: {}]
  %s24 = sld [smem:[#allocation0]]
  $region102: #{bert_module_forward.1} parent=0
    _
  %s26 = ssub.s32 1, %s24
  %s27 = scalar_select 0, %s26, %s24
  // Predicated region
  $region2: #{bert_module_forward.1} parent=0 // pred_check
    _
  $region3: #{bert_module_forward.1} parent=0 // pred_check_branch
    %29 = sbr.rel (0) target = $region5
  $region4: #{bert_module_forward.1} parent=0 // pred_region
    _
  $region5: #{bert_module_forward.1} parent=0 // pred_fallthru
    _
  // Predicated region
  $region6: #{bert_module_forward.1} parent=0 // pred_check
    _
  $region7: #{bert_module_forward.1} parent=0 // pred_check_branch
    %31 = sbr.rel (0) target = $region9
  $region8: #{bert_module_forward.1} parent=0 // pred_region
    _
  $region9: #{bert_module_forward.1} parent=0 // pred_fallthru
    _
  // Predicated region
  $region10: #{bert_module_forward.1} parent=0 // pred_check
    _
  $region11: #{bert_module_forward.1} parent=0 // pred_check_branch
    %33 = sbr.rel (0) target = $region13
  $region12: #{bert_module_forward.1} parent=0 // pred_region
    _
  $region13: #{bert_module_forward.1} parent=0 // pred_fallthru
    _
  // Predicated region
  $region14: #{bert_module_forward.1} parent=0 // pred_check
    _
  $region15: #{bert_module_forward.1} parent=0 // pred_check_branch
    %35 = sbr.rel (0) target = $region17
  $region16: #{bert_module_forward.1} parent=0 // pred_region
    _
  $region17: #{bert_module_forward.1} parent=0 // pred_fallthru
    _
  // Predicated region
  $region18: #{bert_module_forward.1} parent=0 // pred_check
    _
  $region19: #{bert_module_forward.1} parent=0 // pred_check_branch
    %37 = sbr.rel (0) target = $region21
  $region20: #{bert_module_forward.1} parent=0 // pred_region
    _
  $region21: #{bert_module_forward.1} parent=0 // pred_fallthru
    _
  // Predicated region
  $region22: #{bert_module_forward.1} parent=0 // pred_check
    _
  $region23: #{bert_module_forward.1} parent=0 // pred_check_branch
    %39 = sbr.rel (0) target = $region25
  $region24: #{bert_module_forward.1} parent=0 // pred_region
    _
  $region25: #{bert_module_forward.1} parent=0 // pred_fallthru
    _
  // Predicated region
  $region26: #{bert_module_forward.1} parent=0 // pred_check
    _
  $region27: #{bert_module_forward.1} parent=0 // pred_check_branch
    %41 = sbr.rel (0) target = $region29
  $region28: #{bert_module_forward.1} parent=0 // pred_region
    _
  $region29: #{bert_module_forward.1} parent=0 // pred_fallthru
    _
  // Predicated region
  $region30: #{bert_module_forward.1} parent=0 // pred_check
    _
  $region31: #{bert_module_forward.1} parent=0 // pred_check_branch
    %43 = sbr.rel (0) target = $region33
  $region32: #{bert_module_forward.1} parent=0 // pred_region
    _
  $region33: #{bert_module_forward.1} parent=0 // pred_fallthru
    _
  // Predicated region
  $region34: #{bert_module_forward.1} parent=0 // pred_check
    _
  $region35: #{bert_module_forward.1} parent=0 // pred_check_branch
    %45 = sbr.rel (0) target = $region37
  $region36: #{bert_module_forward.1} parent=0 // pred_region
    _
  $region37: #{bert_module_forward.1} parent=0 // pred_fallthru
    _
  // Predicated region
  $region38: #{bert_module_forward.1} parent=0 // pred_check
    _
  $region39: #{bert_module_forward.1} parent=0 // pred_check_branch
    %47 = sbr.rel (0) target = $region41
  $region40: #{bert_module_forward.1} parent=0 // pred_region
    _
  $region41: #{bert_module_forward.1} parent=0 // pred_fallthru
    _
  // Predicated region
  $region42: #{bert_module_forward.1} parent=0 // pred_check
    _
  $region43: #{bert_module_forward.1} parent=0 // pred_check_branch
    %49 = sbr.rel (0) target = $region45
  $region44: #{bert_module_forward.1} parent=0 // pred_region
    _
  $region45: #{bert_module_forward.1} parent=0 // pred_fallthru
    _
  // Predicated region
  $region46: #{bert_module_forward.1} parent=0 // pred_check
    _
  $region47: #{bert_module_forward.1} parent=0 // pred_check_branch
    %51 = sbr.rel (0) target = $region49
  $region48: #{bert_module_forward.1} parent=0 // pred_region
    _
  $region49: #{bert_module_forward.1} parent=0 // pred_fallthru
    _
  // Predicated region
  $region50: #{bert_module_forward.1} parent=0 // pred_check
    _
  $region51: #{bert_module_forward.1} parent=0 // pred_check_branch
    %53 = sbr.rel (0) target = $region53
  $region52: #{bert_module_forward.1} parent=0 // pred_region
    _
  $region53: #{bert_module_forward.1} parent=0 // pred_fallthru
    _
  // Predicated region
  $region54: #{bert_module_forward.1} parent=0 // pred_check
    _
  $region55: #{bert_module_forward.1} parent=0 // pred_check_branch
    %55 = sbr.rel (0) target = $region57
  $region56: #{bert_module_forward.1} parent=0 // pred_region
    _
  $region57: #{bert_module_forward.1} parent=0 // pred_fallthru
    _
  // Predicated region
  $region58: #{bert_module_forward.1} parent=0 // pred_check
    _
  $region59: #{bert_module_forward.1} parent=0 // pred_check_branch
    %57 = sbr.rel (0) target = $region61
  $region60: #{bert_module_forward.1} parent=0 // pred_region
    _
  $region61: #{bert_module_forward.1} parent=0 // pred_fallthru
    _
  // Predicated region
  $region62: #{bert_module_forward.1} parent=0 // pred_check
    _
  $region63: #{bert_module_forward.1} parent=0 // pred_check_branch
    %59 = sbr.rel (0) target = $region65
  $region64: #{bert_module_forward.1} parent=0 // pred_region
    _
  $region65: #{bert_module_forward.1} parent=0 // pred_fallthru
    _
  // Predicated region
  $region66: #{bert_module_forward.1} parent=0 // pred_check
    _
  $region67: #{bert_module_forward.1} parent=0 // pred_check_branch
    %61 = sbr.rel (0) target = $region69
  $region68: #{bert_module_forward.1} parent=0 // pred_region
    _
  $region69: #{bert_module_forward.1} parent=0 // pred_fallthru
    _
  // Predicated region
  $region70: #{bert_module_forward.1} parent=0 // pred_check
    _
  $region71: #{bert_module_forward.1} parent=0 // pred_check_branch
    %63 = sbr.rel (0) target = $region73
  $region72: #{bert_module_forward.1} parent=0 // pred_region
    _
  $region73: #{bert_module_forward.1} parent=0 // pred_fallthru
    _
  // Predicated region
  $region74: #{bert_module_forward.1} parent=0 // pred_check
    _
  $region75: #{bert_module_forward.1} parent=0 // pred_check_branch
    %65 = sbr.rel (0) target = $region77
  $region76: #{bert_module_forward.1} parent=0 // pred_region
    _
  $region77: #{bert_module_forward.1} parent=0 // pred_fallthru
    _
  // Predicated region
  $region78: #{bert_module_forward.1} parent=0 // pred_check
    _
  $region79: #{bert_module_forward.1} parent=0 // pred_check_branch
    %67 = sbr.rel (0) target = $region81
  $region80: #{bert_module_forward.1} parent=0 // pred_region
    _
  $region81: #{bert_module_forward.1} parent=0 // pred_fallthru
    _
  // Predicated region
  $region82: #{bert_module_forward.1} parent=0 // pred_check
    _
  $region83: #{bert_module_forward.1} parent=0 // pred_check_branch
    %69 = sbr.rel (0) target = $region85
  $region84: #{bert_module_forward.1} parent=0 // pred_region
    _
  $region85: #{bert_module_forward.1} parent=0 // pred_fallthru
    _
  // Predicated region
  $region86: #{bert_module_forward.1} parent=0 // pred_check
    _
  $region87: #{bert_module_forward.1} parent=0 // pred_check_branch
    %71 = sbr.rel (0) target = $region89
  $region88: #{bert_module_forward.1} parent=0 // pred_region
    _
  $region89: #{bert_module_forward.1} parent=0 // pred_fallthru
    _
  // Predicated region
  $region90: #{bert_module_forward.1} parent=0 // pred_check
    _
  $region91: #{bert_module_forward.1} parent=0 // pred_check_branch
    %73 = sbr.rel (0) target = $region93
  $region92: #{bert_module_forward.1} parent=0 // pred_region
    _
  $region93: #{bert_module_forward.1} parent=0 // pred_fallthru
    _
  %v74 = vld [vmem:[%s0] sm:$0xff]
  %v75 = vld [vmem:[%s0 + $0x8] sm:$0xff]
  %v76 = vld [vmem:[%s0 + $0x10] sm:$0xff]
  %v77 = vld [vmem:[%s0 + $0x18] sm:$0xff]
  %v78 = vld [vmem:[%s0 + $0x20] sm:$0xff]
  %v79 = vld [vmem:[%s0 + $0x28] sm:$0xff]
  %v80 = vld [vmem:[%s2] sm:$0x1]
  %v81 = vld [vmem:[%s3] sm:$0x1]
  %vm82 = vcmask 261120
  %v83 = vsel %vm82, %v74, 0.0
  %84 = vadd.xlane.f32.xlu0 %v83
  %v85 = vpop.xlane.xlu0 %84
  %v86 = vsel %vm82, %v75, 0.0
  %87 = vadd.xlane.f32.xlu0 %v86
  %v88 = vpop.xlane.xlu0 %87
  %v89 = vsel %vm82, %v76, 0.0
  %90 = vadd.xlane.f32.xlu0 %v89
  %v91 = vpop.xlane.xlu0 %90
  %v92 = vsel %vm82, %v77, 0.0
  %93 = vadd.xlane.f32.xlu0 %v92
  %v94 = vpop.xlane.xlu0 %93
  %v95 = vsel %vm82, %v78, 0.0
  %96 = vadd.xlane.f32.xlu0 %v95
  %v97 = vpop.xlane.xlu0 %96
  %v98 = vsel %vm82, %v79, 0.0
  %99 = vadd.xlane.f32.xlu0 %v98
  %v100 = vpop.xlane.xlu0 %99
  %v101 = vrcp.pop 32.0
  %v102 = vmul.f32 %v85, %v101
  %v103 = vmul.f32 %v88, %v101
  %v104 = vmul.f32 %v91, %v101
  %v105 = vmul.f32 %v94, %v101
  %v106 = vmul.f32 %v97, %v101
  %v107 = vmul.f32 %v100, %v101
  %v108 = vsub.f32 %v74, %v102
  %v109 = vsub.f32 %v75, %v103
  %v110 = vsub.f32 %v76, %v104
  %v111 = vsub.f32 %v77, %v105
  %v112 = vsub.f32 %v78, %v106
  %v113 = vsub.f32 %v79, %v107
  %v114 = vmul.f32 %v108, %v108
  %v115 = vmul.f32 %v109, %v109
  %v116 = vmul.f32 %v110, %v110
  %v117 = vmul.f32 %v111, %v111
  %v118 = vmul.f32 %v112, %v112
  %v119 = vmul.f32 %v113, %v113
  %v120 = vsel %vm82, %v114, 0.0
  %121 = vadd.xlane.f32.xlu0 %v120
  %v122 = vpop.xlane.xlu0 %121
  %v123 = vsel %vm82, %v115, 0.0
  %124 = vadd.xlane.f32.xlu0 %v123
  %v125 = vpop.xlane.xlu0 %124
  %v126 = vsel %vm82, %v116, 0.0
  %127 = vadd.xlane.f32.xlu0 %v126
  %v128 = vpop.xlane.xlu0 %127
  %v129 = vsel %vm82, %v117, 0.0
  %130 = vadd.xlane.f32.xlu0 %v129
  %v131 = vpop.xlane.xlu0 %130
  %v132 = vsel %vm82, %v118, 0.0
  %133 = vadd.xlane.f32.xlu0 %v132
  %v134 = vpop.xlane.xlu0 %133
  %v135 = vsel %vm82, %v119, 0.0
  %136 = vadd.xlane.f32.xlu0 %v135
  %v137 = vpop.xlane.xlu0 %136
  %v138 = vmul.f32 %v122, %v101
  %v139 = vmul.f32 %v125, %v101
  %v140 = vmul.f32 %v128, %v101
  %v141 = vmul.f32 %v131, %v101
  %v142 = vmul.f32 %v134, %v101
  %v143 = vmul.f32 %v137, %v101
  %v144 = vadd.f32 %v138, 1e-12
  %v145 = vadd.f32 %v139, 1e-12
  %v146 = vadd.f32 %v140, 1e-12
  %v147 = vadd.f32 %v141, 1e-12
  %v148 = vadd.f32 %v142, 1e-12
  %v149 = vadd.f32 %v143, 1e-12
  %v150 = vrsqrt.pop %v144
  %v151 = vrsqrt.pop %v145
  %v152 = vrsqrt.pop %v146
  %v153 = vrsqrt.pop %v147
  %v154 = vrsqrt.pop %v148
  %v155 = vrsqrt.pop %v149
  %v156 = vmul.f32 %v108, %v150
  %v157 = vmul.f32 %v109, %v151
  %v158 = vmul.f32 %v110, %v152
  %v159 = vmul.f32 %v111, %v153
  %v160 = vmul.f32 %v112, %v154
  %v161 = vmul.f32 %v113, %v155
  %v163 = vlaneseq
  %v164 = vshrl.u32 %v163, 7
  %v165 = vsub.s32 0, %v164
  %v166 = vrot.slane %v80, %v165
  %v168 = vmul.f32 %v156, %v166
  %v169 = vmul.f32 %v157, %v166
  %v170 = vmul.f32 %v158, %v166
  %v171 = vmul.f32 %v159, %v166
  %v172 = vmul.f32 %v160, %v166
  %v173 = vmul.f32 %v161, %v166
  %v175 = vlaneseq
  %v176 = vshrl.u32 %v175, 7
  %v177 = vsub.s32 0, %v176
  %v178 = vrot.slane %v81, %v177
  %v180 = vadd.f32 %v168, %v178
  %v181 = vadd.f32 %v169, %v178
  %v182 = vadd.f32 %v170, %v178
  %v183 = vadd.f32 %v171, %v178
  %v184 = vadd.f32 %v172, %v178
  %v185 = vadd.f32 %v173, %v178
  %v186 = vld [vmem:[%s1] sm:$0xff]
  %v187 = vld [vmem:[%s1 + $0x8] sm:$0xff]
  %v188 = vld [vmem:[%s1 + $0x10] sm:$0xff]
  %v189 = vld [vmem:[%s1 + $0x18] sm:$0xff]
  %v190 = vld [vmem:[%s1 + $0x20] sm:$0xff]
  %v191 = vld [vmem:[%s1 + $0x28] sm:$0xff]
  %v192 = vld [vmem:[%s4] sm:$0xff]
  %v193 = vld [vmem:[%s4 + $0x8] sm:$0xff]
  %v194 = vld [vmem:[%s4 + $0x10] sm:$0xff]
  %v195 = vld [vmem:[%s4 + $0x18] sm:$0xff]
  %v196 = vld [vmem:[%s7] sm:$0x1]
  %v198 = vlaneseq
  %v199 = vshrl.u32 %v198, 7
  %v200 = vsub.s32 0, %v199
  %v201 = vrot.slane %v196, %v200
  %v204 = vsel %vm82, %v180, 0
  %v207 = vsel %vm82, %v181, 0
  %v210 = vsel %vm82, %v182, 0
  %v213 = vsel %vm82, %v183, 0
  %v216 = vsel %vm82, %v184, 0
  %v219 = vsel %vm82, %v185, 0
  %221 = vmatprep.subr.mxu0 0.0
  %222 = vmatpush1.msra.mxu0 %v192
  %223 = vmatprep.subr.mxu0 0.0
  %224 = vmatpush1.msra.mxu0 %v193
  %225 = vmatprep.subr.mxu0 0.0
  %226 = vmatpush1.msra.mxu0 %v194
  %227 = vmatprep.subr.mxu0 0.0
  %228 = vmatpush1.msra.mxu0 %v195
  %229 = vmatprep.subr.mxu0 0.0
  %230 = vmatpush1.msra.mxu0 0.0
  %231 = vmatprep.subr.mxu0 0.0
  %232 = vmatpush1.msra.mxu0 0.0
  %233 = vmatprep.subr.mxu0 0.0
  %234 = vmatpush1.msra.mxu0 0.0
  %235 = vmatprep.subr.mxu0 0.0
  %236 = vmatpush1.msra.mxu0 0.0
  %237 = vmatprep.subr.mxu0 0.0
  %238 = vmatpush1.msra.mxu0 0.0
  %239 = vmatprep.subr.mxu0 0.0
  %240 = vmatpush1.msra.mxu0 0.0
  %241 = vmatprep.subr.mxu0 0.0
  %242 = vmatpush1.msra.mxu0 0.0
  %243 = vmatprep.subr.mxu0 0.0
  %244 = vmatpush1.msra.mxu0 0.0
  %245 = vmatprep.subr.mxu0 0.0
  %246 = vmatpush1.msra.mxu0 0.0
  %247 = vmatprep.subr.mxu0 0.0
  %248 = vmatpush1.msra.mxu0 0.0
  %249 = vmatprep.subr.mxu0 0.0
  %250 = vmatpush1.msra.mxu0 0.0
  %251 = vmatprep.subr.mxu0 0.0
  %252 = vmatpush1.msra.mxu0 0.0
  %253 = vmatprep.subr.mxu0 0.0
  %254 = vmatpush1.msra.mxu0 0.0
  %255 = vmatprep.subr.mxu0 0.0
  %256 = vmatpush1.msra.mxu0 0.0
  %257 = vmatprep.subr.mxu0 0.0
  %258 = vmatpush1.msra.mxu0 0.0
  %259 = vmatprep.subr.mxu0 0.0
  %260 = vmatpush1.msra.mxu0 0.0
  %261 = vmatprep.subr.mxu0 0.0
  %262 = vmatpush1.msra.mxu0 0.0
  %263 = vmatprep.subr.mxu0 0.0
  %264 = vmatpush1.msra.mxu0 0.0
  %265 = vmatprep.subr.mxu0 0.0
  %266 = vmatpush1.msra.mxu0 0.0
  %267 = vmatprep.subr.mxu0 0.0
  %268 = vmatpush1.msra.mxu0 0.0
  %269 = vmatprep.subr.mxu0 0.0
  %270 = vmatpush1.msra.mxu0 0.0
  %271 = vmatprep.subr.mxu0 0.0
  %272 = vmatpush1.msra.mxu0 0.0
  %273 = vmatprep.subr.mxu0 0.0
  %274 = vmatpush1.msra.mxu0 0.0
  %275 = vmatprep.subr.mxu0 0.0
  %276 = vmatpush1.msra.mxu0 0.0
  %277 = vmatprep.subr.mxu0 0.0
  %278 = vmatpush1.msra.mxu0 0.0
  %279 = vmatprep.subr.mxu0 0.0
  %280 = vmatpush1.msra.mxu0 0.0
  %281 = vmatprep.subr.mxu0 0.0
  %282 = vmatpush1.msra.mxu0 0.0
  %283 = vmatprep.subr.mxu0 0.0
  %284 = vmatpush1.msra.mxu0 0.0
  %285 = vmatprep.mubr.f32.mxu0 0.0
  %286 = vmatmul.mubr.f32.gmra.mrb[0].mxu0 %v204
  %v287 = vpop.f32.mrb[0].mxu0
  %v288 = vadd.f32 %v201, %v287
  %v289 = vpop.f32.mrb[0].mxu0
  %290 = vmatprep.mubr.f32.mxu0 0.0
  %291 = vmatmul.mubr.f32.gmra.mrb[0].mxu0 %v207
  %v292 = vpop.f32.mrb[0].mxu0
  %v293 = vadd.f32 %v201, %v292
  %v294 = vpop.f32.mrb[0].mxu0
  %295 = vmatprep.mubr.f32.mxu0 0.0
  %296 = vmatmul.mubr.f32.gmra.mrb[0].mxu0 %v210
  %v297 = vpop.f32.mrb[0].mxu0
  %v298 = vadd.f32 %v201, %v297
  %v299 = vpop.f32.mrb[0].mxu0
  %300 = vmatprep.mubr.f32.mxu0 0.0
  %301 = vmatmul.mubr.f32.gmra.mrb[0].mxu0 %v213
  %v302 = vpop.f32.mrb[0].mxu0
  %v303 = vadd.f32 %v201, %v302
  %v304 = vpop.f32.mrb[0].mxu0
  %305 = vmatprep.mubr.f32.mxu0 0.0
  %306 = vmatmul.mubr.f32.gmra.mrb[0].mxu0 %v216
  %v307 = vpop.f32.mrb[0].mxu0
  %v308 = vadd.f32 %v201, %v307
  %v309 = vpop.f32.mrb[0].mxu0
  %310 = vmatprep.mubr.f32.mxu0 0.0
  %311 = vmatmul.mubr.f32.gmra.mrb[0].mxu0 %v219
  %v312 = vpop.f32.mrb[0].mxu0
  %v313 = vadd.f32 %v201, %v312
  %v314 = vpop.f32.mrb[0].mxu0
  %315 = vdwg.mxu0
  %v316 = vld [vmem:[%s5] sm:$0xff]
  %v317 = vld [vmem:[%s5 + $0x8] sm:$0xff]
  %v318 = vld [vmem:[%s5 + $0x10] sm:$0xff]
  %v319 = vld [vmem:[%s5 + $0x18] sm:$0xff]
  %v320 = vld [vmem:[%s8] sm:$0x1]
  %v322 = vlaneseq
  %v323 = vshrl.u32 %v322, 7
  %v324 = vsub.s32 0, %v323
  %v325 = vrot.slane %v320, %v324
  %327 = vmatprep.subr.mxu0 0.0
  %328 = vmatpush1.msra.mxu0 %v316
  %329 = vmatprep.subr.mxu0 0.0
  %330 = vmatpush1.msra.mxu0 %v317
  %331 = vmatprep.subr.mxu0 0.0
  %332 = vmatpush1.msra.mxu0 %v318
  %333 = vmatprep.subr.mxu0 0.0
  %334 = vmatpush1.msra.mxu0 %v319
  %335 = vmatprep.subr.mxu0 0.0
  %336 = vmatpush1.msra.mxu0 0.0
  %337 = vmatprep.subr.mxu0 0.0
  %338 = vmatpush1.msra.mxu0 0.0
  %339 = vmatprep.subr.mxu0 0.0
  %340 = vmatpush1.msra.mxu0 0.0
  %341 = vmatprep.subr.mxu0 0.0
  %342 = vmatpush1.msra.mxu0 0.0
  %343 = vmatprep.subr.mxu0 0.0
  %344 = vmatpush1.msra.mxu0 0.0
  %345 = vmatprep.subr.mxu0 0.0
  %346 = vmatpush1.msra.mxu0 0.0
  %347 = vmatprep.subr.mxu0 0.0
  %348 = vmatpush1.msra.mxu0 0.0
  %349 = vmatprep.subr.mxu0 0.0
  %350 = vmatpush1.msra.mxu0 0.0
  %351 = vmatprep.subr.mxu0 0.0
  %352 = vmatpush1.msra.mxu0 0.0
  %353 = vmatprep.subr.mxu0 0.0
  %354 = vmatpush1.msra.mxu0 0.0
  %355 = vmatprep.subr.mxu0 0.0
  %356 = vmatpush1.msra.mxu0 0.0
  %357 = vmatprep.subr.mxu0 0.0
  %358 = vmatpush1.msra.mxu0 0.0
  %359 = vmatprep.subr.mxu0 0.0
  %360 = vmatpush1.msra.mxu0 0.0
  %361 = vmatprep.subr.mxu0 0.0
  %362 = vmatpush1.msra.mxu0 0.0
  %363 = vmatprep.subr.mxu0 0.0
  %364 = vmatpush1.msra.mxu0 0.0
  %365 = vmatprep.subr.mxu0 0.0
  %366 = vmatpush1.msra.mxu0 0.0
  %367 = vmatprep.subr.mxu0 0.0
  %368 = vmatpush1.msra.mxu0 0.0
  %369 = vmatprep.subr.mxu0 0.0
  %370 = vmatpush1.msra.mxu0 0.0
  %371 = vmatprep.subr.mxu0 0.0
  %372 = vmatpush1.msra.mxu0 0.0
  %373 = vmatprep.subr.mxu0 0.0
  %374 = vmatpush1.msra.mxu0 0.0
  %375 = vmatprep.subr.mxu0 0.0
  %376 = vmatpush1.msra.mxu0 0.0
  %377 = vmatprep.subr.mxu0 0.0
  %378 = vmatpush1.msra.mxu0 0.0
  %379 = vmatprep.subr.mxu0 0.0
  %380 = vmatpush1.msra.mxu0 0.0
  %381 = vmatprep.subr.mxu0 0.0
  %382 = vmatpush1.msra.mxu0 0.0
  %383 = vmatprep.subr.mxu0 0.0
  %384 = vmatpush1.msra.mxu0 0.0
  %385 = vmatprep.subr.mxu0 0.0
  %386 = vmatpush1.msra.mxu0 0.0
  %387 = vmatprep.subr.mxu0 0.0
  %388 = vmatpush1.msra.mxu0 0.0
  %389 = vmatprep.subr.mxu0 0.0
  %390 = vmatpush1.msra.mxu0 0.0
  %391 = vmatprep.mubr.f32.mxu0 0.0
  %392 = vmatmul.mubr.f32.gmra.mrb[0].mxu0 %v204
  %v393 = vpop.f32.mrb[0].mxu0
  %v394 = vadd.f32 %v325, %v393
  %v395 = vpop.f32.mrb[0].mxu0
  %396 = vmatprep.mubr.f32.mxu0 0.0
  %397 = vmatmul.mubr.f32.gmra.mrb[0].mxu0 %v207
  %v398 = vpop.f32.mrb[0].mxu0
  %v399 = vadd.f32 %v325, %v398
  %v400 = vpop.f32.mrb[0].mxu0
  %401 = vmatprep.mubr.f32.mxu0 0.0
  %402 = vmatmul.mubr.f32.gmra.mrb[0].mxu0 %v210
  %v403 = vpop.f32.mrb[0].mxu0
  %v404 = vadd.f32 %v325, %v403
  %v405 = vpop.f32.mrb[0].mxu0
  %406 = vmatprep.mubr.f32.mxu0 0.0
  %407 = vmatmul.mubr.f32.gmra.mrb[0].mxu0 %v213
  %v408 = vpop.f32.mrb[0].mxu0
  %v409 = vadd.f32 %v325, %v408
  %v410 = vpop.f32.mrb[0].mxu0
  %411 = vmatprep.mubr.f32.mxu0 0.0
  %412 = vmatmul.mubr.f32.gmra.mrb[0].mxu0 %v216
  %v413 = vpop.f32.mrb[0].mxu0
  %v414 = vadd.f32 %v325, %v413
  %v415 = vpop.f32.mrb[0].mxu0
  %416 = vmatprep.mubr.f32.mxu0 0.0
  %417 = vmatmul.mubr.f32.gmra.mrb[0].mxu0 %v219
  %v418 = vpop.f32.mrb[0].mxu0
  %v419 = vadd.f32 %v325, %v418
  %v420 = vpop.f32.mrb[0].mxu0
  %421 = vdwg.mxu0
  %v422 = vld [vmem:[%s6] sm:$0xff]
  %v423 = vld [vmem:[%s6 + $0x8] sm:$0xff]
  %v424 = vld [vmem:[%s6 + $0x10] sm:$0xff]
  %v425 = vld [vmem:[%s6 + $0x18] sm:$0xff]
  %v426 = vld [vmem:[%s9] sm:$0x1]
  %v428 = vlaneseq
  %v429 = vshrl.u32 %v428, 7
  %v430 = vsub.s32 0, %v429
  %v431 = vrot.slane %v426, %v430
  %433 = vmatprep.subr.mxu0 0.0
  %434 = vmatpush1.msra.mxu0 %v422
  %435 = vmatprep.subr.mxu0 0.0
  %436 = vmatpush1.msra.mxu0 %v423
  %437 = vmatprep.subr.mxu0 0.0
  %438 = vmatpush1.msra.mxu0 %v424
  %439 = vmatprep.subr.mxu0 0.0
  %440 = vmatpush1.msra.mxu0 %v425
  %441 = vmatprep.subr.mxu0 0.0
  %442 = vmatpush1.msra.mxu0 0.0
  %443 = vmatprep.subr.mxu0 0.0
  %444 = vmatpush1.msra.mxu0 0.0
  %445 = vmatprep.subr.mxu0 0.0
  %446 = vmatpush1.msra.mxu0 0.0
  %447 = vmatprep.subr.mxu0 0.0
  %448 = vmatpush1.msra.mxu0 0.0
  %449 = vmatprep.subr.mxu0 0.0
  %450 = vmatpush1.msra.mxu0 0.0
  %451 = vmatprep.subr.mxu0 0.0
  %452 = vmatpush1.msra.mxu0 0.0
  %453 = vmatprep.subr.mxu0 0.0
  %454 = vmatpush1.msra.mxu0 0.0
  %455 = vmatprep.subr.mxu0 0.0
  %456 = vmatpush1.msra.mxu0 0.0
  %457 = vmatprep.subr.mxu0 0.0
  %458 = vmatpush1.msra.mxu0 0.0
  %459 = vmatprep.subr.mxu0 0.0
  %460 = vmatpush1.msra.mxu0 0.0
  %461 = vmatprep.subr.mxu0 0.0
  %462 = vmatpush1.msra.mxu0 0.0
  %463 = vmatprep.subr.mxu0 0.0
  %464 = vmatpush1.msra.mxu0 0.0
  %465 = vmatprep.subr.mxu0 0.0
  %466 = vmatpush1.msra.mxu0 0.0
  %467 = vmatprep.subr.mxu0 0.0
  %468 = vmatpush1.msra.mxu0 0.0
  %469 = vmatprep.subr.mxu0 0.0
  %470 = vmatpush1.msra.mxu0 0.0
  %471 = vmatprep.subr.mxu0 0.0
  %472 = vmatpush1.msra.mxu0 0.0
  %473 = vmatprep.subr.mxu0 0.0
  %474 = vmatpush1.msra.mxu0 0.0
  %475 = vmatprep.subr.mxu0 0.0
  %476 = vmatpush1.msra.mxu0 0.0
  %477 = vmatprep.subr.mxu0 0.0
  %478 = vmatpush1.msra.mxu0 0.0
  %479 = vmatprep.subr.mxu0 0.0
  %480 = vmatpush1.msra.mxu0 0.0
  %481 = vmatprep.subr.mxu0 0.0
  %482 = vmatpush1.msra.mxu0 0.0
  %483 = vmatprep.subr.mxu0 0.0
  %484 = vmatpush1.msra.mxu0 0.0
  %485 = vmatprep.subr.mxu0 0.0
  %486 = vmatpush1.msra.mxu0 0.0
  %487 = vmatprep.subr.mxu0 0.0
  %488 = vmatpush1.msra.mxu0 0.0
  %489 = vmatprep.subr.mxu0 0.0
  %490 = vmatpush1.msra.mxu0 0.0
  %491 = vmatprep.subr.mxu0 0.0
  %492 = vmatpush1.msra.mxu0 0.0
  %493 = vmatprep.subr.mxu0 0.0
  %494 = vmatpush1.msra.mxu0 0.0
  %495 = vmatprep.subr.mxu0 0.0
  %496 = vmatpush1.msra.mxu0 0.0
  %497 = vmatprep.mubr.f32.mxu0 0.0
  %498 = vmatmul.mubr.f32.gmra.mrb[0].mxu0 %v204
  %v499 = vpop.f32.mrb[0].mxu0
  %v500 = vadd.f32 %v431, %v499
  %v501 = vpop.f32.mrb[0].mxu0
  %502 = vmatprep.mubr.f32.mxu0 0.0
  %503 = vmatmul.mubr.f32.gmra.mrb[0].mxu0 %v207
  %v504 = vpop.f32.mrb[0].mxu0
  %v505 = vadd.f32 %v431, %v504
  %v506 = vpop.f32.mrb[0].mxu0
  %507 = vmatprep.mubr.f32.mxu0 0.0
  %508 = vmatmul.mubr.f32.gmra.mrb[0].mxu0 %v210
  %v509 = vpop.f32.mrb[0].mxu0
  %v510 = vadd.f32 %v431, %v509
  %v511 = vpop.f32.mrb[0].mxu0
  %512 = vmatprep.mubr.f32.mxu0 0.0
  %513 = vmatmul.mubr.f32.gmra.mrb[0].mxu0 %v213
  %v514 = vpop.f32.mrb[0].mxu0
  %v515 = vadd.f32 %v431, %v514
  %v516 = vpop.f32.mrb[0].mxu0
  %517 = vmatprep.mubr.f32.mxu0 0.0
  %518 = vmatmul.mubr.f32.gmra.mrb[0].mxu0 %v216
  %v519 = vpop.f32.mrb[0].mxu0
  %v520 = vadd.f32 %v431, %v519
  %v521 = vpop.f32.mrb[0].mxu0
  %522 = vmatprep.mubr.f32.mxu0 0.0
  %523 = vmatmul.mubr.f32.gmra.mrb[0].mxu0 %v219
  %v524 = vpop.f32.mrb[0].mxu0
  %v525 = vadd.f32 %v431, %v524
  %v526 = vpop.f32.mrb[0].mxu0
  %527 = vdwg.mxu0
  %vm528 = vcmask 130048
  %v530 = vsel %vm528, %v288, 0
  %v533 = vsel %vm528, %v293, 0
  %v536 = vsel %vm528, %v298, 0
  %v539 = vsel %vm528, %v303, 0
  %v542 = vsel %vm528, %v308, 0
  %v545 = vsel %vm528, %v313, 0
  %v548 = vsel %vm528, %v394, 0
  %v551 = vsel %vm528, %v399, 0
  %v554 = vsel %vm528, %v404, 0
  %v557 = vsel %vm528, %v409, 0
  %v560 = vsel %vm528, %v414, 0
  %v563 = vsel %vm528, %v419, 0
  %565 = vmatprep.subr.mxu0 0.0
  %566 = vmatpush1.xpose.msra.mxu0 %v548
  %567 = vmatprep.subr.mxu0 0.0
  %568 = vmatpush1.xpose.msra.mxu0 %v551
  %569 = vmatprep.subr.mxu0 0.0
  %570 = vmatpush1.xpose.msra.mxu0 %v554
  %571 = vmatprep.subr.mxu0 0.0
  %572 = vmatpush1.xpose.msra.mxu0 %v557
  %573 = vmatprep.subr.mxu0 0.0
  %574 = vmatpush1.xpose.msra.mxu0 %v560
  %575 = vmatprep.subr.mxu0 0.0
  %576 = vmatpush1.xpose.msra.mxu0 %v563
  %577 = vmatprep.subr.mxu0 0.0
  %578 = vmatpush1.xpose.msra.mxu0 0.0
  %579 = vmatprep.subr.mxu0 0.0
  %580 = vmatpush1.xpose.msra.mxu0 0.0
  %581 = vmatprep.subr.mxu0 0.0
  %582 = vmatpush1.xpose.msra.mxu0 0.0
  %583 = vmatprep.subr.mxu0 0.0
  %584 = vmatpush1.xpose.msra.mxu0 0.0
  %585 = vmatprep.subr.mxu0 0.0
  %586 = vmatpush1.xpose.msra.mxu0 0.0
  %587 = vmatprep.subr.mxu0 0.0
  %588 = vmatpush1.xpose.msra.mxu0 0.0
  %589 = vmatprep.subr.mxu0 0.0
  %590 = vmatpush1.xpose.msra.mxu0 0.0
  %591 = vmatprep.subr.mxu0 0.0
  %592 = vmatpush1.xpose.msra.mxu0 0.0
  %593 = vmatprep.subr.mxu0 0.0
  %594 = vmatpush1.xpose.msra.mxu0 0.0
  %595 = vmatprep.subr.mxu0 0.0
  %596 = vmatpush1.xpose.msra.mxu0 0.0
  %597 = vmatprep.subr.mxu0 0.0
  %598 = vmatpush1.xpose.msra.mxu0 0.0
  %599 = vmatprep.subr.mxu0 0.0
  %600 = vmatpush1.xpose.msra.mxu0 0.0
  %601 = vmatprep.subr.mxu0 0.0
  %602 = vmatpush1.xpose.msra.mxu0 0.0
  %603 = vmatprep.subr.mxu0 0.0
  %604 = vmatpush1.xpose.msra.mxu0 0.0
  %605 = vmatprep.subr.mxu0 0.0
  %606 = vmatpush1.xpose.msra.mxu0 0.0
  %607 = vmatprep.subr.mxu0 0.0
  %608 = vmatpush1.xpose.msra.mxu0 0.0
  %609 = vmatprep.subr.mxu0 0.0
  %610 = vmatpush1.xpose.msra.mxu0 0.0
  %611 = vmatprep.subr.mxu0 0.0
  %612 = vmatpush1.xpose.msra.mxu0 0.0
  %613 = vmatprep.subr.mxu0 0.0
  %614 = vmatpush1.xpose.msra.mxu0 0.0
  %615 = vmatprep.subr.mxu0 0.0
  %616 = vmatpush1.xpose.msra.mxu0 0.0
  %617 = vmatprep.subr.mxu0 0.0
  %618 = vmatpush1.xpose.msra.mxu0 0.0
  %619 = vmatprep.subr.mxu0 0.0
  %620 = vmatpush1.xpose.msra.mxu0 0.0
  %621 = vmatprep.subr.mxu0 0.0
  %622 = vmatpush1.xpose.msra.mxu0 0.0
  %623 = vmatprep.subr.mxu0 0.0
  %624 = vmatpush1.xpose.msra.mxu0 0.0
  %625 = vmatprep.subr.mxu0 0.0
  %626 = vmatpush1.xpose.msra.mxu0 0.0
  %627 = vmatprep.subr.mxu0 0.0
  %628 = vmatpush1.xpose.msra.mxu0 0.0
  %629 = vmatprep.mubr.f32.mxu0 0.0
  %630 = vmatmul.mubr.f32.gmra.mrb[0].mxu0 %v530
  %v631 = vpop.f32.mrb[0].mxu0
  %v632 = vadd.f32 0.0, %v631
  %v633 = vpop.f32.mrb[0].mxu0
  %634 = vmatprep.mubr.f32.mxu0 0.0
  %635 = vmatmul.mubr.f32.gmra.mrb[0].mxu0 %v533
  %v636 = vpop.f32.mrb[0].mxu0
  %v637 = vadd.f32 0.0, %v636
  %v638 = vpop.f32.mrb[0].mxu0
  %639 = vmatprep.mubr.f32.mxu0 0.0
  %640 = vmatmul.mubr.f32.gmra.mrb[0].mxu0 %v536
  %v641 = vpop.f32.mrb[0].mxu0
  %v642 = vadd.f32 0.0, %v641
  %v643 = vpop.f32.mrb[0].mxu0
  %644 = vmatprep.mubr.f32.mxu0 0.0
  %645 = vmatmul.mubr.f32.gmra.mrb[0].mxu0 %v539
  %v646 = vpop.f32.mrb[0].mxu0
  %v647 = vadd.f32 0.0, %v646
  %v648 = vpop.f32.mrb[0].mxu0
  %649 = vmatprep.mubr.f32.mxu0 0.0
  %650 = vmatmul.mubr.f32.gmra.mrb[0].mxu0 %v542
  %v651 = vpop.f32.mrb[0].mxu0
  %v652 = vadd.f32 0.0, %v651
  %v653 = vpop.f32.mrb[0].mxu0
  %654 = vmatprep.mubr.f32.mxu0 0.0
  %655 = vmatmul.mubr.f32.gmra.mrb[0].mxu0 %v545
  %v656 = vpop.f32.mrb[0].mxu0
  %v657 = vadd.f32 0.0, %v656
  %v658 = vpop.f32.mrb[0].mxu0
  %659 = vdwg.mxu0
  %v660 = vmul.f32 %v632, 0.25
  %v661 = vmul.f32 %v637, 0.25
  %v662 = vmul.f32 %v642, 0.25
  %v663 = vmul.f32 %v647, 0.25
  %v664 = vmul.f32 %v652, 0.25
  %v665 = vmul.f32 %v657, 0.25
  %v666 = vadd.f32 %v660, %v186
  %v667 = vadd.f32 %v661, %v187
  %v668 = vadd.f32 %v662, %v188
  %v669 = vadd.f32 %v663, %v189
  %v670 = vadd.f32 %v664, %v190
  %v671 = vadd.f32 %v665, %v191
  %vm672 = vcmask 392192
  %v673 = vsel %vm672, %v666, -inf
  %674 = vmax.xlane.f32.xlu0 %v673
  %v675 = vpop.xlane.xlu0 %674
  %v676 = vsel %vm672, %v667, -inf
  %677 = vmax.xlane.f32.xlu0 %v676
  %v678 = vpop.xlane.xlu0 %677
  %v679 = vsel %vm672, %v668, -inf
  %680 = vmax.xlane.f32.xlu0 %v679
  %v681 = vpop.xlane.xlu0 %680
  %v682 = vsel %vm672, %v669, -inf
  %683 = vmax.xlane.f32.xlu0 %v682
  %v684 = vpop.xlane.xlu0 %683
  %v685 = vsel %vm672, %v670, -inf
  %686 = vmax.xlane.f32.xlu0 %v685
  %v687 = vpop.xlane.xlu0 %686
  %v688 = vsel %vm672, %v671, -inf
  %689 = vmax.xlane.f32.xlu0 %v688
  %v690 = vpop.xlane.xlu0 %689
  %v691 = vsub.f32 %v666, %v675
  %v692 = vsub.f32 %v667, %v678
  %v693 = vsub.f32 %v668, %v681
  %v694 = vsub.f32 %v669, %v684
  %v695 = vsub.f32 %v670, %v687
  %v696 = vsub.f32 %v671, %v690
  %v697 = vmul.f32 %v691, 1.442695
  %v698 = vpow.pop %v697
  %v699 = vmul.f32 %v692, 1.442695
  %v700 = vpow.pop %v699
  %v701 = vmul.f32 %v693, 1.442695
  %v702 = vpow.pop %v701
  %v703 = vmul.f32 %v694, 1.442695
  %v704 = vpow.pop %v703
  %v705 = vmul.f32 %v695, 1.442695
  %v706 = vpow.pop %v705
  %v707 = vmul.f32 %v696, 1.442695
  %v708 = vpow.pop %v707
  %v709 = vsel %vm672, %v698, 0.0
  %710 = vadd.xlane.f32.xlu0 %v709
  %v711 = vpop.xlane.xlu0 %710
  %v712 = vsel %vm672, %v700, 0.0
  %713 = vadd.xlane.f32.xlu0 %v712
  %v714 = vpop.xlane.xlu0 %713
  %v715 = vsel %vm672, %v702, 0.0
  %716 = vadd.xlane.f32.xlu0 %v715
  %v717 = vpop.xlane.xlu0 %716
  %v718 = vsel %vm672, %v704, 0.0
  %719 = vadd.xlane.f32.xlu0 %v718
  %v720 = vpop.xlane.xlu0 %719
  %v721 = vsel %vm672, %v706, 0.0
  %722 = vadd.xlane.f32.xlu0 %v721
  %v723 = vpop.xlane.xlu0 %722
  %v724 = vsel %vm672, %v708, 0.0
  %725 = vadd.xlane.f32.xlu0 %v724
  %v726 = vpop.xlane.xlu0 %725
  %v727 = vrcp.pop %v711
  %v728 = vrcp.pop %v714
  %v729 = vrcp.pop %v717
  %v730 = vrcp.pop %v720
  %v731 = vrcp.pop %v723
  %v732 = vrcp.pop %v726
  %v733 = vmul.f32 %v698, %v727
  %v734 = vmul.f32 %v700, %v728
  %v735 = vmul.f32 %v702, %v729
  %v736 = vmul.f32 %v704, %v730
  %v737 = vmul.f32 %v706, %v731
  %v738 = vmul.f32 %v708, %v732
  %v740 = vsel %vm672, %v733, 0
  %v743 = vsel %vm672, %v734, 0
  %v746 = vsel %vm672, %v735, 0
  %v749 = vsel %vm672, %v736, 0
  %v752 = vsel %vm672, %v737, 0
  %v755 = vsel %vm672, %v738, 0
  %757 = vmatprep.subr.mxu0 0.0
  %758 = vmatpush1.msra.mxu0 %v500
  %759 = vmatprep.subr.mxu0 0.0
  %760 = vmatpush1.msra.mxu0 %v505
  %761 = vmatprep.subr.mxu0 0.0
  %762 = vmatpush1.msra.mxu0 %v510
  %763 = vmatprep.subr.mxu0 0.0
  %764 = vmatpush1.msra.mxu0 %v515
  %765 = vmatprep.subr.mxu0 0.0
  %766 = vmatpush1.msra.mxu0 %v520
  %767 = vmatprep.subr.mxu0 0.0
  %768 = vmatpush1.msra.mxu0 %v525
  %769 = vmatprep.subr.mxu0 0.0
  %770 = vmatpush1.msra.mxu0 0.0
  %771 = vmatprep.subr.mxu0 0.0
  %772 = vmatpush1.msra.mxu0 0.0
  %773 = vmatprep.subr.mxu0 0.0
  %774 = vmatpush1.msra.mxu0 0.0
  %775 = vmatprep.subr.mxu0 0.0
  %776 = vmatpush1.msra.mxu0 0.0
  %777 = vmatprep.subr.mxu0 0.0
  %778 = vmatpush1.msra.mxu0 0.0
  %779 = vmatprep.subr.mxu0 0.0
  %780 = vmatpush1.msra.mxu0 0.0
  %781 = vmatprep.subr.mxu0 0.0
  %782 = vmatpush1.msra.mxu0 0.0
  %783 = vmatprep.subr.mxu0 0.0
  %784 = vmatpush1.msra.mxu0 0.0
  %785 = vmatprep.subr.mxu0 0.0
  %786 = vmatpush1.msra.mxu0 0.0
  %787 = vmatprep.subr.mxu0 0.0
  %788 = vmatpush1.msra.mxu0 0.0
  %789 = vmatprep.subr.mxu0 0.0
  %790 = vmatpush1.msra.mxu0 0.0
  %791 = vmatprep.subr.mxu0 0.0
  %792 = vmatpush1.msra.mxu0 0.0
  %793 = vmatprep.subr.mxu0 0.0
  %794 = vmatpush1.msra.mxu0 0.0
  %795 = vmatprep.subr.mxu0 0.0
  %796 = vmatpush1.msra.mxu0 0.0
  %797 = vmatprep.subr.mxu0 0.0
  %798 = vmatpush1.msra.mxu0 0.0
  %799 = vmatprep.subr.mxu0 0.0
  %800 = vmatpush1.msra.mxu0 0.0
  %801 = vmatprep.subr.mxu0 0.0
  %802 = vmatpush1.msra.mxu0 0.0
  %803 = vmatprep.subr.mxu0 0.0
  %804 = vmatpush1.msra.mxu0 0.0
  %805 = vmatprep.subr.mxu0 0.0
  %806 = vmatpush1.msra.mxu0 0.0
  %807 = vmatprep.subr.mxu0 0.0
  %808 = vmatpush1.msra.mxu0 0.0
  %809 = vmatprep.subr.mxu0 0.0
  %810 = vmatpush1.msra.mxu0 0.0
  %811 = vmatprep.subr.mxu0 0.0
  %812 = vmatpush1.msra.mxu0 0.0
  %813 = vmatprep.subr.mxu0 0.0
  %814 = vmatpush1.msra.mxu0 0.0
  %815 = vmatprep.subr.mxu0 0.0
  %816 = vmatpush1.msra.mxu0 0.0
  %817 = vmatprep.subr.mxu0 0.0
  %818 = vmatpush1.msra.mxu0 0.0
  %819 = vmatprep.subr.mxu0 0.0
  %820 = vmatpush1.msra.mxu0 0.0
  %821 = vmatprep.mubr.f32.mxu0 0.0
  %822 = vmatmul.mubr.f32.gmra.mrb[0].mxu0 %v740
  %v823 = vpop.f32.mrb[0].mxu0
  %v824 = vadd.f32 0.0, %v823
  %v825 = vpop.f32.mrb[0].mxu0
  %826 = vmatprep.mubr.f32.mxu0 0.0
  %827 = vmatmul.mubr.f32.gmra.mrb[0].mxu0 %v743
  %v828 = vpop.f32.mrb[0].mxu0
  %v829 = vadd.f32 0.0, %v828
  %v830 = vpop.f32.mrb[0].mxu0
  %831 = vmatprep.mubr.f32.mxu0 0.0
  %832 = vmatmul.mubr.f32.gmra.mrb[0].mxu0 %v746
  %v833 = vpop.f32.mrb[0].mxu0
  %v834 = vadd.f32 0.0, %v833
  %v835 = vpop.f32.mrb[0].mxu0
  %836 = vmatprep.mubr.f32.mxu0 0.0
  %837 = vmatmul.mubr.f32.gmra.mrb[0].mxu0 %v749
  %v838 = vpop.f32.mrb[0].mxu0
  %v839 = vadd.f32 0.0, %v838
  %v840 = vpop.f32.mrb[0].mxu0
  %841 = vmatprep.mubr.f32.mxu0 0.0
  %842 = vmatmul.mubr.f32.gmra.mrb[0].mxu0 %v752
  %v843 = vpop.f32.mrb[0].mxu0
  %v844 = vadd.f32 0.0, %v843
  %v845 = vpop.f32.mrb[0].mxu0
  %846 = vmatprep.mubr.f32.mxu0 0.0
  %847 = vmatmul.mubr.f32.gmra.mrb[0].mxu0 %v755
  %v848 = vpop.f32.mrb[0].mxu0
  %v849 = vadd.f32 0.0, %v848
  %v850 = vpop.f32.mrb[0].mxu0
  %851 = vdwg.mxu0
  %v852 = vld [vmem:[%s10] sm:$0xff]
  %v853 = vld [vmem:[%s10 + $0x8] sm:$0xff]
  %s854 = scalar_lea.vmem %s4, 32
  %v855 = vld [vmem:[%s854] sm:$0xff]
  %v856 = vld [vmem:[%s854 + $0x8] sm:$0xff]
  %v857 = vld [vmem:[%s854 + $0x10] sm:$0xff]
  %v858 = vld [vmem:[%s854 + $0x18] sm:$0xff]
  %s859 = scalar_lea.vmem %s7, 1
  %v860 = vld [vmem:[%s859] sm:$0x1]
  %v862 = vlaneseq
  %v863 = vshrl.u32 %v862, 7
  %v864 = vsub.s32 0, %v863
  %v865 = vrot.slane %v860, %v864
  %867 = vmatprep.subr.mxu0 0.0
  %868 = vmatpush1.msra.mxu0 %v855
  %869 = vmatprep.subr.mxu0 0.0
  %870 = vmatpush1.msra.mxu0 %v856
  %871 = vmatprep.subr.mxu0 0.0
  %872 = vmatpush1.msra.mxu0 %v857
  %873 = vmatprep.subr.mxu0 0.0
  %874 = vmatpush1.msra.mxu0 %v858
  %875 = vmatprep.subr.mxu0 0.0
  %876 = vmatpush1.msra.mxu0 0.0
  %877 = vmatprep.subr.mxu0 0.0
  %878 = vmatpush1.msra.mxu0 0.0
  %879 = vmatprep.subr.mxu0 0.0
  %880 = vmatpush1.msra.mxu0 0.0
  %881 = vmatprep.subr.mxu0 0.0
  %882 = vmatpush1.msra.mxu0 0.0
  %883 = vmatprep.subr.mxu0 0.0
  %884 = vmatpush1.msra.mxu0 0.0
  %885 = vmatprep.subr.mxu0 0.0
  %886 = vmatpush1.msra.mxu0 0.0
  %887 = vmatprep.subr.mxu0 0.0
  %888 = vmatpush1.msra.mxu0 0.0
  %889 = vmatprep.subr.mxu0 0.0
  %890 = vmatpush1.msra.mxu0 0.0
  %891 = vmatprep.subr.mxu0 0.0
  %892 = vmatpush1.msra.mxu0 0.0
  %893 = vmatprep.subr.mxu0 0.0
  %894 = vmatpush1.msra.mxu0 0.0
  %895 = vmatprep.subr.mxu0 0.0
  %896 = vmatpush1.msra.mxu0 0.0
  %897 = vmatprep.subr.mxu0 0.0
  %898 = vmatpush1.msra.mxu0 0.0
  %899 = vmatprep.subr.mxu0 0.0
  %900 = vmatpush1.msra.mxu0 0.0
  %901 = vmatprep.subr.mxu0 0.0
  %902 = vmatpush1.msra.mxu0 0.0
  %903 = vmatprep.subr.mxu0 0.0
  %904 = vmatpush1.msra.mxu0 0.0
  %905 = vmatprep.subr.mxu0 0.0
  %906 = vmatpush1.msra.mxu0 0.0
  %907 = vmatprep.subr.mxu0 0.0
  %908 = vmatpush1.msra.mxu0 0.0
  %909 = vmatprep.subr.mxu0 0.0
  %910 = vmatpush1.msra.mxu0 0.0
  %911 = vmatprep.subr.mxu0 0.0
  %912 = vmatpush1.msra.mxu0 0.0
  %913 = vmatprep.subr.mxu0 0.0
  %914 = vmatpush1.msra.mxu0 0.0
  %915 = vmatprep.subr.mxu0 0.0
  %916 = vmatpush1.msra.mxu0 0.0
  %917 = vmatprep.subr.mxu0 0.0
  %918 = vmatpush1.msra.mxu0 0.0
  %919 = vmatprep.subr.mxu0 0.0
  %920 = vmatpush1.msra.mxu0 0.0
  %921 = vmatprep.subr.mxu0 0.0
  %922 = vmatpush1.msra.mxu0 0.0
  %923 = vmatprep.subr.mxu0 0.0
  %924 = vmatpush1.msra.mxu0 0.0
  %925 = vmatprep.subr.mxu0 0.0
  %926 = vmatpush1.msra.mxu0 0.0
  %927 = vmatprep.subr.mxu0 0.0
  %928 = vmatpush1.msra.mxu0 0.0
  %929 = vmatprep.subr.mxu0 0.0
  %930 = vmatpush1.msra.mxu0 0.0
  %931 = vmatprep.mubr.f32.mxu0 0.0
  %932 = vmatmul.mubr.f32.gmra.mrb[0].mxu0 %v204
  %v933 = vpop.f32.mrb[0].mxu0
  %v934 = vadd.f32 %v865, %v933
  %v935 = vpop.f32.mrb[0].mxu0
  %936 = vmatprep.mubr.f32.mxu0 0.0
  %937 = vmatmul.mubr.f32.gmra.mrb[0].mxu0 %v207
  %v938 = vpop.f32.mrb[0].mxu0
  %v939 = vadd.f32 %v865, %v938
  %v940 = vpop.f32.mrb[0].mxu0
  %941 = vmatprep.mubr.f32.mxu0 0.0
  %942 = vmatmul.mubr.f32.gmra.mrb[0].mxu0 %v210
  %v943 = vpop.f32.mrb[0].mxu0
  %v944 = vadd.f32 %v865, %v943
  %v945 = vpop.f32.mrb[0].mxu0
  %946 = vmatprep.mubr.f32.mxu0 0.0
  %947 = vmatmul.mubr.f32.gmra.mrb[0].mxu0 %v213
  %v948 = vpop.f32.mrb[0].mxu0
  %v949 = vadd.f32 %v865, %v948
  %v950 = vpop.f32.mrb[0].mxu0
  %951 = vmatprep.mubr.f32.mxu0 0.0
  %952 = vmatmul.mubr.f32.gmra.mrb[0].mxu0 %v216
  %v953 = vpop.f32.mrb[0].mxu0
  %v954 = vadd.f32 %v865, %v953
  %v955 = vpop.f32.mrb[0].mxu0
  %956 = vmatprep.mubr.f32.mxu0 0.0
  %957 = vmatmul.mubr.f32.gmra.mrb[0].mxu0 %v219
  %v958 = vpop.f32.mrb[0].mxu0
  %v959 = vadd.f32 %v865, %v958
  %v960 = vpop.f32.mrb[0].mxu0
  %961 = vdwg.mxu0
  %s962 = scalar_lea.vmem %s5, 32
  %v963 = vld [vmem:[%s962] sm:$0xff]
  %v964 = vld [vmem:[%s962 + $0x8] sm:$0xff]
  %v965 = vld [vmem:[%s962 + $0x10] sm:$0xff]
  %v966 = vld [vmem:[%s962 + $0x18] sm:$0xff]
  %s967 = scalar_lea.vmem %s8, 1
  %v968 = vld [vmem:[%s967] sm:$0x1]
  %v970 = vlaneseq
  %v971 = vshrl.u32 %v970, 7
  %v972 = vsub.s32 0, %v971
  %v973 = vrot.slane %v968, %v972
  %975 = vmatprep.subr.mxu0 0.0
  %976 = vmatpush1.msra.mxu0 %v963
  %977 = vmatprep.subr.mxu0 0.0
  %978 = vmatpush1.msra.mxu0 %v964
  %979 = vmatprep.subr.mxu0 0.0
  %980 = vmatpush1.msra.mxu0 %v965
  %981 = vmatprep.subr.mxu0 0.0
  %982 = vmatpush1.msra.mxu0 %v966
  %983 = vmatprep.subr.mxu0 0.0
  %984 = vmatpush1.msra.mxu0 0.0
  %985 = vmatprep.subr.mxu0 0.0
  %986 = vmatpush1.msra.mxu0 0.0
  %987 = vmatprep.subr.mxu0 0.0
  %988 = vmatpush1.msra.mxu0 0.0
  %989 = vmatprep.subr.mxu0 0.0
  %990 = vmatpush1.msra.mxu0 0.0
  %991 = vmatprep.subr.mxu0 0.0
  %992 = vmatpush1.msra.mxu0 0.0
  %993 = vmatprep.subr.mxu0 0.0
  %994 = vmatpush1.msra.mxu0 0.0
  %995 = vmatprep.subr.mxu0 0.0
  %996 = vmatpush1.msra.mxu0 0.0
  %997 = vmatprep.subr.mxu0 0.0
  %998 = vmatpush1.msra.mxu0 0.0
  %999 = vmatprep.subr.mxu0 0.0
  %1000 = vmatpush1.msra.mxu0 0.0
  %1001 = vmatprep.subr.mxu0 0.0
  %1002 = vmatpush1.msra.mxu0 0.0
  %1003 = vmatprep.subr.mxu0 0.0
  %1004 = vmatpush1.msra.mxu0 0.0
  %1005 = vmatprep.subr.mxu0 0.0
  %1006 = vmatpush1.msra.mxu0 0.0
  %1007 = vmatprep.subr.mxu0 0.0
  %1008 = vmatpush1.msra.mxu0 0.0
  %1009 = vmatprep.subr.mxu0 0.0
  %1010 = vmatpush1.msra.mxu0 0.0
  %1011 = vmatprep.subr.mxu0 0.0
  %1012 = vmatpush1.msra.mxu0 0.0
  %1013 = vmatprep.subr.mxu0 0.0
  %1014 = vmatpush1.msra.mxu0 0.0
  %1015 = vmatprep.subr.mxu0 0.0
  %1016 = vmatpush1.msra.mxu0 0.0
  %1017 = vmatprep.subr.mxu0 0.0
  %1018 = vmatpush1.msra.mxu0 0.0
  %1019 = vmatprep.subr.mxu0 0.0
  %1020 = vmatpush1.msra.mxu0 0.0
  %1021 = vmatprep.subr.mxu0 0.0
  %1022 = vmatpush1.msra.mxu0 0.0
  %1023 = vmatprep.subr.mxu0 0.0
  %1024 = vmatpush1.msra.mxu0 0.0
  %1025 = vmatprep.subr.mxu0 0.0
  %1026 = vmatpush1.msra.mxu0 0.0
  %1027 = vmatprep.subr.mxu0 0.0
  %1028 = vmatpush1.msra.mxu0 0.0
  %1029 = vmatprep.subr.mxu0 0.0
  %1030 = vmatpush1.msra.mxu0 0.0
  %1031 = vmatprep.subr.mxu0 0.0
  %1032 = vmatpush1.msra.mxu0 0.0
  %1033 = vmatprep.subr.mxu0 0.0
  %1034 = vmatpush1.msra.mxu0 0.0
  %1035 = vmatprep.subr.mxu0 0.0
  %1036 = vmatpush1.msra.mxu0 0.0
  %1037 = vmatprep.subr.mxu0 0.0
  %1038 = vmatpush1.msra.mxu0 0.0
  %1039 = vmatprep.mubr.f32.mxu0 0.0
  %1040 = vmatmul.mubr.f32.gmra.mrb[0].mxu0 %v204
  %v1041 = vpop.f32.mrb[0].mxu0
  %v1042 = vadd.f32 %v973, %v1041
  %v1043 = vpop.f32.mrb[0].mxu0
  %1044 = vmatprep.mubr.f32.mxu0 0.0
  %1045 = vmatmul.mubr.f32.gmra.mrb[0].mxu0 %v207
  %v1046 = vpop.f32.mrb[0].mxu0
  %v1047 = vadd.f32 %v973, %v1046
  %v1048 = vpop.f32.mrb[0].mxu0
  %1049 = vmatprep.mubr.f32.mxu0 0.0
  %1050 = vmatmul.mubr.f32.gmra.mrb[0].mxu0 %v210
  %v1051 = vpop.f32.mrb[0].mxu0
  %v1052 = vadd.f32 %v973, %v1051
  %v1053 = vpop.f32.mrb[0].mxu0
  %1054 = vmatprep.mubr.f32.mxu0 0.0
  %1055 = vmatmul.mubr.f32.gmra.mrb[0].mxu0 %v213
  %v1056 = vpop.f32.mrb[0].mxu0
  %v1057 = vadd.f32 %v973, %v1056
  %v1058 = vpop.f32.mrb[0].mxu0
  %1059 = vmatprep.mubr.f32.mxu0 0.0
  %1060 = vmatmul.mubr.f32.gmra.mrb[0].mxu0 %v216
  %v1061 = vpop.f32.mrb[0].mxu0
  %v1062 = vadd.f32 %v973, %v1061
  %v1063 = vpop.f32.mrb[0].mxu0
  %1064 = vmatprep.mubr.f32.mxu0 0.0
  %1065 = vmatmul.mubr.f32.gmra.mrb[0].mxu0 %v219
  %v1066 = vpop.f32.mrb[0].mxu0
  %v1067 = vadd.f32 %v973, %v1066
  %v1068 = vpop.f32.mrb[0].mxu0
  %1069 = vdwg.mxu0
  %s1070 = scalar_lea.vmem %s6, 32
  %v1071 = vld [vmem:[%s1070] sm:$0xff]
  %v1072 = vld [vmem:[%s1070 + $0x8] sm:$0xff]
  %v1073 = vld [vmem:[%s1070 + $0x10] sm:$0xff]
  %v1074 = vld [vmem:[%s1070 + $0x18] sm:$0xff]
  %s1075 = scalar_lea.vmem %s9, 1
  %v1076 = vld [vmem:[%s1075] sm:$0x1]
  %v1078 = vlaneseq
  %v1079 = vshrl.u32 %v1078, 7
  %v1080 = vsub.s32 0, %v1079
  %v1081 = vrot.slane %v1076, %v1080
  %1083 = vmatprep.subr.mxu0 0.0
  %1084 = vmatpush1.msra.mxu0 %v1071
  %1085 = vmatprep.subr.mxu0 0.0
  %1086 = vmatpush1.msra.mxu0 %v1072
  %1087 = vmatprep.subr.mxu0 0.0
  %1088 = vmatpush1.msra.mxu0 %v1073
  %1089 = vmatprep.subr.mxu0 0.0
  %1090 = vmatpush1.msra.mxu0 %v1074
  %1091 = vmatprep.subr.mxu0 0.0
  %1092 = vmatpush1.msra.mxu0 0.0
  %1093 = vmatprep.subr.mxu0 0.0
  %1094 = vmatpush1.msra.mxu0 0.0
  %1095 = vmatprep.subr.mxu0 0.0
  %1096 = vmatpush1.msra.mxu0 0.0
  %1097 = vmatprep.subr.mxu0 0.0
  %1098 = vmatpush1.msra.mxu0 0.0
  %1099 = vmatprep.subr.mxu0 0.0
  %1100 = vmatpush1.msra.mxu0 0.0
  %1101 = vmatprep.subr.mxu0 0.0
  %1102 = vmatpush1.msra.mxu0 0.0
  %1103 = vmatprep.subr.mxu0 0.0
  %1104 = vmatpush1.msra.mxu0 0.0
  %1105 = vmatprep.subr.mxu0 0.0
  %1106 = vmatpush1.msra.mxu0 0.0
  %1107 = vmatprep.subr.mxu0 0.0
  %1108 = vmatpush1.msra.mxu0 0.0
  %1109 = vmatprep.subr.mxu0 0.0
  %1110 = vmatpush1.msra.mxu0 0.0
  %1111 = vmatprep.subr.mxu0 0.0
  %1112 = vmatpush1.msra.mxu0 0.0
  %1113 = vmatprep.subr.mxu0 0.0
  %1114 = vmatpush1.msra.mxu0 0.0
  %1115 = vmatprep.subr.mxu0 0.0
  %1116 = vmatpush1.msra.mxu0 0.0
  %1117 = vmatprep.subr.mxu0 0.0
  %1118 = vmatpush1.msra.mxu0 0.0
  %1119 = vmatprep.subr.mxu0 0.0
  %1120 = vmatpush1.msra.mxu0 0.0
  %1121 = vmatprep.subr.mxu0 0.0
  %1122 = vmatpush1.msra.mxu0 0.0
  %1123 = vmatprep.subr.mxu0 0.0
  %1124 = vmatpush1.msra.mxu0 0.0
  %1125 = vmatprep.subr.mxu0 0.0
  %1126 = vmatpush1.msra.mxu0 0.0
  %1127 = vmatprep.subr.mxu0 0.0
  %1128 = vmatpush1.msra.mxu0 0.0
  %1129 = vmatprep.subr.mxu0 0.0
  %1130 = vmatpush1.msra.mxu0 0.0
  %1131 = vmatprep.subr.mxu0 0.0
  %1132 = vmatpush1.msra.mxu0 0.0
  %1133 = vmatprep.subr.mxu0 0.0
  %1134 = vmatpush1.msra.mxu0 0.0
  %1135 = vmatprep.subr.mxu0 0.0
  %1136 = vmatpush1.msra.mxu0 0.0
  %1137 = vmatprep.subr.mxu0 0.0
  %1138 = vmatpush1.msra.mxu0 0.0
  %1139 = vmatprep.subr.mxu0 0.0
  %1140 = vmatpush1.msra.mxu0 0.0
  %1141 = vmatprep.subr.mxu0 0.0
  %1142 = vmatpush1.msra.mxu0 0.0
  %1143 = vmatprep.subr.mxu0 0.0
  %1144 = vmatpush1.msra.mxu0 0.0
  %1145 = vmatprep.subr.mxu0 0.0
  %1146 = vmatpush1.msra.mxu0 0.0
  %1147 = vmatprep.mubr.f32.mxu0 0.0
  %1148 = vmatmul.mubr.f32.gmra.mrb[0].mxu0 %v204
  %v1149 = vpop.f32.mrb[0].mxu0
  %v1150 = vadd.f32 %v1081, %v1149
  %v1151 = vpop.f32.mrb[0].mxu0
  %1152 = vmatprep.mubr.f32.mxu0 0.0
  %1153 = vmatmul.mubr.f32.gmra.mrb[0].mxu0 %v207
  %v1154 = vpop.f32.mrb[0].mxu0
  %v1155 = vadd.f32 %v1081, %v1154
  %v1156 = vpop.f32.mrb[0].mxu0
  %1157 = vmatprep.mubr.f32.mxu0 0.0
  %1158 = vmatmul.mubr.f32.gmra.mrb[0].mxu0 %v210
  %v1159 = vpop.f32.mrb[0].mxu0
  %v1160 = vadd.f32 %v1081, %v1159
  %v1161 = vpop.f32.mrb[0].mxu0
  %1162 = vmatprep.mubr.f32.mxu0 0.0
  %1163 = vmatmul.mubr.f32.gmra.mrb[0].mxu0 %v213
  %v1164 = vpop.f32.mrb[0].mxu0
  %v1165 = vadd.f32 %v1081, %v1164
  %v1166 = vpop.f32.mrb[0].mxu0
  %1167 = vmatprep.mubr.f32.mxu0 0.0
  %1168 = vmatmul.mubr.f32.gmra.mrb[0].mxu0 %v216
  %v1169 = vpop.f32.mrb[0].mxu0
  %v1170 = vadd.f32 %v1081, %v1169
  %v1171 = vpop.f32.mrb[0].mxu0
  %1172 = vmatprep.mubr.f32.mxu0 0.0
  %1173 = vmatmul.mubr.f32.gmra.mrb[0].mxu0 %v219
  %v1174 = vpop.f32.mrb[0].mxu0
  %v1175 = vadd.f32 %v1081, %v1174
  %v1176 = vpop.f32.mrb[0].mxu0
  %1177 = vdwg.mxu0
  %v1179 = vsel %vm528, %v934, 0
  %v1182 = vsel %vm528, %v939, 0
  %v1185 = vsel %vm528, %v944, 0
  %v1188 = vsel %vm528, %v949, 0
  %v1191 = vsel %vm528, %v954, 0
  %v1194 = vsel %vm528, %v959, 0
  %v1197 = vsel %vm528, %v1042, 0
  %v1200 = vsel %vm528, %v1047, 0
  %v1203 = vsel %vm528, %v1052, 0
  %v1206 = vsel %vm528, %v1057, 0
  %v1209 = vsel %vm528, %v1062, 0
  %v1212 = vsel %vm528, %v1067, 0
  %1214 = vmatprep.subr.mxu0 0.0
  %1215 = vmatpush1.xpose.msra.mxu0 %v1197
  %1216 = vmatprep.subr.mxu0 0.0
  %1217 = vmatpush1.xpose.msra.mxu0 %v1200
  %1218 = vmatprep.subr.mxu0 0.0
  %1219 = vmatpush1.xpose.msra.mxu0 %v1203
  %1220 = vmatprep.subr.mxu0 0.0
  %1221 = vmatpush1.xpose.msra.mxu0 %v1206
  %1222 = vmatprep.subr.mxu0 0.0
  %1223 = vmatpush1.xpose.msra.mxu0 %v1209
  %1224 = vmatprep.subr.mxu0 0.0
  %1225 = vmatpush1.xpose.msra.mxu0 %v1212
  %1226 = vmatprep.subr.mxu0 0.0
  %1227 = vmatpush1.xpose.msra.mxu0 0.0
  %1228 = vmatprep.subr.mxu0 0.0
  %1229 = vmatpush1.xpose.msra.mxu0 0.0
  %1230 = vmatprep.subr.mxu0 0.0
  %1231 = vmatpush1.xpose.msra.mxu0 0.0
  %1232 = vmatprep.subr.mxu0 0.0
  %1233 = vmatpush1.xpose.msra.mxu0 0.0
  %1234 = vmatprep.subr.mxu0 0.0
  %1235 = vmatpush1.xpose.msra.mxu0 0.0
  %1236 = vmatprep.subr.mxu0 0.0
  %1237 = vmatpush1.xpose.msra.mxu0 0.0
  %1238 = vmatprep.subr.mxu0 0.0
  %1239 = vmatpush1.xpose.msra.mxu0 0.0
  %1240 = vmatprep.subr.mxu0 0.0
  %1241 = vmatpush1.xpose.msra.mxu0 0.0
  %1242 = vmatprep.subr.mxu0 0.0
  %1243 = vmatpush1.xpose.msra.mxu0 0.0
  %1244 = vmatprep.subr.mxu0 0.0
  %1245 = vmatpush1.xpose.msra.mxu0 0.0
  %1246 = vmatprep.subr.mxu0 0.0
  %1247 = vmatpush1.xpose.msra.mxu0 0.0
  %1248 = vmatprep.subr.mxu0 0.0
  %1249 = vmatpush1.xpose.msra.mxu0 0.0
  %1250 = vmatprep.subr.mxu0 0.0
  %1251 = vmatpush1.xpose.msra.mxu0 0.0
  %1252 = vmatprep.subr.mxu0 0.0
  %1253 = vmatpush1.xpose.msra.mxu0 0.0
  %1254 = vmatprep.subr.mxu0 0.0
  %1255 = vmatpush1.xpose.msra.mxu0 0.0
  %1256 = vmatprep.subr.mxu0 0.0
  %1257 = vmatpush1.xpose.msra.mxu0 0.0
  %1258 = vmatprep.subr.mxu0 0.0
  %1259 = vmatpush1.xpose.msra.mxu0 0.0
  %1260 = vmatprep.subr.mxu0 0.0
  %1261 = vmatpush1.xpose.msra.mxu0 0.0
  %1262 = vmatprep.subr.mxu0 0.0
  %1263 = vmatpush1.xpose.msra.mxu0 0.0
  %1264 = vmatprep.subr.mxu0 0.0
  %1265 = vmatpush1.xpose.msra.mxu0 0.0
  %1266 = vmatprep.subr.mxu0 0.0
  %1267 = vmatpush1.xpose.msra.mxu0 0.0
  %1268 = vmatprep.subr.mxu0 0.0
  %1269 = vmatpush1.xpose.msra.mxu0 0.0
  %1270 = vmatprep.subr.mxu0 0.0
  %1271 = vmatpush1.xpose.msra.mxu0 0.0
  %1272 = vmatprep.subr.mxu0 0.0
  %1273 = vmatpush1.xpose.msra.mxu0 0.0
  %1274 = vmatprep.subr.mxu0 0.0
  %1275 = vmatpush1.xpose.msra.mxu0 0.0
  %1276 = vmatprep.subr.mxu0 0.0
  %1277 = vmatpush1.xpose.msra.mxu0 0.0
  %1278 = vmatprep.mubr.f32.mxu0 0.0
  %1279 = vmatmul.mubr.f32.gmra.mrb[0].mxu0 %v1179
  %v1280 = vpop.f32.mrb[0].mxu0
  %v1281 = vadd.f32 0.0, %v1280
  %v1282 = vpop.f32.mrb[0].mxu0
  %1283 = vmatprep.mubr.f32.mxu0 0.0
  %1284 = vmatmul.mubr.f32.gmra.mrb[0].mxu0 %v1182
  %v1285 = vpop.f32.mrb[0].mxu0
  %v1286 = vadd.f32 0.0, %v1285
  %v1287 = vpop.f32.mrb[0].mxu0
  %1288 = vmatprep.mubr.f32.mxu0 0.0
  %1289 = vmatmul.mubr.f32.gmra.mrb[0].mxu0 %v1185
  %v1290 = vpop.f32.mrb[0].mxu0
  %v1291 = vadd.f32 0.0, %v1290
  %v1292 = vpop.f32.mrb[0].mxu0
  %1293 = vmatprep.mubr.f32.mxu0 0.0
  %1294 = vmatmul.mubr.f32.gmra.mrb[0].mxu0 %v1188
  %v1295 = vpop.f32.mrb[0].mxu0
  %v1296 = vadd.f32 0.0, %v1295
  %v1297 = vpop.f32.mrb[0].mxu0
  %1298 = vmatprep.mubr.f32.mxu0 0.0
  %1299 = vmatmul.mubr.f32.gmra.mrb[0].mxu0 %v1191
  %v1300 = vpop.f32.mrb[0].mxu0
  %v1301 = vadd.f32 0.0, %v1300
  %v1302 = vpop.f32.mrb[0].mxu0
  %1303 = vmatprep.mubr.f32.mxu0 0.0
  %1304 = vmatmul.mubr.f32.gmra.mrb[0].mxu0 %v1194
  %v1305 = vpop.f32.mrb[0].mxu0
  %v1306 = vadd.f32 0.0, %v1305
  %v1307 = vpop.f32.mrb[0].mxu0
  %1308 = vdwg.mxu0
  %v1309 = vmul.f32 %v1281, 0.25
  %v1310 = vmul.f32 %v1286, 0.25
  %v1311 = vmul.f32 %v1291, 0.25
  %v1312 = vmul.f32 %v1296, 0.25
  %v1313 = vmul.f32 %v1301, 0.25
  %v1314 = vmul.f32 %v1306, 0.25
  %v1315 = vadd.f32 %v1309, %v186
  %v1316 = vadd.f32 %v1310, %v187
  %v1317 = vadd.f32 %v1311, %v188
  %v1318 = vadd.f32 %v1312, %v189
  %v1319 = vadd.f32 %v1313, %v190
  %v1320 = vadd.f32 %v1314, %v191
  %v1321 = vsel %vm672, %v1315, -inf
  %1322 = vmax.xlane.f32.xlu0 %v1321
  %v1323 = vpop.xlane.xlu0 %1322
  %v1324 = vsel %vm672, %v1316, -inf
  %1325 = vmax.xlane.f32.xlu0 %v1324
  %v1326 = vpop.xlane.xlu0 %1325
  %v1327 = vsel %vm672, %v1317, -inf
  %1328 = vmax.xlane.f32.xlu0 %v1327
  %v1329 = vpop.xlane.xlu0 %1328
  %v1330 = vsel %vm672, %v1318, -inf
  %1331 = vmax.xlane.f32.xlu0 %v1330
  %v1332 = vpop.xlane.xlu0 %1331
  %v1333 = vsel %vm672, %v1319, -inf
  %1334 = vmax.xlane.f32.xlu0 %v1333
  %v1335 = vpop.xlane.xlu0 %1334
  %v1336 = vsel %vm672, %v1320, -inf
  %1337 = vmax.xlane.f32.xlu0 %v1336
  %v1338 = vpop.xlane.xlu0 %1337
  %v1339 = vsub.f32 %v1315, %v1323
  %v1340 = vsub.f32 %v1316, %v1326
  %v1341 = vsub.f32 %v1317, %v1329
  %v1342 = vsub.f32 %v1318, %v1332
  %v1343 = vsub.f32 %v1319, %v1335
  %v1344 = vsub.f32 %v1320, %v1338
  %v1345 = vmul.f32 %v1339, 1.442695
  %v1346 = vpow.pop %v1345
  %v1347 = vmul.f32 %v1340, 1.442695
  %v1348 = vpow.pop %v1347
  %v1349 = vmul.f32 %v1341, 1.442695
  %v1350 = vpow.pop %v1349
  %v1351 = vmul.f32 %v1342, 1.442695
  %v1352 = vpow.pop %v1351
  %v1353 = vmul.f32 %v1343, 1.442695
  %v1354 = vpow.pop %v1353
  %v1355 = vmul.f32 %v1344, 1.442695
  %v1356 = vpow.pop %v1355
  %v1357 = vsel %vm672, %v1346, 0.0
  %1358 = vadd.xlane.f32.xlu0 %v1357
  %v1359 = vpop.xlane.xlu0 %1358
  %v1360 = vsel %vm672, %v1348, 0.0
  %1361 = vadd.xlane.f32.xlu0 %v1360
  %v1362 = vpop.xlane.xlu0 %1361
  %v1363 = vsel %vm672, %v1350, 0.0
  %1364 = vadd.xlane.f32.xlu0 %v1363
  %v1365 = vpop.xlane.xlu0 %1364
  %v1366 = vsel %vm672, %v1352, 0.0
  %1367 = vadd.xlane.f32.xlu0 %v1366
  %v1368 = vpop.xlane.xlu0 %1367
  %v1369 = vsel %vm672, %v1354, 0.0
  %1370 = vadd.xlane.f32.xlu0 %v1369
  %v1371 = vpop.xlane.xlu0 %1370
  %v1372 = vsel %vm672, %v1356, 0.0
  %1373 = vadd.xlane.f32.xlu0 %v1372
  %v1374 = vpop.xlane.xlu0 %1373
  %v1375 = vrcp.pop %v1359
  %v1376 = vrcp.pop %v1362
  %v1377 = vrcp.pop %v1365
  %v1378 = vrcp.pop %v1368
  %v1379 = vrcp.pop %v1371
  %v1380 = vrcp.pop %v1374
  %v1381 = vmul.f32 %v1346, %v1375
  %v1382 = vmul.f32 %v1348, %v1376
  %v1383 = vmul.f32 %v1350, %v1377
  %v1384 = vmul.f32 %v1352, %v1378
  %v1385 = vmul.f32 %v1354, %v1379
  %v1386 = vmul.f32 %v1356, %v1380
  %v1388 = vsel %vm672, %v1381, 0
  %v1391 = vsel %vm672, %v1382, 0
  %v1394 = vsel %vm672, %v1383, 0
  %v1397 = vsel %vm672, %v1384, 0
  %v1400 = vsel %vm672, %v1385, 0
  %v1403 = vsel %vm672, %v1386, 0
  %1405 = vmatprep.subr.mxu0 0.0
  %1406 = vmatpush1.msra.mxu0 %v1150
  %1407 = vmatprep.subr.mxu0 0.0
  %1408 = vmatpush1.msra.mxu0 %v1155
  %1409 = vmatprep.subr.mxu0 0.0
  %1410 = vmatpush1.msra.mxu0 %v1160
  %1411 = vmatprep.subr.mxu0 0.0
  %1412 = vmatpush1.msra.mxu0 %v1165
  %1413 = vmatprep.subr.mxu0 0.0
  %1414 = vmatpush1.msra.mxu0 %v1170
  %1415 = vmatprep.subr.mxu0 0.0
  %1416 = vmatpush1.msra.mxu0 %v1175
  %1417 = vmatprep.subr.mxu0 0.0
  %1418 = vmatpush1.msra.mxu0 0.0
  %1419 = vmatprep.subr.mxu0 0.0
  %1420 = vmatpush1.msra.mxu0 0.0
  %1421 = vmatprep.subr.mxu0 0.0
  %1422 = vmatpush1.msra.mxu0 0.0
  %1423 = vmatprep.subr.mxu0 0.0
  %1424 = vmatpush1.msra.mxu0 0.0
  %1425 = vmatprep.subr.mxu0 0.0
  %1426 = vmatpush1.msra.mxu0 0.0
  %1427 = vmatprep.subr.mxu0 0.0
  %1428 = vmatpush1.msra.mxu0 0.0
  %1429 = vmatprep.subr.mxu0 0.0
  %1430 = vmatpush1.msra.mxu0 0.0
  %1431 = vmatprep.subr.mxu0 0.0
  %1432 = vmatpush1.msra.mxu0 0.0
  %1433 = vmatprep.subr.mxu0 0.0
  %1434 = vmatpush1.msra.mxu0 0.0
  %1435 = vmatprep.subr.mxu0 0.0
  %1436 = vmatpush1.msra.mxu0 0.0
  %1437 = vmatprep.subr.mxu0 0.0
  %1438 = vmatpush1.msra.mxu0 0.0
  %1439 = vmatprep.subr.mxu0 0.0
  %1440 = vmatpush1.msra.mxu0 0.0
  %1441 = vmatprep.subr.mxu0 0.0
  %1442 = vmatpush1.msra.mxu0 0.0
  %1443 = vmatprep.subr.mxu0 0.0
  %1444 = vmatpush1.msra.mxu0 0.0
  %1445 = vmatprep.subr.mxu0 0.0
  %1446 = vmatpush1.msra.mxu0 0.0
  %1447 = vmatprep.subr.mxu0 0.0
  %1448 = vmatpush1.msra.mxu0 0.0
  %1449 = vmatprep.subr.mxu0 0.0
  %1450 = vmatpush1.msra.mxu0 0.0
  %1451 = vmatprep.subr.mxu0 0.0
  %1452 = vmatpush1.msra.mxu0 0.0
  %1453 = vmatprep.subr.mxu0 0.0
  %1454 = vmatpush1.msra.mxu0 0.0
  %1455 = vmatprep.subr.mxu0 0.0
  %1456 = vmatpush1.msra.mxu0 0.0
  %1457 = vmatprep.subr.mxu0 0.0
  %1458 = vmatpush1.msra.mxu0 0.0
  %1459 = vmatprep.subr.mxu0 0.0
  %1460 = vmatpush1.msra.mxu0 0.0
  %1461 = vmatprep.subr.mxu0 0.0
  %1462 = vmatpush1.msra.mxu0 0.0
  %1463 = vmatprep.subr.mxu0 0.0
  %1464 = vmatpush1.msra.mxu0 0.0
  %1465 = vmatprep.subr.mxu0 0.0
  %1466 = vmatpush1.msra.mxu0 0.0
  %1467 = vmatprep.subr.mxu0 0.0
  %1468 = vmatpush1.msra.mxu0 0.0
  %1469 = vmatprep.mubr.f32.mxu0 0.0
  %1470 = vmatmul.mubr.f32.gmra.mrb[0].mxu0 %v1388
  %v1471 = vpop.f32.mrb[0].mxu0
  %v1472 = vadd.f32 0.0, %v1471
  %v1473 = vpop.f32.mrb[0].mxu0
  %1474 = vmatprep.mubr.f32.mxu0 0.0
  %1475 = vmatmul.mubr.f32.gmra.mrb[0].mxu0 %v1391
  %v1476 = vpop.f32.mrb[0].mxu0
  %v1477 = vadd.f32 0.0, %v1476
  %v1478 = vpop.f32.mrb[0].mxu0
  %1479 = vmatprep.mubr.f32.mxu0 0.0
  %1480 = vmatmul.mubr.f32.gmra.mrb[0].mxu0 %v1394
  %v1481 = vpop.f32.mrb[0].mxu0
  %v1482 = vadd.f32 0.0, %v1481
  %v1483 = vpop.f32.mrb[0].mxu0
  %1484 = vmatprep.mubr.f32.mxu0 0.0
  %1485 = vmatmul.mubr.f32.gmra.mrb[0].mxu0 %v1397
  %v1486 = vpop.f32.mrb[0].mxu0
  %v1487 = vadd.f32 0.0, %v1486
  %v1488 = vpop.f32.mrb[0].mxu0
  %1489 = vmatprep.mubr.f32.mxu0 0.0
  %1490 = vmatmul.mubr.f32.gmra.mrb[0].mxu0 %v1400
  %v1491 = vpop.f32.mrb[0].mxu0
  %v1492 = vadd.f32 0.0, %v1491
  %v1493 = vpop.f32.mrb[0].mxu0
  %1494 = vmatprep.mubr.f32.mxu0 0.0
  %1495 = vmatmul.mubr.f32.gmra.mrb[0].mxu0 %v1403
  %v1496 = vpop.f32.mrb[0].mxu0
  %v1497 = vadd.f32 0.0, %v1496
  %v1498 = vpop.f32.mrb[0].mxu0
  %1499 = vdwg.mxu0
  %s1500 = scalar_lea.vmem %s10, 16
  %v1501 = vld [vmem:[%s1500] sm:$0xff]
  %v1502 = vld [vmem:[%s1500 + $0x8] sm:$0xff]
  %v1504 = vsel %vm528, %v1472, 0
  %v1507 = vsel %vm528, %v1477, 0
  %v1510 = vsel %vm528, %v1482, 0
  %v1513 = vsel %vm528, %v1487, 0
  %v1516 = vsel %vm528, %v1492, 0
  %v1519 = vsel %vm528, %v1497, 0
  %1521 = vmatprep.subr.mxu0 0.0
  %1522 = vmatpush1.msra.mxu0 %v1501
  %1523 = vmatprep.subr.mxu0 0.0
  %1524 = vmatpush1.msra.mxu0 %v1502
  %1525 = vmatprep.subr.mxu0 0.0
  %1526 = vmatpush1.msra.mxu0 0.0
  %1527 = vmatprep.subr.mxu0 0.0
  %1528 = vmatpush1.msra.mxu0 0.0
  %1529 = vmatprep.subr.mxu0 0.0
  %1530 = vmatpush1.msra.mxu0 0.0
  %1531 = vmatprep.subr.mxu0 0.0
  %1532 = vmatpush1.msra.mxu0 0.0
  %1533 = vmatprep.subr.mxu0 0.0
  %1534 = vmatpush1.msra.mxu0 0.0
  %1535 = vmatprep.subr.mxu0 0.0
  %1536 = vmatpush1.msra.mxu0 0.0
  %1537 = vmatprep.subr.mxu0 0.0
  %1538 = vmatpush1.msra.mxu0 0.0
  %1539 = vmatprep.subr.mxu0 0.0
  %1540 = vmatpush1.msra.mxu0 0.0
  %1541 = vmatprep.subr.mxu0 0.0
  %1542 = vmatpush1.msra.mxu0 0.0
  %1543 = vmatprep.subr.mxu0 0.0
  %1544 = vmatpush1.msra.mxu0 0.0
  %1545 = vmatprep.subr.mxu0 0.0
  %1546 = vmatpush1.msra.mxu0 0.0
  %1547 = vmatprep.subr.mxu0 0.0
  %1548 = vmatpush1.msra.mxu0 0.0
  %1549 = vmatprep.subr.mxu0 0.0
  %1550 = vmatpush1.msra.mxu0 0.0
  %1551 = vmatprep.subr.mxu0 0.0
  %1552 = vmatpush1.msra.mxu0 0.0
  %1553 = vmatprep.subr.mxu0 0.0
  %1554 = vmatpush1.msra.mxu0 0.0
  %1555 = vmatprep.subr.mxu0 0.0
  %1556 = vmatpush1.msra.mxu0 0.0
  %1557 = vmatprep.subr.mxu0 0.0
  %1558 = vmatpush1.msra.mxu0 0.0
  %1559 = vmatprep.subr.mxu0 0.0
  %1560 = vmatpush1.msra.mxu0 0.0
  %1561 = vmatprep.subr.mxu0 0.0
  %1562 = vmatpush1.msra.mxu0 0.0
  %1563 = vmatprep.subr.mxu0 0.0
  %1564 = vmatpush1.msra.mxu0 0.0
  %1565 = vmatprep.subr.mxu0 0.0
  %1566 = vmatpush1.msra.mxu0 0.0
  %1567 = vmatprep.subr.mxu0 0.0
  %1568 = vmatpush1.msra.mxu0 0.0
  %1569 = vmatprep.subr.mxu0 0.0
  %1570 = vmatpush1.msra.mxu0 0.0
  %1571 = vmatprep.subr.mxu0 0.0
  %1572 = vmatpush1.msra.mxu0 0.0
  %1573 = vmatprep.subr.mxu0 0.0
  %1574 = vmatpush1.msra.mxu0 0.0
  %1575 = vmatprep.subr.mxu0 0.0
  %1576 = vmatpush1.msra.mxu0 0.0
  %1577 = vmatprep.subr.mxu0 0.0
  %1578 = vmatpush1.msra.mxu0 0.0
  %1579 = vmatprep.subr.mxu0 0.0
  %1580 = vmatpush1.msra.mxu0 0.0
  %1581 = vmatprep.subr.mxu0 0.0
  %1582 = vmatpush1.msra.mxu0 0.0
  %1583 = vmatprep.subr.mxu0 0.0
  %1584 = vmatpush1.msra.mxu0 0.0
  %1585 = vmatprep.mubr.f32.mxu0 0.0
  %1586 = vmatmul.mubr.f32.gmra.mrb[0].mxu0 %v1504
  %v1587 = vpop.f32.mrb[0].mxu0
  %v1588 = vadd.f32 0.0, %v1587
  %v1589 = vpop.f32.mrb[0].mxu0
  %1590 = vmatprep.mubr.f32.mxu0 0.0
  %1591 = vmatmul.mubr.f32.gmra.mrb[0].mxu0 %v1507
  %v1592 = vpop.f32.mrb[0].mxu0
  %v1593 = vadd.f32 0.0, %v1592
  %v1594 = vpop.f32.mrb[0].mxu0
  %1595 = vmatprep.mubr.f32.mxu0 0.0
  %1596 = vmatmul.mubr.f32.gmra.mrb[0].mxu0 %v1510
  %v1597 = vpop.f32.mrb[0].mxu0
  %v1598 = vadd.f32 0.0, %v1597
  %v1599 = vpop.f32.mrb[0].mxu0
  %1600 = vmatprep.mubr.f32.mxu0 0.0
  %1601 = vmatmul.mubr.f32.gmra.mrb[0].mxu0 %v1513
  %v1602 = vpop.f32.mrb[0].mxu0
  %v1603 = vadd.f32 0.0, %v1602
  %v1604 = vpop.f32.mrb[0].mxu0
  %1605 = vmatprep.mubr.f32.mxu0 0.0
  %1606 = vmatmul.mubr.f32.gmra.mrb[0].mxu0 %v1516
  %v1607 = vpop.f32.mrb[0].mxu0
  %v1608 = vadd.f32 0.0, %v1607
  %v1609 = vpop.f32.mrb[0].mxu0
  %1610 = vmatprep.mubr.f32.mxu0 0.0
  %1611 = vmatmul.mubr.f32.gmra.mrb[0].mxu0 %v1519
  %v1612 = vpop.f32.mrb[0].mxu0
  %v1613 = vadd.f32 0.0, %v1612
  %v1614 = vpop.f32.mrb[0].mxu0
  %1615 = vdwg.mxu0
  %v1617 = vsel %vm528, %v824, 0
  %v1620 = vsel %vm528, %v829, 0
  %v1623 = vsel %vm528, %v834, 0
  %v1626 = vsel %vm528, %v839, 0
  %v1629 = vsel %vm528, %v844, 0
  %v1632 = vsel %vm528, %v849, 0
  %1634 = vmatprep.subr.mxu0 0.0
  %1635 = vmatpush1.msra.mxu0 %v852
  %1636 = vmatprep.subr.mxu0 0.0
  %1637 = vmatpush1.msra.mxu0 %v853
  %1638 = vmatprep.subr.mxu0 0.0
  %1639 = vmatpush1.msra.mxu0 0.0
  %1640 = vmatprep.subr.mxu0 0.0
  %1641 = vmatpush1.msra.mxu0 0.0
  %1642 = vmatprep.subr.mxu0 0.0
  %1643 = vmatpush1.msra.mxu0 0.0
  %1644 = vmatprep.subr.mxu0 0.0
  %1645 = vmatpush1.msra.mxu0 0.0
  %1646 = vmatprep.subr.mxu0 0.0
  %1647 = vmatpush1.msra.mxu0 0.0
  %1648 = vmatprep.subr.mxu0 0.0
  %1649 = vmatpush1.msra.mxu0 0.0
  %1650 = vmatprep.subr.mxu0 0.0
  %1651 = vmatpush1.msra.mxu0 0.0
  %1652 = vmatprep.subr.mxu0 0.0
  %1653 = vmatpush1.msra.mxu0 0.0
  %1654 = vmatprep.subr.mxu0 0.0
  %1655 = vmatpush1.msra.mxu0 0.0
  %1656 = vmatprep.subr.mxu0 0.0
  %1657 = vmatpush1.msra.mxu0 0.0
  %1658 = vmatprep.subr.mxu0 0.0
  %1659 = vmatpush1.msra.mxu0 0.0
  %1660 = vmatprep.subr.mxu0 0.0
  %1661 = vmatpush1.msra.mxu0 0.0
  %1662 = vmatprep.subr.mxu0 0.0
  %1663 = vmatpush1.msra.mxu0 0.0
  %1664 = vmatprep.subr.mxu0 0.0
  %1665 = vmatpush1.msra.mxu0 0.0
  %1666 = vmatprep.subr.mxu0 0.0
  %1667 = vmatpush1.msra.mxu0 0.0
  %1668 = vmatprep.subr.mxu0 0.0
  %1669 = vmatpush1.msra.mxu0 0.0
  %1670 = vmatprep.subr.mxu0 0.0
  %1671 = vmatpush1.msra.mxu0 0.0
  %1672 = vmatprep.subr.mxu0 0.0
  %1673 = vmatpush1.msra.mxu0 0.0
  %1674 = vmatprep.subr.mxu0 0.0
  %1675 = vmatpush1.msra.mxu0 0.0
  %1676 = vmatprep.subr.mxu0 0.0
  %1677 = vmatpush1.msra.mxu0 0.0
  %1678 = vmatprep.subr.mxu0 0.0
  %1679 = vmatpush1.msra.mxu0 0.0
  %1680 = vmatprep.subr.mxu0 0.0
  %1681 = vmatpush1.msra.mxu0 0.0
  %1682 = vmatprep.subr.mxu0 0.0
  %1683 = vmatpush1.msra.mxu0 0.0
  %1684 = vmatprep.subr.mxu0 0.0
  %1685 = vmatpush1.msra.mxu0 0.0
  %1686 = vmatprep.subr.mxu0 0.0
  %1687 = vmatpush1.msra.mxu0 0.0
  %1688 = vmatprep.subr.mxu0 0.0
  %1689 = vmatpush1.msra.mxu0 0.0
  %1690 = vmatprep.subr.mxu0 0.0
  %1691 = vmatpush1.msra.mxu0 0.0
  %1692 = vmatprep.subr.mxu0 0.0
  %1693 = vmatpush1.msra.mxu0 0.0
  %1694 = vmatprep.subr.mxu0 0.0
  %1695 = vmatpush1.msra.mxu0 0.0
  %1696 = vmatprep.subr.mxu0 0.0
  %1697 = vmatpush1.msra.mxu0 0.0
  %1698 = vmatprep.mubr.f32.mxu0 0.0
  %1699 = vmatmul.mubr.f32.gmra.mrb[0].mxu0 %v1617
  %v1700 = vpop.f32.mrb[0].mxu0
  %v1701 = vadd.f32 %v1588, %v1700
  %v1702 = vpop.f32.mrb[0].mxu0
  %1703 = vmatprep.mubr.f32.mxu0 0.0
  %1704 = vmatmul.mubr.f32.gmra.mrb[0].mxu0 %v1620
  %v1705 = vpop.f32.mrb[0].mxu0
  %v1706 = vadd.f32 %v1593, %v1705
  %v1707 = vpop.f32.mrb[0].mxu0
  %1708 = vmatprep.mubr.f32.mxu0 0.0
  %1709 = vmatmul.mubr.f32.gmra.mrb[0].mxu0 %v1623
  %v1710 = vpop.f32.mrb[0].mxu0
  %v1711 = vadd.f32 %v1598, %v1710
  %v1712 = vpop.f32.mrb[0].mxu0
  %1713 = vmatprep.mubr.f32.mxu0 0.0
  %1714 = vmatmul.mubr.f32.gmra.mrb[0].mxu0 %v1626
  %v1715 = vpop.f32.mrb[0].mxu0
  %v1716 = vadd.f32 %v1603, %v1715
  %v1717 = vpop.f32.mrb[0].mxu0
  %1718 = vmatprep.mubr.f32.mxu0 0.0
  %1719 = vmatmul.mubr.f32.gmra.mrb[0].mxu0 %v1629
  %v1720 = vpop.f32.mrb[0].mxu0
  %v1721 = vadd.f32 %v1608, %v1720
  %v1722 = vpop.f32.mrb[0].mxu0
  %1723 = vmatprep.mubr.f32.mxu0 0.0
  %1724 = vmatmul.mubr.f32.gmra.mrb[0].mxu0 %v1632
  %v1725 = vpop.f32.mrb[0].mxu0
  %v1726 = vadd.f32 %v1613, %v1725
  %v1727 = vpop.f32.mrb[0].mxu0
  %1728 = vdwg.mxu0
  %v1729 = vadd.f32 %v180, %v1701
  %v1730 = vadd.f32 %v181, %v1706
  %v1731 = vadd.f32 %v182, %v1711
  %v1732 = vadd.f32 %v183, %v1716
  %v1733 = vadd.f32 %v184, %v1721
  %v1734 = vadd.f32 %v185, %v1726
  %v1735 = vld [vmem:[%s11] sm:$0x1]
  %v1737 = vlaneseq
  %v1738 = vshrl.u32 %v1737, 7
  %v1739 = vsub.s32 0, %v1738
  %v1740 = vrot.slane %v1735, %v1739
  %v1742 = vadd.f32 %v1729, %v1740
  %v1743 = vadd.f32 %v1730, %v1740
  %v1744 = vadd.f32 %v1731, %v1740
  %v1745 = vadd.f32 %v1732, %v1740
  %v1746 = vadd.f32 %v1733, %v1740
  %v1747 = vadd.f32 %v1734, %v1740
  %v1748 = vld [vmem:[%s12] sm:$0x1]
  %v1749 = vld [vmem:[%s13] sm:$0x1]
  %v1750 = vsel %vm82, %v1742, 0.0
  %1751 = vadd.xlane.f32.xlu0 %v1750
  %v1752 = vpop.xlane.xlu0 %1751
  %v1753 = vsel %vm82, %v1743, 0.0
  %1754 = vadd.xlane.f32.xlu0 %v1753
  %v1755 = vpop.xlane.xlu0 %1754
  %v1756 = vsel %vm82, %v1744, 0.0
  %1757 = vadd.xlane.f32.xlu0 %v1756
  %v1758 = vpop.xlane.xlu0 %1757
  %v1759 = vsel %vm82, %v1745, 0.0
  %1760 = vadd.xlane.f32.xlu0 %v1759
  %v1761 = vpop.xlane.xlu0 %1760
  %v1762 = vsel %vm82, %v1746, 0.0
  %1763 = vadd.xlane.f32.xlu0 %v1762
  %v1764 = vpop.xlane.xlu0 %1763
  %v1765 = vsel %vm82, %v1747, 0.0
  %1766 = vadd.xlane.f32.xlu0 %v1765
  %v1767 = vpop.xlane.xlu0 %1766
  %v1768 = vmul.f32 %v1752, %v101
  %v1769 = vmul.f32 %v1755, %v101
  %v1770 = vmul.f32 %v1758, %v101
  %v1771 = vmul.f32 %v1761, %v101
  %v1772 = vmul.f32 %v1764, %v101
  %v1773 = vmul.f32 %v1767, %v101
  %v1774 = vsub.f32 %v1742, %v1768
  %v1775 = vsub.f32 %v1743, %v1769
  %v1776 = vsub.f32 %v1744, %v1770
  %v1777 = vsub.f32 %v1745, %v1771
  %v1778 = vsub.f32 %v1746, %v1772
  %v1779 = vsub.f32 %v1747, %v1773
  %v1780 = vmul.f32 %v1774, %v1774
  %v1781 = vmul.f32 %v1775, %v1775
  %v1782 = vmul.f32 %v1776, %v1776
  %v1783 = vmul.f32 %v1777, %v1777
  %v1784 = vmul.f32 %v1778, %v1778
  %v1785 = vmul.f32 %v1779, %v1779
  %v1786 = vsel %vm82, %v1780, 0.0
  %1787 = vadd.xlane.f32.xlu0 %v1786
  %v1788 = vpop.xlane.xlu0 %1787
  %v1789 = vsel %vm82, %v1781, 0.0
  %1790 = vadd.xlane.f32.xlu0 %v1789
  %v1791 = vpop.xlane.xlu0 %1790
  %v1792 = vsel %vm82, %v1782, 0.0
  %1793 = vadd.xlane.f32.xlu0 %v1792
  %v1794 = vpop.xlane.xlu0 %1793
  %v1795 = vsel %vm82, %v1783, 0.0
  %1796 = vadd.xlane.f32.xlu0 %v1795
  %v1797 = vpop.xlane.xlu0 %1796
  %v1798 = vsel %vm82, %v1784, 0.0
  %1799 = vadd.xlane.f32.xlu0 %v1798
  %v1800 = vpop.xlane.xlu0 %1799
  %v1801 = vsel %vm82, %v1785, 0.0
  %1802 = vadd.xlane.f32.xlu0 %v1801
  %v1803 = vpop.xlane.xlu0 %1802
  %v1804 = vmul.f32 %v1788, %v101
  %v1805 = vmul.f32 %v1791, %v101
  %v1806 = vmul.f32 %v1794, %v101
  %v1807 = vmul.f32 %v1797, %v101
  %v1808 = vmul.f32 %v1800, %v101
  %v1809 = vmul.f32 %v1803, %v101
  %v1810 = vadd.f32 %v1804, 1e-12
  %v1811 = vadd.f32 %v1805, 1e-12
  %v1812 = vadd.f32 %v1806, 1e-12
  %v1813 = vadd.f32 %v1807, 1e-12
  %v1814 = vadd.f32 %v1808, 1e-12
  %v1815 = vadd.f32 %v1809, 1e-12
  %v1816 = vrsqrt.pop %v1810
  %v1817 = vrsqrt.pop %v1811
  %v1818 = vrsqrt.pop %v1812
  %v1819 = vrsqrt.pop %v1813
  %v1820 = vrsqrt.pop %v1814
  %v1821 = vrsqrt.pop %v1815
  %v1822 = vmul.f32 %v1774, %v1816
  %v1823 = vmul.f32 %v1775, %v1817
  %v1824 = vmul.f32 %v1776, %v1818
  %v1825 = vmul.f32 %v1777, %v1819
  %v1826 = vmul.f32 %v1778, %v1820
  %v1827 = vmul.f32 %v1779, %v1821
  %v1829 = vlaneseq
  %v1830 = vshrl.u32 %v1829, 7
  %v1831 = vsub.s32 0, %v1830
  %v1832 = vrot.slane %v1748, %v1831
  %v1834 = vmul.f32 %v1822, %v1832
  %v1835 = vmul.f32 %v1823, %v1832
  %v1836 = vmul.f32 %v1824, %v1832
  %v1837 = vmul.f32 %v1825, %v1832
  %v1838 = vmul.f32 %v1826, %v1832
  %v1839 = vmul.f32 %v1827, %v1832
  %v1841 = vlaneseq
  %v1842 = vshrl.u32 %v1841, 7
  %v1843 = vsub.s32 0, %v1842
  %v1844 = vrot.slane %v1749, %v1843
  %v1846 = vadd.f32 %v1834, %v1844
  %v1847 = vadd.f32 %v1835, %v1844
  %v1848 = vadd.f32 %v1836, %v1844
  %v1849 = vadd.f32 %v1837, %v1844
  %v1850 = vadd.f32 %v1838, %v1844
  %v1851 = vadd.f32 %v1839, %v1844
  %v1852 = vld [vmem:[%s14] sm:$0xff]
  %v1853 = vld [vmem:[%s14 + $0x8] sm:$0xff]
  %v1854 = vld [vmem:[%s14 + $0x10] sm:$0xff]
  %v1855 = vld [vmem:[%s14 + $0x18] sm:$0xff]
  %v1856 = vld [vmem:[%s15] sm:$0x1]
  %v1858 = vlaneseq
  %v1859 = vshrl.u32 %v1858, 7
  %v1860 = vsub.s32 0, %v1859
  %v1861 = vrot.slane %v1856, %v1860
  %v1864 = vsel %vm82, %v1846, 0
  %v1867 = vsel %vm82, %v1847, 0
  %v1870 = vsel %vm82, %v1848, 0
  %v1873 = vsel %vm82, %v1849, 0
  %v1876 = vsel %vm82, %v1850, 0
  %v1879 = vsel %vm82, %v1851, 0
  %1881 = vmatprep.subr.mxu0 0.0
  %1882 = vmatpush1.msra.mxu0 %v1852
  %1883 = vmatprep.subr.mxu0 0.0
  %1884 = vmatpush1.msra.mxu0 %v1853
  %1885 = vmatprep.subr.mxu0 0.0
  %1886 = vmatpush1.msra.mxu0 %v1854
  %1887 = vmatprep.subr.mxu0 0.0
  %1888 = vmatpush1.msra.mxu0 %v1855
  %1889 = vmatprep.subr.mxu0 0.0
  %1890 = vmatpush1.msra.mxu0 0.0
  %1891 = vmatprep.subr.mxu0 0.0
  %1892 = vmatpush1.msra.mxu0 0.0
  %1893 = vmatprep.subr.mxu0 0.0
  %1894 = vmatpush1.msra.mxu0 0.0
  %1895 = vmatprep.subr.mxu0 0.0
  %1896 = vmatpush1.msra.mxu0 0.0
  %1897 = vmatprep.subr.mxu0 0.0
  %1898 = vmatpush1.msra.mxu0 0.0
  %1899 = vmatprep.subr.mxu0 0.0
  %1900 = vmatpush1.msra.mxu0 0.0
  %1901 = vmatprep.subr.mxu0 0.0
  %1902 = vmatpush1.msra.mxu0 0.0
  %1903 = vmatprep.subr.mxu0 0.0
  %1904 = vmatpush1.msra.mxu0 0.0
  %1905 = vmatprep.subr.mxu0 0.0
  %1906 = vmatpush1.msra.mxu0 0.0
  %1907 = vmatprep.subr.mxu0 0.0
  %1908 = vmatpush1.msra.mxu0 0.0
  %1909 = vmatprep.subr.mxu0 0.0
  %1910 = vmatpush1.msra.mxu0 0.0
  %1911 = vmatprep.subr.mxu0 0.0
  %1912 = vmatpush1.msra.mxu0 0.0
  %1913 = vmatprep.subr.mxu0 0.0
  %1914 = vmatpush1.msra.mxu0 0.0
  %1915 = vmatprep.subr.mxu0 0.0
  %1916 = vmatpush1.msra.mxu0 0.0
  %1917 = vmatprep.subr.mxu0 0.0
  %1918 = vmatpush1.msra.mxu0 0.0
  %1919 = vmatprep.subr.mxu0 0.0
  %1920 = vmatpush1.msra.mxu0 0.0
  %1921 = vmatprep.subr.mxu0 0.0
  %1922 = vmatpush1.msra.mxu0 0.0
  %1923 = vmatprep.subr.mxu0 0.0
  %1924 = vmatpush1.msra.mxu0 0.0
  %1925 = vmatprep.subr.mxu0 0.0
  %1926 = vmatpush1.msra.mxu0 0.0
  %1927 = vmatprep.subr.mxu0 0.0
  %1928 = vmatpush1.msra.mxu0 0.0
  %1929 = vmatprep.subr.mxu0 0.0
  %1930 = vmatpush1.msra.mxu0 0.0
  %1931 = vmatprep.subr.mxu0 0.0
  %1932 = vmatpush1.msra.mxu0 0.0
  %1933 = vmatprep.subr.mxu0 0.0
  %1934 = vmatpush1.msra.mxu0 0.0
  %1935 = vmatprep.subr.mxu0 0.0
  %1936 = vmatpush1.msra.mxu0 0.0
  %1937 = vmatprep.subr.mxu0 0.0
  %1938 = vmatpush1.msra.mxu0 0.0
  %1939 = vmatprep.subr.mxu0 0.0
  %1940 = vmatpush1.msra.mxu0 0.0
  %1941 = vmatprep.subr.mxu0 0.0
  %1942 = vmatpush1.msra.mxu0 0.0
  %1943 = vmatprep.subr.mxu0 0.0
  %1944 = vmatpush1.msra.mxu0 0.0
  %1945 = vmatprep.mubr.f32.mxu0 0.0
  %1946 = vmatmul.mubr.f32.gmra.mrb[0].mxu0 %v1864
  %v1947 = vpop.f32.mrb[0].mxu0
  %v1948 = vadd.f32 %v1861, %v1947
  %v1949 = vpop.f32.mrb[0].mxu0
  %1950 = vmatprep.mubr.f32.mxu0 0.0
  %1951 = vmatmul.mubr.f32.gmra.mrb[0].mxu0 %v1867
  %v1952 = vpop.f32.mrb[0].mxu0
  %v1953 = vadd.f32 %v1861, %v1952
  %v1954 = vpop.f32.mrb[0].mxu0
  %1955 = vmatprep.mubr.f32.mxu0 0.0
  %1956 = vmatmul.mubr.f32.gmra.mrb[0].mxu0 %v1870
  %v1957 = vpop.f32.mrb[0].mxu0
  %v1958 = vadd.f32 %v1861, %v1957
  %v1959 = vpop.f32.mrb[0].mxu0
  %1960 = vmatprep.mubr.f32.mxu0 0.0
  %1961 = vmatmul.mubr.f32.gmra.mrb[0].mxu0 %v1873
  %v1962 = vpop.f32.mrb[0].mxu0
  %v1963 = vadd.f32 %v1861, %v1962
  %v1964 = vpop.f32.mrb[0].mxu0
  %1965 = vmatprep.mubr.f32.mxu0 0.0
  %1966 = vmatmul.mubr.f32.gmra.mrb[0].mxu0 %v1876
  %v1967 = vpop.f32.mrb[0].mxu0
  %v1968 = vadd.f32 %v1861, %v1967
  %v1969 = vpop.f32.mrb[0].mxu0
  %1970 = vmatprep.mubr.f32.mxu0 0.0
  %1971 = vmatmul.mubr.f32.gmra.mrb[0].mxu0 %v1879
  %v1972 = vpop.f32.mrb[0].mxu0
  %v1973 = vadd.f32 %v1861, %v1972
  %v1974 = vpop.f32.mrb[0].mxu0
  %1975 = vdwg.mxu0
  %v1976 = vmul.f32 %v1948, 0.5
  %v1977 = vmul.f32 %v1953, 0.5
  %v1978 = vmul.f32 %v1958, 0.5
  %v1979 = vmul.f32 %v1963, 0.5
  %v1980 = vmul.f32 %v1968, 0.5
  %v1981 = vmul.f32 %v1973, 0.5
  %v1982 = vmul.f32 %v1948, 0.044715
  %v1983 = vmul.f32 %v1953, 0.044715
  %v1984 = vmul.f32 %v1958, 0.044715
  %v1985 = vmul.f32 %v1963, 0.044715
  %v1986 = vmul.f32 %v1968, 0.044715
  %v1987 = vmul.f32 %v1973, 0.044715
  %v1988 = vmul.f32 %v1982, %v1948
  %v1989 = vmul.f32 %v1983, %v1953
  %v1990 = vmul.f32 %v1984, %v1958
  %v1991 = vmul.f32 %v1985, %v1963
  %v1992 = vmul.f32 %v1986, %v1968
  %v1993 = vmul.f32 %v1987, %v1973
  %v1994 = vmul.f32 %v1988, %v1948
  %v1995 = vmul.f32 %v1989, %v1953
  %v1996 = vmul.f32 %v1990, %v1958
  %v1997 = vmul.f32 %v1991, %v1963
  %v1998 = vmul.f32 %v1992, %v1968
  %v1999 = vmul.f32 %v1993, %v1973
  %v2000 = vadd.f32 %v1948, %v1994
  %v2001 = vadd.f32 %v1953, %v1995
  %v2002 = vadd.f32 %v1958, %v1996
  %v2003 = vadd.f32 %v1963, %v1997
  %v2004 = vadd.f32 %v1968, %v1998
  %v2005 = vadd.f32 %v1973, %v1999
  %v2006 = vmul.f32 %v2000, 0.7978846
  %v2007 = vmul.f32 %v2001, 0.7978846
  %v2008 = vmul.f32 %v2002, 0.7978846
  %v2009 = vmul.f32 %v2003, 0.7978846
  %v2010 = vmul.f32 %v2004, 0.7978846
  %v2011 = vmul.f32 %v2005, 0.7978846
  %v2012 = vtanh.pop %v2006
  %v2013 = vtanh.pop %v2007
  %v2014 = vtanh.pop %v2008
  %v2015 = vtanh.pop %v2009
  %v2016 = vtanh.pop %v2010
  %v2017 = vtanh.pop %v2011
  %v2018 = vadd.f32 %v2012, 1.0
  %v2019 = vadd.f32 %v2013, 1.0
  %v2020 = vadd.f32 %v2014, 1.0
  %v2021 = vadd.f32 %v2015, 1.0
  %v2022 = vadd.f32 %v2016, 1.0
  %v2023 = vadd.f32 %v2017, 1.0
  %v2024 = vmul.f32 %v1976, %v2018
  %v2025 = vmul.f32 %v1977, %v2019
  %v2026 = vmul.f32 %v1978, %v2020
  %v2027 = vmul.f32 %v1979, %v2021
  %v2028 = vmul.f32 %v1980, %v2022
  %v2029 = vmul.f32 %v1981, %v2023
  %v2030 = vld [vmem:[%s16] sm:$0xff]
  %v2031 = vld [vmem:[%s16 + $0x8] sm:$0xff]
  %v2032 = vld [vmem:[%s16 + $0x10] sm:$0xff]
  %v2033 = vld [vmem:[%s16 + $0x18] sm:$0xff]
  %v2034 = vld [vmem:[%s16 + $0x20] sm:$0xff]
  %v2035 = vld [vmem:[%s16 + $0x28] sm:$0xff]
  %v2036 = vld [vmem:[%s16 + $0x30] sm:$0xff]
  %v2037 = vld [vmem:[%s16 + $0x38] sm:$0xff]
  %v2038 = vld [vmem:[%s17] sm:$0x1]
  %v2040 = vlaneseq
  %v2041 = vshrl.u32 %v2040, 7
  %v2042 = vsub.s32 0, %v2041
  %v2043 = vrot.slane %v2038, %v2042
  %vm2045 = vcmask 523264
  %v2047 = vsel %vm2045, %v2024, 0
  %v2050 = vsel %vm2045, %v2025, 0
  %v2053 = vsel %vm2045, %v2026, 0
  %v2056 = vsel %vm2045, %v2027, 0
  %v2059 = vsel %vm2045, %v2028, 0
  %v2062 = vsel %vm2045, %v2029, 0
  %2064 = vmatprep.subr.mxu0 0.0
  %2065 = vmatpush1.msra.mxu0 %v2030
  %2066 = vmatprep.subr.mxu0 0.0
  %2067 = vmatpush1.msra.mxu0 %v2031
  %2068 = vmatprep.subr.mxu0 0.0
  %2069 = vmatpush1.msra.mxu0 %v2032
  %2070 = vmatprep.subr.mxu0 0.0
  %2071 = vmatpush1.msra.mxu0 %v2033
  %2072 = vmatprep.subr.mxu0 0.0
  %2073 = vmatpush1.msra.mxu0 %v2034
  %2074 = vmatprep.subr.mxu0 0.0
  %2075 = vmatpush1.msra.mxu0 %v2035
  %2076 = vmatprep.subr.mxu0 0.0
  %2077 = vmatpush1.msra.mxu0 %v2036
  %2078 = vmatprep.subr.mxu0 0.0
  %2079 = vmatpush1.msra.mxu0 %v2037
  %2080 = vmatprep.subr.mxu0 0.0
  %2081 = vmatpush1.msra.mxu0 0.0
  %2082 = vmatprep.subr.mxu0 0.0
  %2083 = vmatpush1.msra.mxu0 0.0
  %2084 = vmatprep.subr.mxu0 0.0
  %2085 = vmatpush1.msra.mxu0 0.0
  %2086 = vmatprep.subr.mxu0 0.0
  %2087 = vmatpush1.msra.mxu0 0.0
  %2088 = vmatprep.subr.mxu0 0.0
  %2089 = vmatpush1.msra.mxu0 0.0
  %2090 = vmatprep.subr.mxu0 0.0
  %2091 = vmatpush1.msra.mxu0 0.0
  %2092 = vmatprep.subr.mxu0 0.0
  %2093 = vmatpush1.msra.mxu0 0.0
  %2094 = vmatprep.subr.mxu0 0.0
  %2095 = vmatpush1.msra.mxu0 0.0
  %2096 = vmatprep.subr.mxu0 0.0
  %2097 = vmatpush1.msra.mxu0 0.0
  %2098 = vmatprep.subr.mxu0 0.0
  %2099 = vmatpush1.msra.mxu0 0.0
  %2100 = vmatprep.subr.mxu0 0.0
  %2101 = vmatpush1.msra.mxu0 0.0
  %2102 = vmatprep.subr.mxu0 0.0
  %2103 = vmatpush1.msra.mxu0 0.0
  %2104 = vmatprep.subr.mxu0 0.0
  %2105 = vmatpush1.msra.mxu0 0.0
  %2106 = vmatprep.subr.mxu0 0.0
  %2107 = vmatpush1.msra.mxu0 0.0
  %2108 = vmatprep.subr.mxu0 0.0
  %2109 = vmatpush1.msra.mxu0 0.0
  %2110 = vmatprep.subr.mxu0 0.0
  %2111 = vmatpush1.msra.mxu0 0.0
  %2112 = vmatprep.subr.mxu0 0.0
  %2113 = vmatpush1.msra.mxu0 0.0
  %2114 = vmatprep.subr.mxu0 0.0
  %2115 = vmatpush1.msra.mxu0 0.0
  %2116 = vmatprep.subr.mxu0 0.0
  %2117 = vmatpush1.msra.mxu0 0.0
  %2118 = vmatprep.subr.mxu0 0.0
  %2119 = vmatpush1.msra.mxu0 0.0
  %2120 = vmatprep.subr.mxu0 0.0
  %2121 = vmatpush1.msra.mxu0 0.0
  %2122 = vmatprep.subr.mxu0 0.0
  %2123 = vmatpush1.msra.mxu0 0.0
  %2124 = vmatprep.subr.mxu0 0.0
  %2125 = vmatpush1.msra.mxu0 0.0
  %2126 = vmatprep.subr.mxu0 0.0
  %2127 = vmatpush1.msra.mxu0 0.0
  %2128 = vmatprep.mubr.f32.mxu0 0.0
  %2129 = vmatmul.mubr.f32.gmra.mrb[0].mxu0 %v2047
  %v2130 = vpop.f32.mrb[0].mxu0
  %v2131 = vadd.f32 %v2043, %v2130
  %v2132 = vpop.f32.mrb[0].mxu0
  %2133 = vmatprep.mubr.f32.mxu0 0.0
  %2134 = vmatmul.mubr.f32.gmra.mrb[0].mxu0 %v2050
  %v2135 = vpop.f32.mrb[0].mxu0
  %v2136 = vadd.f32 %v2043, %v2135
  %v2137 = vpop.f32.mrb[0].mxu0
  %2138 = vmatprep.mubr.f32.mxu0 0.0
  %2139 = vmatmul.mubr.f32.gmra.mrb[0].mxu0 %v2053
  %v2140 = vpop.f32.mrb[0].mxu0
  %v2141 = vadd.f32 %v2043, %v2140
  %v2142 = vpop.f32.mrb[0].mxu0
  %2143 = vmatprep.mubr.f32.mxu0 0.0
  %2144 = vmatmul.mubr.f32.gmra.mrb[0].mxu0 %v2056
  %v2145 = vpop.f32.mrb[0].mxu0
  %v2146 = vadd.f32 %v2043, %v2145
  %v2147 = vpop.f32.mrb[0].mxu0
  %2148 = vmatprep.mubr.f32.mxu0 0.0
  %2149 = vmatmul.mubr.f32.gmra.mrb[0].mxu0 %v2059
  %v2150 = vpop.f32.mrb[0].mxu0
  %v2151 = vadd.f32 %v2043, %v2150
  %v2152 = vpop.f32.mrb[0].mxu0
  %2153 = vmatprep.mubr.f32.mxu0 0.0
  %2154 = vmatmul.mubr.f32.gmra.mrb[0].mxu0 %v2062
  %v2155 = vpop.f32.mrb[0].mxu0
  %v2156 = vadd.f32 %v2043, %v2155
  %v2157 = vpop.f32.mrb[0].mxu0
  %2158 = vdwg.mxu0
  %v2159 = vadd.f32 %v1846, %v2131
  %v2160 = vadd.f32 %v1847, %v2136
  %v2161 = vadd.f32 %v1848, %v2141
  %v2162 = vadd.f32 %v1849, %v2146
  %v2163 = vadd.f32 %v1850, %v2151
  %v2164 = vadd.f32 %v1851, %v2156
  %v2165 = vld [vmem:[%s18] sm:$0x1]
  %v2166 = vld [vmem:[%s19] sm:$0x1]
  %v2167 = vsel %vm82, %v2159, 0.0
  %2168 = vadd.xlane.f32.xlu0 %v2167
  %v2169 = vpop.xlane.xlu0 %2168
  %v2170 = vsel %vm82, %v2160, 0.0
  %2171 = vadd.xlane.f32.xlu0 %v2170
  %v2172 = vpop.xlane.xlu0 %2171
  %v2173 = vsel %vm82, %v2161, 0.0
  %2174 = vadd.xlane.f32.xlu0 %v2173
  %v2175 = vpop.xlane.xlu0 %2174
  %v2176 = vsel %vm82, %v2162, 0.0
  %2177 = vadd.xlane.f32.xlu0 %v2176
  %v2178 = vpop.xlane.xlu0 %2177
  %v2179 = vsel %vm82, %v2163, 0.0
  %2180 = vadd.xlane.f32.xlu0 %v2179
  %v2181 = vpop.xlane.xlu0 %2180
  %v2182 = vsel %vm82, %v2164, 0.0
  %2183 = vadd.xlane.f32.xlu0 %v2182
  %v2184 = vpop.xlane.xlu0 %2183
  %v2185 = vmul.f32 %v2169, %v101
  %v2186 = vmul.f32 %v2172, %v101
  %v2187 = vmul.f32 %v2175, %v101
  %v2188 = vmul.f32 %v2178, %v101
  %v2189 = vmul.f32 %v2181, %v101
  %v2190 = vmul.f32 %v2184, %v101
  %v2191 = vsub.f32 %v2159, %v2185
  %v2192 = vsub.f32 %v2160, %v2186
  %v2193 = vsub.f32 %v2161, %v2187
  %v2194 = vsub.f32 %v2162, %v2188
  %v2195 = vsub.f32 %v2163, %v2189
  %v2196 = vsub.f32 %v2164, %v2190
  %v2197 = vmul.f32 %v2191, %v2191
  %v2198 = vmul.f32 %v2192, %v2192
  %v2199 = vmul.f32 %v2193, %v2193
  %v2200 = vmul.f32 %v2194, %v2194
  %v2201 = vmul.f32 %v2195, %v2195
  %v2202 = vmul.f32 %v2196, %v2196
  %v2203 = vsel %vm82, %v2197, 0.0
  %2204 = vadd.xlane.f32.xlu0 %v2203
  %v2205 = vpop.xlane.xlu0 %2204
  %v2206 = vsel %vm82, %v2198, 0.0
  %2207 = vadd.xlane.f32.xlu0 %v2206
  %v2208 = vpop.xlane.xlu0 %2207
  %v2209 = vsel %vm82, %v2199, 0.0
  %2210 = vadd.xlane.f32.xlu0 %v2209
  %v2211 = vpop.xlane.xlu0 %2210
  %v2212 = vsel %vm82, %v2200, 0.0
  %2213 = vadd.xlane.f32.xlu0 %v2212
  %v2214 = vpop.xlane.xlu0 %2213
  %v2215 = vsel %vm82, %v2201, 0.0
  %2216 = vadd.xlane.f32.xlu0 %v2215
  %v2217 = vpop.xlane.xlu0 %2216
  %v2218 = vsel %vm82, %v2202, 0.0
  %2219 = vadd.xlane.f32.xlu0 %v2218
  %v2220 = vpop.xlane.xlu0 %2219
  %v2221 = vmul.f32 %v2205, %v101
  %v2222 = vmul.f32 %v2208, %v101
  %v2223 = vmul.f32 %v2211, %v101
  %v2224 = vmul.f32 %v2214, %v101
  %v2225 = vmul.f32 %v2217, %v101
  %v2226 = vmul.f32 %v2220, %v101
  %v2227 = vadd.f32 %v2221, 1e-12
  %v2228 = vadd.f32 %v2222, 1e-12
  %v2229 = vadd.f32 %v2223, 1e-12
  %v2230 = vadd.f32 %v2224, 1e-12
  %v2231 = vadd.f32 %v2225, 1e-12
  %v2232 = vadd.f32 %v2226, 1e-12
  %v2233 = vrsqrt.pop %v2227
  %v2234 = vrsqrt.pop %v2228
  %v2235 = vrsqrt.pop %v2229
  %v2236 = vrsqrt.pop %v2230
  %v2237 = vrsqrt.pop %v2231
  %v2238 = vrsqrt.pop %v2232
  %v2239 = vmul.f32 %v2191, %v2233
  %v2240 = vmul.f32 %v2192, %v2234
  %v2241 = vmul.f32 %v2193, %v2235
  %v2242 = vmul.f32 %v2194, %v2236
  %v2243 = vmul.f32 %v2195, %v2237
  %v2244 = vmul.f32 %v2196, %v2238
  %v2246 = vlaneseq
  %v2247 = vshrl.u32 %v2246, 7
  %v2248 = vsub.s32 0, %v2247
  %v2249 = vrot.slane %v2165, %v2248
  %v2251 = vmul.f32 %v2239, %v2249
  %v2252 = vmul.f32 %v2240, %v2249
  %v2253 = vmul.f32 %v2241, %v2249
  %v2254 = vmul.f32 %v2242, %v2249
  %v2255 = vmul.f32 %v2243, %v2249
  %v2256 = vmul.f32 %v2244, %v2249
  %v2258 = vlaneseq
  %v2259 = vshrl.u32 %v2258, 7
  %v2260 = vsub.s32 0, %v2259
  %v2261 = vrot.slane %v2166, %v2260
  %v2263 = vadd.f32 %v2251, %v2261
  %v2264 = vadd.f32 %v2252, %v2261
  %v2265 = vadd.f32 %v2253, %v2261
  %v2266 = vadd.f32 %v2254, %v2261
  %v2267 = vadd.f32 %v2255, %v2261
  %v2268 = vadd.f32 %v2256, %v2261
  %s2269 = scalar_lea.vmem %s4, 64
  %v2270 = vld [vmem:[%s2269] sm:$0xff]
  %v2271 = vld [vmem:[%s2269 + $0x8] sm:$0xff]
  %v2272 = vld [vmem:[%s2269 + $0x10] sm:$0xff]
  %v2273 = vld [vmem:[%s2269 + $0x18] sm:$0xff]
  %s2274 = scalar_lea.vmem %s7, 2
  %v2275 = vld [vmem:[%s2274] sm:$0x1]
  %v2277 = vlaneseq
  %v2278 = vshrl.u32 %v2277, 7
  %v2279 = vsub.s32 0, %v2278
  %v2280 = vrot.slane %v2275, %v2279
  %v2283 = vsel %vm82, %v2263, 0
  %v2286 = vsel %vm82, %v2264, 0
  %v2289 = vsel %vm82, %v2265, 0
  %v2292 = vsel %vm82, %v2266, 0
  %v2295 = vsel %vm82, %v2267, 0
  %v2298 = vsel %vm82, %v2268, 0
  %2300 = vmatprep.subr.mxu0 0.0
  %2301 = vmatpush1.msra.mxu0 %v2270
  %2302 = vmatprep.subr.mxu0 0.0
  %2303 = vmatpush1.msra.mxu0 %v2271
  %2304 = vmatprep.subr.mxu0 0.0
  %2305 = vmatpush1.msra.mxu0 %v2272
  %2306 = vmatprep.subr.mxu0 0.0
  %2307 = vmatpush1.msra.mxu0 %v2273
  %2308 = vmatprep.subr.mxu0 0.0
  %2309 = vmatpush1.msra.mxu0 0.0
  %2310 = vmatprep.subr.mxu0 0.0
  %2311 = vmatpush1.msra.mxu0 0.0
  %2312 = vmatprep.subr.mxu0 0.0
  %2313 = vmatpush1.msra.mxu0 0.0
  %2314 = vmatprep.subr.mxu0 0.0
  %2315 = vmatpush1.msra.mxu0 0.0
  %2316 = vmatprep.subr.mxu0 0.0
  %2317 = vmatpush1.msra.mxu0 0.0
  %2318 = vmatprep.subr.mxu0 0.0
  %2319 = vmatpush1.msra.mxu0 0.0
  %2320 = vmatprep.subr.mxu0 0.0
  %2321 = vmatpush1.msra.mxu0 0.0
  %2322 = vmatprep.subr.mxu0 0.0
  %2323 = vmatpush1.msra.mxu0 0.0
  %2324 = vmatprep.subr.mxu0 0.0
  %2325 = vmatpush1.msra.mxu0 0.0
  %2326 = vmatprep.subr.mxu0 0.0
  %2327 = vmatpush1.msra.mxu0 0.0
  %2328 = vmatprep.subr.mxu0 0.0
  %2329 = vmatpush1.msra.mxu0 0.0
  %2330 = vmatprep.subr.mxu0 0.0
  %2331 = vmatpush1.msra.mxu0 0.0
  %2332 = vmatprep.subr.mxu0 0.0
  %2333 = vmatpush1.msra.mxu0 0.0
  %2334 = vmatprep.subr.mxu0 0.0
  %2335 = vmatpush1.msra.mxu0 0.0
  %2336 = vmatprep.subr.mxu0 0.0
  %2337 = vmatpush1.msra.mxu0 0.0
  %2338 = vmatprep.subr.mxu0 0.0
  %2339 = vmatpush1.msra.mxu0 0.0
  %2340 = vmatprep.subr.mxu0 0.0
  %2341 = vmatpush1.msra.mxu0 0.0
  %2342 = vmatprep.subr.mxu0 0.0
  %2343 = vmatpush1.msra.mxu0 0.0
  %2344 = vmatprep.subr.mxu0 0.0
  %2345 = vmatpush1.msra.mxu0 0.0
  %2346 = vmatprep.subr.mxu0 0.0
  %2347 = vmatpush1.msra.mxu0 0.0
  %2348 = vmatprep.subr.mxu0 0.0
  %2349 = vmatpush1.msra.mxu0 0.0
  %2350 = vmatprep.subr.mxu0 0.0
  %2351 = vmatpush1.msra.mxu0 0.0
  %2352 = vmatprep.subr.mxu0 0.0
  %2353 = vmatpush1.msra.mxu0 0.0
  %2354 = vmatprep.subr.mxu0 0.0
  %2355 = vmatpush1.msra.mxu0 0.0
  %2356 = vmatprep.subr.mxu0 0.0
  %2357 = vmatpush1.msra.mxu0 0.0
  %2358 = vmatprep.subr.mxu0 0.0
  %2359 = vmatpush1.msra.mxu0 0.0
  %2360 = vmatprep.subr.mxu0 0.0
  %2361 = vmatpush1.msra.mxu0 0.0
  %2362 = vmatprep.subr.mxu0 0.0
  %2363 = vmatpush1.msra.mxu0 0.0
  %2364 = vmatprep.mubr.f32.mxu0 0.0
  %2365 = vmatmul.mubr.f32.gmra.mrb[0].mxu0 %v2283
  %v2366 = vpop.f32.mrb[0].mxu0
  %v2367 = vadd.f32 %v2280, %v2366
  %v2368 = vpop.f32.mrb[0].mxu0
  %2369 = vmatprep.mubr.f32.mxu0 0.0
  %2370 = vmatmul.mubr.f32.gmra.mrb[0].mxu0 %v2286
  %v2371 = vpop.f32.mrb[0].mxu0
  %v2372 = vadd.f32 %v2280, %v2371
  %v2373 = vpop.f32.mrb[0].mxu0
  %2374 = vmatprep.mubr.f32.mxu0 0.0
  %2375 = vmatmul.mubr.f32.gmra.mrb[0].mxu0 %v2289
  %v2376 = vpop.f32.mrb[0].mxu0
  %v2377 = vadd.f32 %v2280, %v2376
  %v2378 = vpop.f32.mrb[0].mxu0
  %2379 = vmatprep.mubr.f32.mxu0 0.0
  %2380 = vmatmul.mubr.f32.gmra.mrb[0].mxu0 %v2292
  %v2381 = vpop.f32.mrb[0].mxu0
  %v2382 = vadd.f32 %v2280, %v2381
  %v2383 = vpop.f32.mrb[0].mxu0
  %2384 = vmatprep.mubr.f32.mxu0 0.0
  %2385 = vmatmul.mubr.f32.gmra.mrb[0].mxu0 %v2295
  %v2386 = vpop.f32.mrb[0].mxu0
  %v2387 = vadd.f32 %v2280, %v2386
  %v2388 = vpop.f32.mrb[0].mxu0
  %2389 = vmatprep.mubr.f32.mxu0 0.0
  %2390 = vmatmul.mubr.f32.gmra.mrb[0].mxu0 %v2298
  %v2391 = vpop.f32.mrb[0].mxu0
  %v2392 = vadd.f32 %v2280, %v2391
  %v2393 = vpop.f32.mrb[0].mxu0
  %2394 = vdwg.mxu0
  %s2395 = scalar_lea.vmem %s5, 64
  %v2396 = vld [vmem:[%s2395] sm:$0xff]
  %v2397 = vld [vmem:[%s2395 + $0x8] sm:$0xff]
  %v2398 = vld [vmem:[%s2395 + $0x10] sm:$0xff]
  %v2399 = vld [vmem:[%s2395 + $0x18] sm:$0xff]
  %s2400 = scalar_lea.vmem %s8, 2
  %v2401 = vld [vmem:[%s2400] sm:$0x1]
  %v2403 = vlaneseq
  %v2404 = vshrl.u32 %v2403, 7
  %v2405 = vsub.s32 0, %v2404
  %v2406 = vrot.slane %v2401, %v2405
  %2408 = vmatprep.subr.mxu0 0.0
  %2409 = vmatpush1.msra.mxu0 %v2396
  %2410 = vmatprep.subr.mxu0 0.0
  %2411 = vmatpush1.msra.mxu0 %v2397
  %2412 = vmatprep.subr.mxu0 0.0
  %2413 = vmatpush1.msra.mxu0 %v2398
  %2414 = vmatprep.subr.mxu0 0.0
  %2415 = vmatpush1.msra.mxu0 %v2399
  %2416 = vmatprep.subr.mxu0 0.0
  %2417 = vmatpush1.msra.mxu0 0.0
  %2418 = vmatprep.subr.mxu0 0.0
  %2419 = vmatpush1.msra.mxu0 0.0
  %2420 = vmatprep.subr.mxu0 0.0
  %2421 = vmatpush1.msra.mxu0 0.0
  %2422 = vmatprep.subr.mxu0 0.0
  %2423 = vmatpush1.msra.mxu0 0.0
  %2424 = vmatprep.subr.mxu0 0.0
  %2425 = vmatpush1.msra.mxu0 0.0
  %2426 = vmatprep.subr.mxu0 0.0
  %2427 = vmatpush1.msra.mxu0 0.0
  %2428 = vmatprep.subr.mxu0 0.0
  %2429 = vmatpush1.msra.mxu0 0.0
  %2430 = vmatprep.subr.mxu0 0.0
  %2431 = vmatpush1.msra.mxu0 0.0
  %2432 = vmatprep.subr.mxu0 0.0
  %2433 = vmatpush1.msra.mxu0 0.0
  %2434 = vmatprep.subr.mxu0 0.0
  %2435 = vmatpush1.msra.mxu0 0.0
  %2436 = vmatprep.subr.mxu0 0.0
  %2437 = vmatpush1.msra.mxu0 0.0
  %2438 = vmatprep.subr.mxu0 0.0
  %2439 = vmatpush1.msra.mxu0 0.0
  %2440 = vmatprep.subr.mxu0 0.0
  %2441 = vmatpush1.msra.mxu0 0.0
  %2442 = vmatprep.subr.mxu0 0.0
  %2443 = vmatpush1.msra.mxu0 0.0
  %2444 = vmatprep.subr.mxu0 0.0
  %2445 = vmatpush1.msra.mxu0 0.0
  %2446 = vmatprep.subr.mxu0 0.0
  %2447 = vmatpush1.msra.mxu0 0.0
  %2448 = vmatprep.subr.mxu0 0.0
  %2449 = vmatpush1.msra.mxu0 0.0
  %2450 = vmatprep.subr.mxu0 0.0
  %2451 = vmatpush1.msra.mxu0 0.0
  %2452 = vmatprep.subr.mxu0 0.0
  %2453 = vmatpush1.msra.mxu0 0.0
  %2454 = vmatprep.subr.mxu0 0.0
  %2455 = vmatpush1.msra.mxu0 0.0
  %2456 = vmatprep.subr.mxu0 0.0
  %2457 = vmatpush1.msra.mxu0 0.0
  %2458 = vmatprep.subr.mxu0 0.0
  %2459 = vmatpush1.msra.mxu0 0.0
  %2460 = vmatprep.subr.mxu0 0.0
  %2461 = vmatpush1.msra.mxu0 0.0
  %2462 = vmatprep.subr.mxu0 0.0
  %2463 = vmatpush1.msra.mxu0 0.0
  %2464 = vmatprep.subr.mxu0 0.0
  %2465 = vmatpush1.msra.mxu0 0.0
  %2466 = vmatprep.subr.mxu0 0.0
  %2467 = vmatpush1.msra.mxu0 0.0
  %2468 = vmatprep.subr.mxu0 0.0
  %2469 = vmatpush1.msra.mxu0 0.0
  %2470 = vmatprep.subr.mxu0 0.0
  %2471 = vmatpush1.msra.mxu0 0.0
  %2472 = vmatprep.mubr.f32.mxu0 0.0
  %2473 = vmatmul.mubr.f32.gmra.mrb[0].mxu0 %v2283
  %v2474 = vpop.f32.mrb[0].mxu0
  %v2475 = vadd.f32 %v2406, %v2474
  %v2476 = vpop.f32.mrb[0].mxu0
  %2477 = vmatprep.mubr.f32.mxu0 0.0
  %2478 = vmatmul.mubr.f32.gmra.mrb[0].mxu0 %v2286
  %v2479 = vpop.f32.mrb[0].mxu0
  %v2480 = vadd.f32 %v2406, %v2479
  %v2481 = vpop.f32.mrb[0].mxu0
  %2482 = vmatprep.mubr.f32.mxu0 0.0
  %2483 = vmatmul.mubr.f32.gmra.mrb[0].mxu0 %v2289
  %v2484 = vpop.f32.mrb[0].mxu0
  %v2485 = vadd.f32 %v2406, %v2484
  %v2486 = vpop.f32.mrb[0].mxu0
  %2487 = vmatprep.mubr.f32.mxu0 0.0
  %2488 = vmatmul.mubr.f32.gmra.mrb[0].mxu0 %v2292
  %v2489 = vpop.f32.mrb[0].mxu0
  %v2490 = vadd.f32 %v2406, %v2489
  %v2491 = vpop.f32.mrb[0].mxu0
  %2492 = vmatprep.mubr.f32.mxu0 0.0
  %2493 = vmatmul.mubr.f32.gmra.mrb[0].mxu0 %v2295
  %v2494 = vpop.f32.mrb[0].mxu0
  %v2495 = vadd.f32 %v2406, %v2494
  %v2496 = vpop.f32.mrb[0].mxu0
  %2497 = vmatprep.mubr.f32.mxu0 0.0
  %2498 = vmatmul.mubr.f32.gmra.mrb[0].mxu0 %v2298
  %v2499 = vpop.f32.mrb[0].mxu0
  %v2500 = vadd.f32 %v2406, %v2499
  %v2501 = vpop.f32.mrb[0].mxu0
  %2502 = vdwg.mxu0
  %s2503 = scalar_lea.vmem %s6, 64
  %v2504 = vld [vmem:[%s2503] sm:$0xff]
  %v2505 = vld [vmem:[%s2503 + $0x8] sm:$0xff]
  %v2506 = vld [vmem:[%s2503 + $0x10] sm:$0xff]
  %v2507 = vld [vmem:[%s2503 + $0x18] sm:$0xff]
  %s2508 = scalar_lea.vmem %s9, 2
  %v2509 = vld [vmem:[%s2508] sm:$0x1]
  %v2511 = vlaneseq
  %v2512 = vshrl.u32 %v2511, 7
  %v2513 = vsub.s32 0, %v2512
  %v2514 = vrot.slane %v2509, %v2513
  %2516 = vmatprep.subr.mxu0 0.0
  %2517 = vmatpush1.msra.mxu0 %v2504
  %2518 = vmatprep.subr.mxu0 0.0
  %2519 = vmatpush1.msra.mxu0 %v2505
  %2520 = vmatprep.subr.mxu0 0.0
  %2521 = vmatpush1.msra.mxu0 %v2506
  %2522 = vmatprep.subr.mxu0 0.0
  %2523 = vmatpush1.msra.mxu0 %v2507
  %2524 = vmatprep.subr.mxu0 0.0
  %2525 = vmatpush1.msra.mxu0 0.0
  %2526 = vmatprep.subr.mxu0 0.0
  %2527 = vmatpush1.msra.mxu0 0.0
  %2528 = vmatprep.subr.mxu0 0.0
  %2529 = vmatpush1.msra.mxu0 0.0
  %2530 = vmatprep.subr.mxu0 0.0
  %2531 = vmatpush1.msra.mxu0 0.0
  %2532 = vmatprep.subr.mxu0 0.0
  %2533 = vmatpush1.msra.mxu0 0.0
  %2534 = vmatprep.subr.mxu0 0.0
  %2535 = vmatpush1.msra.mxu0 0.0
  %2536 = vmatprep.subr.mxu0 0.0
  %2537 = vmatpush1.msra.mxu0 0.0
  %2538 = vmatprep.subr.mxu0 0.0
  %2539 = vmatpush1.msra.mxu0 0.0
  %2540 = vmatprep.subr.mxu0 0.0
  %2541 = vmatpush1.msra.mxu0 0.0
  %2542 = vmatprep.subr.mxu0 0.0
  %2543 = vmatpush1.msra.mxu0 0.0
  %2544 = vmatprep.subr.mxu0 0.0
  %2545 = vmatpush1.msra.mxu0 0.0
  %2546 = vmatprep.subr.mxu0 0.0
  %2547 = vmatpush1.msra.mxu0 0.0
  %2548 = vmatprep.subr.mxu0 0.0
  %2549 = vmatpush1.msra.mxu0 0.0
  %2550 = vmatprep.subr.mxu0 0.0
  %2551 = vmatpush1.msra.mxu0 0.0
  %2552 = vmatprep.subr.mxu0 0.0
  %2553 = vmatpush1.msra.mxu0 0.0
  %2554 = vmatprep.subr.mxu0 0.0
  %2555 = vmatpush1.msra.mxu0 0.0
  %2556 = vmatprep.subr.mxu0 0.0
  %2557 = vmatpush1.msra.mxu0 0.0
  %2558 = vmatprep.subr.mxu0 0.0
  %2559 = vmatpush1.msra.mxu0 0.0
  %2560 = vmatprep.subr.mxu0 0.0
  %2561 = vmatpush1.msra.mxu0 0.0
  %2562 = vmatprep.subr.mxu0 0.0
  %2563 = vmatpush1.msra.mxu0 0.0
  %2564 = vmatprep.subr.mxu0 0.0
  %2565 = vmatpush1.msra.mxu0 0.0
  %2566 = vmatprep.subr.mxu0 0.0
  %2567 = vmatpush1.msra.mxu0 0.0
  %2568 = vmatprep.subr.mxu0 0.0
  %2569 = vmatpush1.msra.mxu0 0.0
  %2570 = vmatprep.subr.mxu0 0.0
  %2571 = vmatpush1.msra.mxu0 0.0
  %2572 = vmatprep.subr.mxu0 0.0
  %2573 = vmatpush1.msra.mxu0 0.0
  %2574 = vmatprep.subr.mxu0 0.0
  %2575 = vmatpush1.msra.mxu0 0.0
  %2576 = vmatprep.subr.mxu0 0.0
  %2577 = vmatpush1.msra.mxu0 0.0
  %2578 = vmatprep.subr.mxu0 0.0
  %2579 = vmatpush1.msra.mxu0 0.0
  %2580 = vmatprep.mubr.f32.mxu0 0.0
  %2581 = vmatmul.mubr.f32.gmra.mrb[0].mxu0 %v2283
  %v2582 = vpop.f32.mrb[0].mxu0
  %v2583 = vadd.f32 %v2514, %v2582
  %v2584 = vpop.f32.mrb[0].mxu0
  %2585 = vmatprep.mubr.f32.mxu0 0.0
  %2586 = vmatmul.mubr.f32.gmra.mrb[0].mxu0 %v2286
  %v2587 = vpop.f32.mrb[0].mxu0
  %v2588 = vadd.f32 %v2514, %v2587
  %v2589 = vpop.f32.mrb[0].mxu0
  %2590 = vmatprep.mubr.f32.mxu0 0.0
  %2591 = vmatmul.mubr.f32.gmra.mrb[0].mxu0 %v2289
  %v2592 = vpop.f32.mrb[0].mxu0
  %v2593 = vadd.f32 %v2514, %v2592
  %v2594 = vpop.f32.mrb[0].mxu0
  %2595 = vmatprep.mubr.f32.mxu0 0.0
  %2596 = vmatmul.mubr.f32.gmra.mrb[0].mxu0 %v2292
  %v2597 = vpop.f32.mrb[0].mxu0
  %v2598 = vadd.f32 %v2514, %v2597
  %v2599 = vpop.f32.mrb[0].mxu0
  %2600 = vmatprep.mubr.f32.mxu0 0.0
  %2601 = vmatmul.mubr.f32.gmra.mrb[0].mxu0 %v2295
  %v2602 = vpop.f32.mrb[0].mxu0
  %v2603 = vadd.f32 %v2514, %v2602
  %v2604 = vpop.f32.mrb[0].mxu0
  %2605 = vmatprep.mubr.f32.mxu0 0.0
  %2606 = vmatmul.mubr.f32.gmra.mrb[0].mxu0 %v2298
  %v2607 = vpop.f32.mrb[0].mxu0
  %v2608 = vadd.f32 %v2514, %v2607
  %v2609 = vpop.f32.mrb[0].mxu0
  %2610 = vdwg.mxu0
  %v2612 = vsel %vm528, %v2367, 0
  %v2615 = vsel %vm528, %v2372, 0
  %v2618 = vsel %vm528, %v2377, 0
  %v2621 = vsel %vm528, %v2382, 0
  %v2624 = vsel %vm528, %v2387, 0
  %v2627 = vsel %vm528, %v2392, 0
  %v2630 = vsel %vm528, %v2475, 0
  %v2633 = vsel %vm528, %v2480, 0
  %v2636 = vsel %vm528, %v2485, 0
  %v2639 = vsel %vm528, %v2490, 0
  %v2642 = vsel %vm528, %v2495, 0
  %v2645 = vsel %vm528, %v2500, 0
  %2647 = vmatprep.subr.mxu0 0.0
  %2648 = vmatpush1.xpose.msra.mxu0 %v2630
  %2649 = vmatprep.subr.mxu0 0.0
  %2650 = vmatpush1.xpose.msra.mxu0 %v2633
  %2651 = vmatprep.subr.mxu0 0.0
  %2652 = vmatpush1.xpose.msra.mxu0 %v2636
  %2653 = vmatprep.subr.mxu0 0.0
  %2654 = vmatpush1.xpose.msra.mxu0 %v2639
  %2655 = vmatprep.subr.mxu0 0.0
  %2656 = vmatpush1.xpose.msra.mxu0 %v2642
  %2657 = vmatprep.subr.mxu0 0.0
  %2658 = vmatpush1.xpose.msra.mxu0 %v2645
  %2659 = vmatprep.subr.mxu0 0.0
  %2660 = vmatpush1.xpose.msra.mxu0 0.0
  %2661 = vmatprep.subr.mxu0 0.0
  %2662 = vmatpush1.xpose.msra.mxu0 0.0
  %2663 = vmatprep.subr.mxu0 0.0
  %2664 = vmatpush1.xpose.msra.mxu0 0.0
  %2665 = vmatprep.subr.mxu0 0.0
  %2666 = vmatpush1.xpose.msra.mxu0 0.0
  %2667 = vmatprep.subr.mxu0 0.0
  %2668 = vmatpush1.xpose.msra.mxu0 0.0
  %2669 = vmatprep.subr.mxu0 0.0
  %2670 = vmatpush1.xpose.msra.mxu0 0.0
  %2671 = vmatprep.subr.mxu0 0.0
  %2672 = vmatpush1.xpose.msra.mxu0 0.0
  %2673 = vmatprep.subr.mxu0 0.0
  %2674 = vmatpush1.xpose.msra.mxu0 0.0
  %2675 = vmatprep.subr.mxu0 0.0
  %2676 = vmatpush1.xpose.msra.mxu0 0.0
  %2677 = vmatprep.subr.mxu0 0.0
  %2678 = vmatpush1.xpose.msra.mxu0 0.0
  %2679 = vmatprep.subr.mxu0 0.0
  %2680 = vmatpush1.xpose.msra.mxu0 0.0
  %2681 = vmatprep.subr.mxu0 0.0
  %2682 = vmatpush1.xpose.msra.mxu0 0.0
  %2683 = vmatprep.subr.mxu0 0.0
  %2684 = vmatpush1.xpose.msra.mxu0 0.0
  %2685 = vmatprep.subr.mxu0 0.0
  %2686 = vmatpush1.xpose.msra.mxu0 0.0
  %2687 = vmatprep.subr.mxu0 0.0
  %2688 = vmatpush1.xpose.msra.mxu0 0.0
  %2689 = vmatprep.subr.mxu0 0.0
  %2690 = vmatpush1.xpose.msra.mxu0 0.0
  %2691 = vmatprep.subr.mxu0 0.0
  %2692 = vmatpush1.xpose.msra.mxu0 0.0
  %2693 = vmatprep.subr.mxu0 0.0
  %2694 = vmatpush1.xpose.msra.mxu0 0.0
  %2695 = vmatprep.subr.mxu0 0.0
  %2696 = vmatpush1.xpose.msra.mxu0 0.0
  %2697 = vmatprep.subr.mxu0 0.0
  %2698 = vmatpush1.xpose.msra.mxu0 0.0
  %2699 = vmatprep.subr.mxu0 0.0
  %2700 = vmatpush1.xpose.msra.mxu0 0.0
  %2701 = vmatprep.subr.mxu0 0.0
  %2702 = vmatpush1.xpose.msra.mxu0 0.0
  %2703 = vmatprep.subr.mxu0 0.0
  %2704 = vmatpush1.xpose.msra.mxu0 0.0
  %2705 = vmatprep.subr.mxu0 0.0
  %2706 = vmatpush1.xpose.msra.mxu0 0.0
  %2707 = vmatprep.subr.mxu0 0.0
  %2708 = vmatpush1.xpose.msra.mxu0 0.0
  %2709 = vmatprep.subr.mxu0 0.0
  %2710 = vmatpush1.xpose.msra.mxu0 0.0
  %2711 = vmatprep.mubr.f32.mxu0 0.0
  %2712 = vmatmul.mubr.f32.gmra.mrb[0].mxu0 %v2612
  %v2713 = vpop.f32.mrb[0].mxu0
  %v2714 = vadd.f32 0.0, %v2713
  %v2715 = vpop.f32.mrb[0].mxu0
  %2716 = vmatprep.mubr.f32.mxu0 0.0
  %2717 = vmatmul.mubr.f32.gmra.mrb[0].mxu0 %v2615
  %v2718 = vpop.f32.mrb[0].mxu0
  %v2719 = vadd.f32 0.0, %v2718
  %v2720 = vpop.f32.mrb[0].mxu0
  %2721 = vmatprep.mubr.f32.mxu0 0.0
  %2722 = vmatmul.mubr.f32.gmra.mrb[0].mxu0 %v2618
  %v2723 = vpop.f32.mrb[0].mxu0
  %v2724 = vadd.f32 0.0, %v2723
  %v2725 = vpop.f32.mrb[0].mxu0
  %2726 = vmatprep.mubr.f32.mxu0 0.0
  %2727 = vmatmul.mubr.f32.gmra.mrb[0].mxu0 %v2621
  %v2728 = vpop.f32.mrb[0].mxu0
  %v2729 = vadd.f32 0.0, %v2728
  %v2730 = vpop.f32.mrb[0].mxu0
  %2731 = vmatprep.mubr.f32.mxu0 0.0
  %2732 = vmatmul.mubr.f32.gmra.mrb[0].mxu0 %v2624
  %v2733 = vpop.f32.mrb[0].mxu0
  %v2734 = vadd.f32 0.0, %v2733
  %v2735 = vpop.f32.mrb[0].mxu0
  %2736 = vmatprep.mubr.f32.mxu0 0.0
  %2737 = vmatmul.mubr.f32.gmra.mrb[0].mxu0 %v2627
  %v2738 = vpop.f32.mrb[0].mxu0
  %v2739 = vadd.f32 0.0, %v2738
  %v2740 = vpop.f32.mrb[0].mxu0
  %2741 = vdwg.mxu0
  %v2742 = vmul.f32 %v2714, 0.25
  %v2743 = vmul.f32 %v2719, 0.25
  %v2744 = vmul.f32 %v2724, 0.25
  %v2745 = vmul.f32 %v2729, 0.25
  %v2746 = vmul.f32 %v2734, 0.25
  %v2747 = vmul.f32 %v2739, 0.25
  %v2748 = vadd.f32 %v2742, %v186
  %v2749 = vadd.f32 %v2743, %v187
  %v2750 = vadd.f32 %v2744, %v188
  %v2751 = vadd.f32 %v2745, %v189
  %v2752 = vadd.f32 %v2746, %v190
  %v2753 = vadd.f32 %v2747, %v191
  %v2754 = vsel %vm672, %v2748, -inf
  %2755 = vmax.xlane.f32.xlu0 %v2754
  %v2756 = vpop.xlane.xlu0 %2755
  %v2757 = vsel %vm672, %v2749, -inf
  %2758 = vmax.xlane.f32.xlu0 %v2757
  %v2759 = vpop.xlane.xlu0 %2758
  %v2760 = vsel %vm672, %v2750, -inf
  %2761 = vmax.xlane.f32.xlu0 %v2760
  %v2762 = vpop.xlane.xlu0 %2761
  %v2763 = vsel %vm672, %v2751, -inf
  %2764 = vmax.xlane.f32.xlu0 %v2763
  %v2765 = vpop.xlane.xlu0 %2764
  %v2766 = vsel %vm672, %v2752, -inf
  %2767 = vmax.xlane.f32.xlu0 %v2766
  %v2768 = vpop.xlane.xlu0 %2767
  %v2769 = vsel %vm672, %v2753, -inf
  %2770 = vmax.xlane.f32.xlu0 %v2769
  %v2771 = vpop.xlane.xlu0 %2770
  %v2772 = vsub.f32 %v2748, %v2756
  %v2773 = vsub.f32 %v2749, %v2759
  %v2774 = vsub.f32 %v2750, %v2762
  %v2775 = vsub.f32 %v2751, %v2765
  %v2776 = vsub.f32 %v2752, %v2768
  %v2777 = vsub.f32 %v2753, %v2771
  %v2778 = vmul.f32 %v2772, 1.442695
  %v2779 = vpow.pop %v2778
  %v2780 = vmul.f32 %v2773, 1.442695
  %v2781 = vpow.pop %v2780
  %v2782 = vmul.f32 %v2774, 1.442695
  %v2783 = vpow.pop %v2782
  %v2784 = vmul.f32 %v2775, 1.442695
  %v2785 = vpow.pop %v2784
  %v2786 = vmul.f32 %v2776, 1.442695
  %v2787 = vpow.pop %v2786
  %v2788 = vmul.f32 %v2777, 1.442695
  %v2789 = vpow.pop %v2788
  %v2790 = vsel %vm672, %v2779, 0.0
  %2791 = vadd.xlane.f32.xlu0 %v2790
  %v2792 = vpop.xlane.xlu0 %2791
  %v2793 = vsel %vm672, %v2781, 0.0
  %2794 = vadd.xlane.f32.xlu0 %v2793
  %v2795 = vpop.xlane.xlu0 %2794
  %v2796 = vsel %vm672, %v2783, 0.0
  %2797 = vadd.xlane.f32.xlu0 %v2796
  %v2798 = vpop.xlane.xlu0 %2797
  %v2799 = vsel %vm672, %v2785, 0.0
  %2800 = vadd.xlane.f32.xlu0 %v2799
  %v2801 = vpop.xlane.xlu0 %2800
  %v2802 = vsel %vm672, %v2787, 0.0
  %2803 = vadd.xlane.f32.xlu0 %v2802
  %v2804 = vpop.xlane.xlu0 %2803
  %v2805 = vsel %vm672, %v2789, 0.0
  %2806 = vadd.xlane.f32.xlu0 %v2805
  %v2807 = vpop.xlane.xlu0 %2806
  %v2808 = vrcp.pop %v2792
  %v2809 = vrcp.pop %v2795
  %v2810 = vrcp.pop %v2798
  %v2811 = vrcp.pop %v2801
  %v2812 = vrcp.pop %v2804
  %v2813 = vrcp.pop %v2807
  %v2814 = vmul.f32 %v2779, %v2808
  %v2815 = vmul.f32 %v2781, %v2809
  %v2816 = vmul.f32 %v2783, %v2810
  %v2817 = vmul.f32 %v2785, %v2811
  %v2818 = vmul.f32 %v2787, %v2812
  %v2819 = vmul.f32 %v2789, %v2813
  %v2821 = vsel %vm672, %v2814, 0
  %v2824 = vsel %vm672, %v2815, 0
  %v2827 = vsel %vm672, %v2816, 0
  %v2830 = vsel %vm672, %v2817, 0
  %v2833 = vsel %vm672, %v2818, 0
  %v2836 = vsel %vm672, %v2819, 0
  %2838 = vmatprep.subr.mxu0 0.0
  %2839 = vmatpush1.msra.mxu0 %v2583
  %2840 = vmatprep.subr.mxu0 0.0
  %2841 = vmatpush1.msra.mxu0 %v2588
  %2842 = vmatprep.subr.mxu0 0.0
  %2843 = vmatpush1.msra.mxu0 %v2593
  %2844 = vmatprep.subr.mxu0 0.0
  %2845 = vmatpush1.msra.mxu0 %v2598
  %2846 = vmatprep.subr.mxu0 0.0
  %2847 = vmatpush1.msra.mxu0 %v2603
  %2848 = vmatprep.subr.mxu0 0.0
  %2849 = vmatpush1.msra.mxu0 %v2608
  %2850 = vmatprep.subr.mxu0 0.0
  %2851 = vmatpush1.msra.mxu0 0.0
  %2852 = vmatprep.subr.mxu0 0.0
  %2853 = vmatpush1.msra.mxu0 0.0
  %2854 = vmatprep.subr.mxu0 0.0
  %2855 = vmatpush1.msra.mxu0 0.0
  %2856 = vmatprep.subr.mxu0 0.0
  %2857 = vmatpush1.msra.mxu0 0.0
  %2858 = vmatprep.subr.mxu0 0.0
  %2859 = vmatpush1.msra.mxu0 0.0
  %2860 = vmatprep.subr.mxu0 0.0
  %2861 = vmatpush1.msra.mxu0 0.0
  %2862 = vmatprep.subr.mxu0 0.0
  %2863 = vmatpush1.msra.mxu0 0.0
  %2864 = vmatprep.subr.mxu0 0.0
  %2865 = vmatpush1.msra.mxu0 0.0
  %2866 = vmatprep.subr.mxu0 0.0
  %2867 = vmatpush1.msra.mxu0 0.0
  %2868 = vmatprep.subr.mxu0 0.0
  %2869 = vmatpush1.msra.mxu0 0.0
  %2870 = vmatprep.subr.mxu0 0.0
  %2871 = vmatpush1.msra.mxu0 0.0
  %2872 = vmatprep.subr.mxu0 0.0
  %2873 = vmatpush1.msra.mxu0 0.0
  %2874 = vmatprep.subr.mxu0 0.0
  %2875 = vmatpush1.msra.mxu0 0.0
  %2876 = vmatprep.subr.mxu0 0.0
  %2877 = vmatpush1.msra.mxu0 0.0
  %2878 = vmatprep.subr.mxu0 0.0
  %2879 = vmatpush1.msra.mxu0 0.0
  %2880 = vmatprep.subr.mxu0 0.0
  %2881 = vmatpush1.msra.mxu0 0.0
  %2882 = vmatprep.subr.mxu0 0.0
  %2883 = vmatpush1.msra.mxu0 0.0
  %2884 = vmatprep.subr.mxu0 0.0
  %2885 = vmatpush1.msra.mxu0 0.0
  %2886 = vmatprep.subr.mxu0 0.0
  %2887 = vmatpush1.msra.mxu0 0.0
  %2888 = vmatprep.subr.mxu0 0.0
  %2889 = vmatpush1.msra.mxu0 0.0
  %2890 = vmatprep.subr.mxu0 0.0
  %2891 = vmatpush1.msra.mxu0 0.0
  %2892 = vmatprep.subr.mxu0 0.0
  %2893 = vmatpush1.msra.mxu0 0.0
  %2894 = vmatprep.subr.mxu0 0.0
  %2895 = vmatpush1.msra.mxu0 0.0
  %2896 = vmatprep.subr.mxu0 0.0
  %2897 = vmatpush1.msra.mxu0 0.0
  %2898 = vmatprep.subr.mxu0 0.0
  %2899 = vmatpush1.msra.mxu0 0.0
  %2900 = vmatprep.subr.mxu0 0.0
  %2901 = vmatpush1.msra.mxu0 0.0
  %2902 = vmatprep.mubr.f32.mxu0 0.0
  %2903 = vmatmul.mubr.f32.gmra.mrb[0].mxu0 %v2821
  %v2904 = vpop.f32.mrb[0].mxu0
  %v2905 = vadd.f32 0.0, %v2904
  %v2906 = vpop.f32.mrb[0].mxu0
  %2907 = vmatprep.mubr.f32.mxu0 0.0
  %2908 = vmatmul.mubr.f32.gmra.mrb[0].mxu0 %v2824
  %v2909 = vpop.f32.mrb[0].mxu0
  %v2910 = vadd.f32 0.0, %v2909
  %v2911 = vpop.f32.mrb[0].mxu0
  %2912 = vmatprep.mubr.f32.mxu0 0.0
  %2913 = vmatmul.mubr.f32.gmra.mrb[0].mxu0 %v2827
  %v2914 = vpop.f32.mrb[0].mxu0
  %v2915 = vadd.f32 0.0, %v2914
  %v2916 = vpop.f32.mrb[0].mxu0
  %2917 = vmatprep.mubr.f32.mxu0 0.0
  %2918 = vmatmul.mubr.f32.gmra.mrb[0].mxu0 %v2830
  %v2919 = vpop.f32.mrb[0].mxu0
  %v2920 = vadd.f32 0.0, %v2919
  %v2921 = vpop.f32.mrb[0].mxu0
  %2922 = vmatprep.mubr.f32.mxu0 0.0
  %2923 = vmatmul.mubr.f32.gmra.mrb[0].mxu0 %v2833
  %v2924 = vpop.f32.mrb[0].mxu0
  %v2925 = vadd.f32 0.0, %v2924
  %v2926 = vpop.f32.mrb[0].mxu0
  %2927 = vmatprep.mubr.f32.mxu0 0.0
  %2928 = vmatmul.mubr.f32.gmra.mrb[0].mxu0 %v2836
  %v2929 = vpop.f32.mrb[0].mxu0
  %v2930 = vadd.f32 0.0, %v2929
  %v2931 = vpop.f32.mrb[0].mxu0
  %2932 = vdwg.mxu0
  %s2933 = scalar_lea.vmem %s10, 32
  %v2934 = vld [vmem:[%s2933] sm:$0xff]
  %v2935 = vld [vmem:[%s2933 + $0x8] sm:$0xff]
  %s2936 = scalar_lea.vmem %s4, 96
  %v2937 = vld [vmem:[%s2936] sm:$0xff]
  %v2938 = vld [vmem:[%s2936 + $0x8] sm:$0xff]
  %v2939 = vld [vmem:[%s2936 + $0x10] sm:$0xff]
  %v2940 = vld [vmem:[%s2936 + $0x18] sm:$0xff]
  %s2941 = scalar_lea.vmem %s7, 3
  %v2942 = vld [vmem:[%s2941] sm:$0x1]
  %v2944 = vlaneseq
  %v2945 = vshrl.u32 %v2944, 7
  %v2946 = vsub.s32 0, %v2945
  %v2947 = vrot.slane %v2942, %v2946
  %2949 = vmatprep.subr.mxu0 0.0
  %2950 = vmatpush1.msra.mxu0 %v2937
  %2951 = vmatprep.subr.mxu0 0.0
  %2952 = vmatpush1.msra.mxu0 %v2938
  %2953 = vmatprep.subr.mxu0 0.0
  %2954 = vmatpush1.msra.mxu0 %v2939
  %2955 = vmatprep.subr.mxu0 0.0
  %2956 = vmatpush1.msra.mxu0 %v2940
  %2957 = vmatprep.subr.mxu0 0.0
  %2958 = vmatpush1.msra.mxu0 0.0
  %2959 = vmatprep.subr.mxu0 0.0
  %2960 = vmatpush1.msra.mxu0 0.0
  %2961 = vmatprep.subr.mxu0 0.0
  %2962 = vmatpush1.msra.mxu0 0.0
  %2963 = vmatprep.subr.mxu0 0.0
  %2964 = vmatpush1.msra.mxu0 0.0
  %2965 = vmatprep.subr.mxu0 0.0
  %2966 = vmatpush1.msra.mxu0 0.0
  %2967 = vmatprep.subr.mxu0 0.0
  %2968 = vmatpush1.msra.mxu0 0.0
  %2969 = vmatprep.subr.mxu0 0.0
  %2970 = vmatpush1.msra.mxu0 0.0
  %2971 = vmatprep.subr.mxu0 0.0
  %2972 = vmatpush1.msra.mxu0 0.0
  %2973 = vmatprep.subr.mxu0 0.0
  %2974 = vmatpush1.msra.mxu0 0.0
  %2975 = vmatprep.subr.mxu0 0.0
  %2976 = vmatpush1.msra.mxu0 0.0
  %2977 = vmatprep.subr.mxu0 0.0
  %2978 = vmatpush1.msra.mxu0 0.0
  %2979 = vmatprep.subr.mxu0 0.0
  %2980 = vmatpush1.msra.mxu0 0.0
  %2981 = vmatprep.subr.mxu0 0.0
  %2982 = vmatpush1.msra.mxu0 0.0
  %2983 = vmatprep.subr.mxu0 0.0
  %2984 = vmatpush1.msra.mxu0 0.0
  %2985 = vmatprep.subr.mxu0 0.0
  %2986 = vmatpush1.msra.mxu0 0.0
  %2987 = vmatprep.subr.mxu0 0.0
  %2988 = vmatpush1.msra.mxu0 0.0
  %2989 = vmatprep.subr.mxu0 0.0
  %2990 = vmatpush1.msra.mxu0 0.0
  %2991 = vmatprep.subr.mxu0 0.0
  %2992 = vmatpush1.msra.mxu0 0.0
  %2993 = vmatprep.subr.mxu0 0.0
  %2994 = vmatpush1.msra.mxu0 0.0
  %2995 = vmatprep.subr.mxu0 0.0
  %2996 = vmatpush1.msra.mxu0 0.0
  %2997 = vmatprep.subr.mxu0 0.0
  %2998 = vmatpush1.msra.mxu0 0.0
  %2999 = vmatprep.subr.mxu0 0.0
  %3000 = vmatpush1.msra.mxu0 0.0
  %3001 = vmatprep.subr.mxu0 0.0
  %3002 = vmatpush1.msra.mxu0 0.0
  %3003 = vmatprep.subr.mxu0 0.0
  %3004 = vmatpush1.msra.mxu0 0.0
  %3005 = vmatprep.subr.mxu0 0.0
  %3006 = vmatpush1.msra.mxu0 0.0
  %3007 = vmatprep.subr.mxu0 0.0
  %3008 = vmatpush1.msra.mxu0 0.0
  %3009 = vmatprep.subr.mxu0 0.0
  %3010 = vmatpush1.msra.mxu0 0.0
  %3011 = vmatprep.subr.mxu0 0.0
  %3012 = vmatpush1.msra.mxu0 0.0
  %3013 = vmatprep.mubr.f32.mxu0 0.0
  %3014 = vmatmul.mubr.f32.gmra.mrb[0].mxu0 %v2283
  %v3015 = vpop.f32.mrb[0].mxu0
  %v3016 = vadd.f32 %v2947, %v3015
  %v3017 = vpop.f32.mrb[0].mxu0
  %3018 = vmatprep.mubr.f32.mxu0 0.0
  %3019 = vmatmul.mubr.f32.gmra.mrb[0].mxu0 %v2286
  %v3020 = vpop.f32.mrb[0].mxu0
  %v3021 = vadd.f32 %v2947, %v3020
  %v3022 = vpop.f32.mrb[0].mxu0
  %3023 = vmatprep.mubr.f32.mxu0 0.0
  %3024 = vmatmul.mubr.f32.gmra.mrb[0].mxu0 %v2289
  %v3025 = vpop.f32.mrb[0].mxu0
  %v3026 = vadd.f32 %v2947, %v3025
  %v3027 = vpop.f32.mrb[0].mxu0
  %3028 = vmatprep.mubr.f32.mxu0 0.0
  %3029 = vmatmul.mubr.f32.gmra.mrb[0].mxu0 %v2292
  %v3030 = vpop.f32.mrb[0].mxu0
  %v3031 = vadd.f32 %v2947, %v3030
  %v3032 = vpop.f32.mrb[0].mxu0
  %3033 = vmatprep.mubr.f32.mxu0 0.0
  %3034 = vmatmul.mubr.f32.gmra.mrb[0].mxu0 %v2295
  %v3035 = vpop.f32.mrb[0].mxu0
  %v3036 = vadd.f32 %v2947, %v3035
  %v3037 = vpop.f32.mrb[0].mxu0
  %3038 = vmatprep.mubr.f32.mxu0 0.0
  %3039 = vmatmul.mubr.f32.gmra.mrb[0].mxu0 %v2298
  %v3040 = vpop.f32.mrb[0].mxu0
  %v3041 = vadd.f32 %v2947, %v3040
  %v3042 = vpop.f32.mrb[0].mxu0
  %3043 = vdwg.mxu0
  %s3044 = scalar_lea.vmem %s5, 96
  %v3045 = vld [vmem:[%s3044] sm:$0xff]
  %v3046 = vld [vmem:[%s3044 + $0x8] sm:$0xff]
  %v3047 = vld [vmem:[%s3044 + $0x10] sm:$0xff]
  %v3048 = vld [vmem:[%s3044 + $0x18] sm:$0xff]
  %s3049 = scalar_lea.vmem %s8, 3
  %v3050 = vld [vmem:[%s3049] sm:$0x1]
  %v3052 = vlaneseq
  %v3053 = vshrl.u32 %v3052, 7
  %v3054 = vsub.s32 0, %v3053
  %v3055 = vrot.slane %v3050, %v3054
  %3057 = vmatprep.subr.mxu0 0.0
  %3058 = vmatpush1.msra.mxu0 %v3045
  %3059 = vmatprep.subr.mxu0 0.0
  %3060 = vmatpush1.msra.mxu0 %v3046
  %3061 = vmatprep.subr.mxu0 0.0
  %3062 = vmatpush1.msra.mxu0 %v3047
  %3063 = vmatprep.subr.mxu0 0.0
  %3064 = vmatpush1.msra.mxu0 %v3048
  %3065 = vmatprep.subr.mxu0 0.0
  %3066 = vmatpush1.msra.mxu0 0.0
  %3067 = vmatprep.subr.mxu0 0.0
  %3068 = vmatpush1.msra.mxu0 0.0
  %3069 = vmatprep.subr.mxu0 0.0
  %3070 = vmatpush1.msra.mxu0 0.0
  %3071 = vmatprep.subr.mxu0 0.0
  %3072 = vmatpush1.msra.mxu0 0.0
  %3073 = vmatprep.subr.mxu0 0.0
  %3074 = vmatpush1.msra.mxu0 0.0
  %3075 = vmatprep.subr.mxu0 0.0
  %3076 = vmatpush1.msra.mxu0 0.0
  %3077 = vmatprep.subr.mxu0 0.0
  %3078 = vmatpush1.msra.mxu0 0.0
  %3079 = vmatprep.subr.mxu0 0.0
  %3080 = vmatpush1.msra.mxu0 0.0
  %3081 = vmatprep.subr.mxu0 0.0
  %3082 = vmatpush1.msra.mxu0 0.0
  %3083 = vmatprep.subr.mxu0 0.0
  %3084 = vmatpush1.msra.mxu0 0.0
  %3085 = vmatprep.subr.mxu0 0.0
  %3086 = vmatpush1.msra.mxu0 0.0
  %3087 = vmatprep.subr.mxu0 0.0
  %3088 = vmatpush1.msra.mxu0 0.0
  %3089 = vmatprep.subr.mxu0 0.0
  %3090 = vmatpush1.msra.mxu0 0.0
  %3091 = vmatprep.subr.mxu0 0.0
  %3092 = vmatpush1.msra.mxu0 0.0
  %3093 = vmatprep.subr.mxu0 0.0
  %3094 = vmatpush1.msra.mxu0 0.0
  %3095 = vmatprep.subr.mxu0 0.0
  %3096 = vmatpush1.msra.mxu0 0.0
  %3097 = vmatprep.subr.mxu0 0.0
  %3098 = vmatpush1.msra.mxu0 0.0
  %3099 = vmatprep.subr.mxu0 0.0
  %3100 = vmatpush1.msra.mxu0 0.0
  %3101 = vmatprep.subr.mxu0 0.0
  %3102 = vmatpush1.msra.mxu0 0.0
  %3103 = vmatprep.subr.mxu0 0.0
  %3104 = vmatpush1.msra.mxu0 0.0
  %3105 = vmatprep.subr.mxu0 0.0
  %3106 = vmatpush1.msra.mxu0 0.0
  %3107 = vmatprep.subr.mxu0 0.0
  %3108 = vmatpush1.msra.mxu0 0.0
  %3109 = vmatprep.subr.mxu0 0.0
  %3110 = vmatpush1.msra.mxu0 0.0
  %3111 = vmatprep.subr.mxu0 0.0
  %3112 = vmatpush1.msra.mxu0 0.0
  %3113 = vmatprep.subr.mxu0 0.0
  %3114 = vmatpush1.msra.mxu0 0.0
  %3115 = vmatprep.subr.mxu0 0.0
  %3116 = vmatpush1.msra.mxu0 0.0
  %3117 = vmatprep.subr.mxu0 0.0
  %3118 = vmatpush1.msra.mxu0 0.0
  %3119 = vmatprep.subr.mxu0 0.0
  %3120 = vmatpush1.msra.mxu0 0.0
  %3121 = vmatprep.mubr.f32.mxu0 0.0
  %3122 = vmatmul.mubr.f32.gmra.mrb[0].mxu0 %v2283
  %v3123 = vpop.f32.mrb[0].mxu0
  %v3124 = vadd.f32 %v3055, %v3123
  %v3125 = vpop.f32.mrb[0].mxu0
  %3126 = vmatprep.mubr.f32.mxu0 0.0
  %3127 = vmatmul.mubr.f32.gmra.mrb[0].mxu0 %v2286
  %v3128 = vpop.f32.mrb[0].mxu0
  %v3129 = vadd.f32 %v3055, %v3128
  %v3130 = vpop.f32.mrb[0].mxu0
  %3131 = vmatprep.mubr.f32.mxu0 0.0
  %3132 = vmatmul.mubr.f32.gmra.mrb[0].mxu0 %v2289
  %v3133 = vpop.f32.mrb[0].mxu0
  %v3134 = vadd.f32 %v3055, %v3133
  %v3135 = vpop.f32.mrb[0].mxu0
  %3136 = vmatprep.mubr.f32.mxu0 0.0
  %3137 = vmatmul.mubr.f32.gmra.mrb[0].mxu0 %v2292
  %v3138 = vpop.f32.mrb[0].mxu0
  %v3139 = vadd.f32 %v3055, %v3138
  %v3140 = vpop.f32.mrb[0].mxu0
  %3141 = vmatprep.mubr.f32.mxu0 0.0
  %3142 = vmatmul.mubr.f32.gmra.mrb[0].mxu0 %v2295
  %v3143 = vpop.f32.mrb[0].mxu0
  %v3144 = vadd.f32 %v3055, %v3143
  %v3145 = vpop.f32.mrb[0].mxu0
  %3146 = vmatprep.mubr.f32.mxu0 0.0
  %3147 = vmatmul.mubr.f32.gmra.mrb[0].mxu0 %v2298
  %v3148 = vpop.f32.mrb[0].mxu0
  %v3149 = vadd.f32 %v3055, %v3148
  %v3150 = vpop.f32.mrb[0].mxu0
  %3151 = vdwg.mxu0
  %s3152 = scalar_lea.vmem %s6, 96
  %v3153 = vld [vmem:[%s3152] sm:$0xff]
  %v3154 = vld [vmem:[%s3152 + $0x8] sm:$0xff]
  %v3155 = vld [vmem:[%s3152 + $0x10] sm:$0xff]
  %v3156 = vld [vmem:[%s3152 + $0x18] sm:$0xff]
  %s3157 = scalar_lea.vmem %s9, 3
  %v3158 = vld [vmem:[%s3157] sm:$0x1]
  %v3160 = vlaneseq
  %v3161 = vshrl.u32 %v3160, 7
  %v3162 = vsub.s32 0, %v3161
  %v3163 = vrot.slane %v3158, %v3162
  %3165 = vmatprep.subr.mxu0 0.0
  %3166 = vmatpush1.msra.mxu0 %v3153
  %3167 = vmatprep.subr.mxu0 0.0
  %3168 = vmatpush1.msra.mxu0 %v3154
  %3169 = vmatprep.subr.mxu0 0.0
  %3170 = vmatpush1.msra.mxu0 %v3155
  %3171 = vmatprep.subr.mxu0 0.0
  %3172 = vmatpush1.msra.mxu0 %v3156
  %3173 = vmatprep.subr.mxu0 0.0
  %3174 = vmatpush1.msra.mxu0 0.0
  %3175 = vmatprep.subr.mxu0 0.0
  %3176 = vmatpush1.msra.mxu0 0.0
  %3177 = vmatprep.subr.mxu0 0.0
  %3178 = vmatpush1.msra.mxu0 0.0
  %3179 = vmatprep.subr.mxu0 0.0
  %3180 = vmatpush1.msra.mxu0 0.0
  %3181 = vmatprep.subr.mxu0 0.0
  %3182 = vmatpush1.msra.mxu0 0.0
  %3183 = vmatprep.subr.mxu0 0.0
  %3184 = vmatpush1.msra.mxu0 0.0
  %3185 = vmatprep.subr.mxu0 0.0
  %3186 = vmatpush1.msra.mxu0 0.0
  %3187 = vmatprep.subr.mxu0 0.0
  %3188 = vmatpush1.msra.mxu0 0.0
  %3189 = vmatprep.subr.mxu0 0.0
  %3190 = vmatpush1.msra.mxu0 0.0
  %3191 = vmatprep.subr.mxu0 0.0
  %3192 = vmatpush1.msra.mxu0 0.0
  %3193 = vmatprep.subr.mxu0 0.0
  %3194 = vmatpush1.msra.mxu0 0.0
  %3195 = vmatprep.subr.mxu0 0.0
  %3196 = vmatpush1.msra.mxu0 0.0
  %3197 = vmatprep.subr.mxu0 0.0
  %3198 = vmatpush1.msra.mxu0 0.0
  %3199 = vmatprep.subr.mxu0 0.0
  %3200 = vmatpush1.msra.mxu0 0.0
  %3201 = vmatprep.subr.mxu0 0.0
  %3202 = vmatpush1.msra.mxu0 0.0
  %3203 = vmatprep.subr.mxu0 0.0
  %3204 = vmatpush1.msra.mxu0 0.0
  %3205 = vmatprep.subr.mxu0 0.0
  %3206 = vmatpush1.msra.mxu0 0.0
  %3207 = vmatprep.subr.mxu0 0.0
  %3208 = vmatpush1.msra.mxu0 0.0
  %3209 = vmatprep.subr.mxu0 0.0
  %3210 = vmatpush1.msra.mxu0 0.0
  %3211 = vmatprep.subr.mxu0 0.0
  %3212 = vmatpush1.msra.mxu0 0.0
  %3213 = vmatprep.subr.mxu0 0.0
  %3214 = vmatpush1.msra.mxu0 0.0
  %3215 = vmatprep.subr.mxu0 0.0
  %3216 = vmatpush1.msra.mxu0 0.0
  %3217 = vmatprep.subr.mxu0 0.0
  %3218 = vmatpush1.msra.mxu0 0.0
  %3219 = vmatprep.subr.mxu0 0.0
  %3220 = vmatpush1.msra.mxu0 0.0
  %3221 = vmatprep.subr.mxu0 0.0
  %3222 = vmatpush1.msra.mxu0 0.0
  %3223 = vmatprep.subr.mxu0 0.0
  %3224 = vmatpush1.msra.mxu0 0.0
  %3225 = vmatprep.subr.mxu0 0.0
  %3226 = vmatpush1.msra.mxu0 0.0
  %3227 = vmatprep.subr.mxu0 0.0
  %3228 = vmatpush1.msra.mxu0 0.0
  %3229 = vmatprep.mubr.f32.mxu0 0.0
  %3230 = vmatmul.mubr.f32.gmra.mrb[0].mxu0 %v2283
  %v3231 = vpop.f32.mrb[0].mxu0
  %v3232 = vadd.f32 %v3163, %v3231
  %v3233 = vpop.f32.mrb[0].mxu0
  %3234 = vmatprep.mubr.f32.mxu0 0.0
  %3235 = vmatmul.mubr.f32.gmra.mrb[0].mxu0 %v2286
  %v3236 = vpop.f32.mrb[0].mxu0
  %v3237 = vadd.f32 %v3163, %v3236
  %v3238 = vpop.f32.mrb[0].mxu0
  %3239 = vmatprep.mubr.f32.mxu0 0.0
  %3240 = vmatmul.mubr.f32.gmra.mrb[0].mxu0 %v2289
  %v3241 = vpop.f32.mrb[0].mxu0
  %v3242 = vadd.f32 %v3163, %v3241
  %v3243 = vpop.f32.mrb[0].mxu0
  %3244 = vmatprep.mubr.f32.mxu0 0.0
  %3245 = vmatmul.mubr.f32.gmra.mrb[0].mxu0 %v2292
  %v3246 = vpop.f32.mrb[0].mxu0
  %v3247 = vadd.f32 %v3163, %v3246
  %v3248 = vpop.f32.mrb[0].mxu0
  %3249 = vmatprep.mubr.f32.mxu0 0.0
  %3250 = vmatmul.mubr.f32.gmra.mrb[0].mxu0 %v2295
  %v3251 = vpop.f32.mrb[0].mxu0
  %v3252 = vadd.f32 %v3163, %v3251
  %v3253 = vpop.f32.mrb[0].mxu0
  %3254 = vmatprep.mubr.f32.mxu0 0.0
  %3255 = vmatmul.mubr.f32.gmra.mrb[0].mxu0 %v2298
  %v3256 = vpop.f32.mrb[0].mxu0
  %v3257 = vadd.f32 %v3163, %v3256
  %v3258 = vpop.f32.mrb[0].mxu0
  %3259 = vdwg.mxu0
  %v3261 = vsel %vm528, %v3016, 0
  %v3264 = vsel %vm528, %v3021, 0
  %v3267 = vsel %vm528, %v3026, 0
  %v3270 = vsel %vm528, %v3031, 0
  %v3273 = vsel %vm528, %v3036, 0
  %v3276 = vsel %vm528, %v3041, 0
  %v3279 = vsel %vm528, %v3124, 0
  %v3282 = vsel %vm528, %v3129, 0
  %v3285 = vsel %vm528, %v3134, 0
  %v3288 = vsel %vm528, %v3139, 0
  %v3291 = vsel %vm528, %v3144, 0
  %v3294 = vsel %vm528, %v3149, 0
  %3296 = vmatprep.subr.mxu0 0.0
  %3297 = vmatpush1.xpose.msra.mxu0 %v3279
  %3298 = vmatprep.subr.mxu0 0.0
  %3299 = vmatpush1.xpose.msra.mxu0 %v3282
  %3300 = vmatprep.subr.mxu0 0.0
  %3301 = vmatpush1.xpose.msra.mxu0 %v3285
  %3302 = vmatprep.subr.mxu0 0.0
  %3303 = vmatpush1.xpose.msra.mxu0 %v3288
  %3304 = vmatprep.subr.mxu0 0.0
  %3305 = vmatpush1.xpose.msra.mxu0 %v3291
  %3306 = vmatprep.subr.mxu0 0.0
  %3307 = vmatpush1.xpose.msra.mxu0 %v3294
  %3308 = vmatprep.subr.mxu0 0.0
  %3309 = vmatpush1.xpose.msra.mxu0 0.0
  %3310 = vmatprep.subr.mxu0 0.0
  %3311 = vmatpush1.xpose.msra.mxu0 0.0
  %3312 = vmatprep.subr.mxu0 0.0
  %3313 = vmatpush1.xpose.msra.mxu0 0.0
  %3314 = vmatprep.subr.mxu0 0.0
  %3315 = vmatpush1.xpose.msra.mxu0 0.0
  %3316 = vmatprep.subr.mxu0 0.0
  %3317 = vmatpush1.xpose.msra.mxu0 0.0
  %3318 = vmatprep.subr.mxu0 0.0
  %3319 = vmatpush1.xpose.msra.mxu0 0.0
  %3320 = vmatprep.subr.mxu0 0.0
  %3321 = vmatpush1.xpose.msra.mxu0 0.0
  %3322 = vmatprep.subr.mxu0 0.0
  %3323 = vmatpush1.xpose.msra.mxu0 0.0
  %3324 = vmatprep.subr.mxu0 0.0
  %3325 = vmatpush1.xpose.msra.mxu0 0.0
  %3326 = vmatprep.subr.mxu0 0.0
  %3327 = vmatpush1.xpose.msra.mxu0 0.0
  %3328 = vmatprep.subr.mxu0 0.0
  %3329 = vmatpush1.xpose.msra.mxu0 0.0
  %3330 = vmatprep.subr.mxu0 0.0
  %3331 = vmatpush1.xpose.msra.mxu0 0.0
  %3332 = vmatprep.subr.mxu0 0.0
  %3333 = vmatpush1.xpose.msra.mxu0 0.0
  %3334 = vmatprep.subr.mxu0 0.0
  %3335 = vmatpush1.xpose.msra.mxu0 0.0
  %3336 = vmatprep.subr.mxu0 0.0
  %3337 = vmatpush1.xpose.msra.mxu0 0.0
  %3338 = vmatprep.subr.mxu0 0.0
  %3339 = vmatpush1.xpose.msra.mxu0 0.0
  %3340 = vmatprep.subr.mxu0 0.0
  %3341 = vmatpush1.xpose.msra.mxu0 0.0
  %3342 = vmatprep.subr.mxu0 0.0
  %3343 = vmatpush1.xpose.msra.mxu0 0.0
  %3344 = vmatprep.subr.mxu0 0.0
  %3345 = vmatpush1.xpose.msra.mxu0 0.0
  %3346 = vmatprep.subr.mxu0 0.0
  %3347 = vmatpush1.xpose.msra.mxu0 0.0
  %3348 = vmatprep.subr.mxu0 0.0
  %3349 = vmatpush1.xpose.msra.mxu0 0.0
  %3350 = vmatprep.subr.mxu0 0.0
  %3351 = vmatpush1.xpose.msra.mxu0 0.0
  %3352 = vmatprep.subr.mxu0 0.0
  %3353 = vmatpush1.xpose.msra.mxu0 0.0
  %3354 = vmatprep.subr.mxu0 0.0
  %3355 = vmatpush1.xpose.msra.mxu0 0.0
  %3356 = vmatprep.subr.mxu0 0.0
  %3357 = vmatpush1.xpose.msra.mxu0 0.0
  %3358 = vmatprep.subr.mxu0 0.0
  %3359 = vmatpush1.xpose.msra.mxu0 0.0
  %3360 = vmatprep.mubr.f32.mxu0 0.0
  %3361 = vmatmul.mubr.f32.gmra.mrb[0].mxu0 %v3261
  %v3362 = vpop.f32.mrb[0].mxu0
  %v3363 = vadd.f32 0.0, %v3362
  %v3364 = vpop.f32.mrb[0].mxu0
  %3365 = vmatprep.mubr.f32.mxu0 0.0
  %3366 = vmatmul.mubr.f32.gmra.mrb[0].mxu0 %v3264
  %v3367 = vpop.f32.mrb[0].mxu0
  %v3368 = vadd.f32 0.0, %v3367
  %v3369 = vpop.f32.mrb[0].mxu0
  %3370 = vmatprep.mubr.f32.mxu0 0.0
  %3371 = vmatmul.mubr.f32.gmra.mrb[0].mxu0 %v3267
  %v3372 = vpop.f32.mrb[0].mxu0
  %v3373 = vadd.f32 0.0, %v3372
  %v3374 = vpop.f32.mrb[0].mxu0
  %3375 = vmatprep.mubr.f32.mxu0 0.0
  %3376 = vmatmul.mubr.f32.gmra.mrb[0].mxu0 %v3270
  %v3377 = vpop.f32.mrb[0].mxu0
  %v3378 = vadd.f32 0.0, %v3377
  %v3379 = vpop.f32.mrb[0].mxu0
  %3380 = vmatprep.mubr.f32.mxu0 0.0
  %3381 = vmatmul.mubr.f32.gmra.mrb[0].mxu0 %v3273
  %v3382 = vpop.f32.mrb[0].mxu0
  %v3383 = vadd.f32 0.0, %v3382
  %v3384 = vpop.f32.mrb[0].mxu0
  %3385 = vmatprep.mubr.f32.mxu0 0.0
  %3386 = vmatmul.mubr.f32.gmra.mrb[0].mxu0 %v3276
  %v3387 = vpop.f32.mrb[0].mxu0
  %v3388 = vadd.f32 0.0, %v3387
  %v3389 = vpop.f32.mrb[0].mxu0
  %3390 = vdwg.mxu0
  %v3391 = vmul.f32 %v3363, 0.25
  %v3392 = vmul.f32 %v3368, 0.25
  %v3393 = vmul.f32 %v3373, 0.25
  %v3394 = vmul.f32 %v3378, 0.25
  %v3395 = vmul.f32 %v3383, 0.25
  %v3396 = vmul.f32 %v3388, 0.25
  %v3397 = vadd.f32 %v3391, %v186
  %v3398 = vadd.f32 %v3392, %v187
  %v3399 = vadd.f32 %v3393, %v188
  %v3400 = vadd.f32 %v3394, %v189
  %v3401 = vadd.f32 %v3395, %v190
  %v3402 = vadd.f32 %v3396, %v191
  %v3403 = vsel %vm672, %v3397, -inf
  %3404 = vmax.xlane.f32.xlu0 %v3403
  %v3405 = vpop.xlane.xlu0 %3404
  %v3406 = vsel %vm672, %v3398, -inf
  %3407 = vmax.xlane.f32.xlu0 %v3406
  %v3408 = vpop.xlane.xlu0 %3407
  %v3409 = vsel %vm672, %v3399, -inf
  %3410 = vmax.xlane.f32.xlu0 %v3409
  %v3411 = vpop.xlane.xlu0 %3410
  %v3412 = vsel %vm672, %v3400, -inf
  %3413 = vmax.xlane.f32.xlu0 %v3412
  %v3414 = vpop.xlane.xlu0 %3413
  %v3415 = vsel %vm672, %v3401, -inf
  %3416 = vmax.xlane.f32.xlu0 %v3415
  %v3417 = vpop.xlane.xlu0 %3416
  %v3418 = vsel %vm672, %v3402, -inf
  %3419 = vmax.xlane.f32.xlu0 %v3418
  %v3420 = vpop.xlane.xlu0 %3419
  %v3421 = vsub.f32 %v3397, %v3405
  %v3422 = vsub.f32 %v3398, %v3408
  %v3423 = vsub.f32 %v3399, %v3411
  %v3424 = vsub.f32 %v3400, %v3414
  %v3425 = vsub.f32 %v3401, %v3417
  %v3426 = vsub.f32 %v3402, %v3420
  %v3427 = vmul.f32 %v3421, 1.442695
  %v3428 = vpow.pop %v3427
  %v3429 = vmul.f32 %v3422, 1.442695
  %v3430 = vpow.pop %v3429
  %v3431 = vmul.f32 %v3423, 1.442695
  %v3432 = vpow.pop %v3431
  %v3433 = vmul.f32 %v3424, 1.442695
  %v3434 = vpow.pop %v3433
  %v3435 = vmul.f32 %v3425, 1.442695
  %v3436 = vpow.pop %v3435
  %v3437 = vmul.f32 %v3426, 1.442695
  %v3438 = vpow.pop %v3437
  %v3439 = vsel %vm672, %v3428, 0.0
  %3440 = vadd.xlane.f32.xlu0 %v3439
  %v3441 = vpop.xlane.xlu0 %3440
  %v3442 = vsel %vm672, %v3430, 0.0
  %3443 = vadd.xlane.f32.xlu0 %v3442
  %v3444 = vpop.xlane.xlu0 %3443
  %v3445 = vsel %vm672, %v3432, 0.0
  %3446 = vadd.xlane.f32.xlu0 %v3445
  %v3447 = vpop.xlane.xlu0 %3446
  %v3448 = vsel %vm672, %v3434, 0.0
  %3449 = vadd.xlane.f32.xlu0 %v3448
  %v3450 = vpop.xlane.xlu0 %3449
  %v3451 = vsel %vm672, %v3436, 0.0
  %3452 = vadd.xlane.f32.xlu0 %v3451
  %v3453 = vpop.xlane.xlu0 %3452
  %v3454 = vsel %vm672, %v3438, 0.0
  %3455 = vadd.xlane.f32.xlu0 %v3454
  %v3456 = vpop.xlane.xlu0 %3455
  %v3457 = vrcp.pop %v3441
  %v3458 = vrcp.pop %v3444
  %v3459 = vrcp.pop %v3447
  %v3460 = vrcp.pop %v3450
  %v3461 = vrcp.pop %v3453
  %v3462 = vrcp.pop %v3456
  %v3463 = vmul.f32 %v3428, %v3457
  %v3464 = vmul.f32 %v3430, %v3458
  %v3465 = vmul.f32 %v3432, %v3459
  %v3466 = vmul.f32 %v3434, %v3460
  %v3467 = vmul.f32 %v3436, %v3461
  %v3468 = vmul.f32 %v3438, %v3462
  %v3470 = vsel %vm672, %v3463, 0
  %v3473 = vsel %vm672, %v3464, 0
  %v3476 = vsel %vm672, %v3465, 0
  %v3479 = vsel %vm672, %v3466, 0
  %v3482 = vsel %vm672, %v3467, 0
  %v3485 = vsel %vm672, %v3468, 0
  %3487 = vmatprep.subr.mxu0 0.0
  %3488 = vmatpush1.msra.mxu0 %v3232
  %3489 = vmatprep.subr.mxu0 0.0
  %3490 = vmatpush1.msra.mxu0 %v3237
  %3491 = vmatprep.subr.mxu0 0.0
  %3492 = vmatpush1.msra.mxu0 %v3242
  %3493 = vmatprep.subr.mxu0 0.0
  %3494 = vmatpush1.msra.mxu0 %v3247
  %3495 = vmatprep.subr.mxu0 0.0
  %3496 = vmatpush1.msra.mxu0 %v3252
  %3497 = vmatprep.subr.mxu0 0.0
  %3498 = vmatpush1.msra.mxu0 %v3257
  %3499 = vmatprep.subr.mxu0 0.0
  %3500 = vmatpush1.msra.mxu0 0.0
  %3501 = vmatprep.subr.mxu0 0.0
  %3502 = vmatpush1.msra.mxu0 0.0
  %3503 = vmatprep.subr.mxu0 0.0
  %3504 = vmatpush1.msra.mxu0 0.0
  %3505 = vmatprep.subr.mxu0 0.0
  %3506 = vmatpush1.msra.mxu0 0.0
  %3507 = vmatprep.subr.mxu0 0.0
  %3508 = vmatpush1.msra.mxu0 0.0
  %3509 = vmatprep.subr.mxu0 0.0
  %3510 = vmatpush1.msra.mxu0 0.0
  %3511 = vmatprep.subr.mxu0 0.0
  %3512 = vmatpush1.msra.mxu0 0.0
  %3513 = vmatprep.subr.mxu0 0.0
  %3514 = vmatpush1.msra.mxu0 0.0
  %3515 = vmatprep.subr.mxu0 0.0
  %3516 = vmatpush1.msra.mxu0 0.0
  %3517 = vmatprep.subr.mxu0 0.0
  %3518 = vmatpush1.msra.mxu0 0.0
  %3519 = vmatprep.subr.mxu0 0.0
  %3520 = vmatpush1.msra.mxu0 0.0
  %3521 = vmatprep.subr.mxu0 0.0
  %3522 = vmatpush1.msra.mxu0 0.0
  %3523 = vmatprep.subr.mxu0 0.0
  %3524 = vmatpush1.msra.mxu0 0.0
  %3525 = vmatprep.subr.mxu0 0.0
  %3526 = vmatpush1.msra.mxu0 0.0
  %3527 = vmatprep.subr.mxu0 0.0
  %3528 = vmatpush1.msra.mxu0 0.0
  %3529 = vmatprep.subr.mxu0 0.0
  %3530 = vmatpush1.msra.mxu0 0.0
  %3531 = vmatprep.subr.mxu0 0.0
  %3532 = vmatpush1.msra.mxu0 0.0
  %3533 = vmatprep.subr.mxu0 0.0
  %3534 = vmatpush1.msra.mxu0 0.0
  %3535 = vmatprep.subr.mxu0 0.0
  %3536 = vmatpush1.msra.mxu0 0.0
  %3537 = vmatprep.subr.mxu0 0.0
  %3538 = vmatpush1.msra.mxu0 0.0
  %3539 = vmatprep.subr.mxu0 0.0
  %3540 = vmatpush1.msra.mxu0 0.0
  %3541 = vmatprep.subr.mxu0 0.0
  %3542 = vmatpush1.msra.mxu0 0.0
  %3543 = vmatprep.subr.mxu0 0.0
  %3544 = vmatpush1.msra.mxu0 0.0
  %3545 = vmatprep.subr.mxu0 0.0
  %3546 = vmatpush1.msra.mxu0 0.0
  %3547 = vmatprep.subr.mxu0 0.0
  %3548 = vmatpush1.msra.mxu0 0.0
  %3549 = vmatprep.subr.mxu0 0.0
  %3550 = vmatpush1.msra.mxu0 0.0
  %3551 = vmatprep.mubr.f32.mxu0 0.0
  %3552 = vmatmul.mubr.f32.gmra.mrb[0].mxu0 %v3470
  %v3553 = vpop.f32.mrb[0].mxu0
  %v3554 = vadd.f32 0.0, %v3553
  %v3555 = vpop.f32.mrb[0].mxu0
  %3556 = vmatprep.mubr.f32.mxu0 0.0
  %3557 = vmatmul.mubr.f32.gmra.mrb[0].mxu0 %v3473
  %v3558 = vpop.f32.mrb[0].mxu0
  %v3559 = vadd.f32 0.0, %v3558
  %v3560 = vpop.f32.mrb[0].mxu0
  %3561 = vmatprep.mubr.f32.mxu0 0.0
  %3562 = vmatmul.mubr.f32.gmra.mrb[0].mxu0 %v3476
  %v3563 = vpop.f32.mrb[0].mxu0
  %v3564 = vadd.f32 0.0, %v3563
  %v3565 = vpop.f32.mrb[0].mxu0
  %3566 = vmatprep.mubr.f32.mxu0 0.0
  %3567 = vmatmul.mubr.f32.gmra.mrb[0].mxu0 %v3479
  %v3568 = vpop.f32.mrb[0].mxu0
  %v3569 = vadd.f32 0.0, %v3568
  %v3570 = vpop.f32.mrb[0].mxu0
  %3571 = vmatprep.mubr.f32.mxu0 0.0
  %3572 = vmatmul.mubr.f32.gmra.mrb[0].mxu0 %v3482
  %v3573 = vpop.f32.mrb[0].mxu0
  %v3574 = vadd.f32 0.0, %v3573
  %v3575 = vpop.f32.mrb[0].mxu0
  %3576 = vmatprep.mubr.f32.mxu0 0.0
  %3577 = vmatmul.mubr.f32.gmra.mrb[0].mxu0 %v3485
  %v3578 = vpop.f32.mrb[0].mxu0
  %v3579 = vadd.f32 0.0, %v3578
  %v3580 = vpop.f32.mrb[0].mxu0
  %3581 = vdwg.mxu0
  %s3582 = scalar_lea.vmem %s10, 48
  %v3583 = vld [vmem:[%s3582] sm:$0xff]
  %v3584 = vld [vmem:[%s3582 + $0x8] sm:$0xff]
  %v3586 = vsel %vm528, %v3554, 0
  %v3589 = vsel %vm528, %v3559, 0
  %v3592 = vsel %vm528, %v3564, 0
  %v3595 = vsel %vm528, %v3569, 0
  %v3598 = vsel %vm528, %v3574, 0
  %v3601 = vsel %vm528, %v3579, 0
  %3603 = vmatprep.subr.mxu0 0.0
  %3604 = vmatpush1.msra.mxu0 %v3583
  %3605 = vmatprep.subr.mxu0 0.0
  %3606 = vmatpush1.msra.mxu0 %v3584
  %3607 = vmatprep.subr.mxu0 0.0
  %3608 = vmatpush1.msra.mxu0 0.0
  %3609 = vmatprep.subr.mxu0 0.0
  %3610 = vmatpush1.msra.mxu0 0.0
  %3611 = vmatprep.subr.mxu0 0.0
  %3612 = vmatpush1.msra.mxu0 0.0
  %3613 = vmatprep.subr.mxu0 0.0
  %3614 = vmatpush1.msra.mxu0 0.0
  %3615 = vmatprep.subr.mxu0 0.0
  %3616 = vmatpush1.msra.mxu0 0.0
  %3617 = vmatprep.subr.mxu0 0.0
  %3618 = vmatpush1.msra.mxu0 0.0
  %3619 = vmatprep.subr.mxu0 0.0
  %3620 = vmatpush1.msra.mxu0 0.0
  %3621 = vmatprep.subr.mxu0 0.0
  %3622 = vmatpush1.msra.mxu0 0.0
  %3623 = vmatprep.subr.mxu0 0.0
  %3624 = vmatpush1.msra.mxu0 0.0
  %3625 = vmatprep.subr.mxu0 0.0
  %3626 = vmatpush1.msra.mxu0 0.0
  %3627 = vmatprep.subr.mxu0 0.0
  %3628 = vmatpush1.msra.mxu0 0.0
  %3629 = vmatprep.subr.mxu0 0.0
  %3630 = vmatpush1.msra.mxu0 0.0
  %3631 = vmatprep.subr.mxu0 0.0
  %3632 = vmatpush1.msra.mxu0 0.0
  %3633 = vmatprep.subr.mxu0 0.0
  %3634 = vmatpush1.msra.mxu0 0.0
  %3635 = vmatprep.subr.mxu0 0.0
  %3636 = vmatpush1.msra.mxu0 0.0
  %3637 = vmatprep.subr.mxu0 0.0
  %3638 = vmatpush1.msra.mxu0 0.0
  %3639 = vmatprep.subr.mxu0 0.0
  %3640 = vmatpush1.msra.mxu0 0.0
  %3641 = vmatprep.subr.mxu0 0.0
  %3642 = vmatpush1.msra.mxu0 0.0
  %3643 = vmatprep.subr.mxu0 0.0
  %3644 = vmatpush1.msra.mxu0 0.0
  %3645 = vmatprep.subr.mxu0 0.0
  %3646 = vmatpush1.msra.mxu0 0.0
  %3647 = vmatprep.subr.mxu0 0.0
  %3648 = vmatpush1.msra.mxu0 0.0
  %3649 = vmatprep.subr.mxu0 0.0
  %3650 = vmatpush1.msra.mxu0 0.0
  %3651 = vmatprep.subr.mxu0 0.0
  %3652 = vmatpush1.msra.mxu0 0.0
  %3653 = vmatprep.subr.mxu0 0.0
  %3654 = vmatpush1.msra.mxu0 0.0
  %3655 = vmatprep.subr.mxu0 0.0
  %3656 = vmatpush1.msra.mxu0 0.0
  %3657 = vmatprep.subr.mxu0 0.0
  %3658 = vmatpush1.msra.mxu0 0.0
  %3659 = vmatprep.subr.mxu0 0.0
  %3660 = vmatpush1.msra.mxu0 0.0
  %3661 = vmatprep.subr.mxu0 0.0
  %3662 = vmatpush1.msra.mxu0 0.0
  %3663 = vmatprep.subr.mxu0 0.0
  %3664 = vmatpush1.msra.mxu0 0.0
  %3665 = vmatprep.subr.mxu0 0.0
  %3666 = vmatpush1.msra.mxu0 0.0
  %3667 = vmatprep.mubr.f32.mxu0 0.0
  %3668 = vmatmul.mubr.f32.gmra.mrb[0].mxu0 %v3586
  %v3669 = vpop.f32.mrb[0].mxu0
  %v3670 = vadd.f32 0.0, %v3669
  %v3671 = vpop.f32.mrb[0].mxu0
  %3672 = vmatprep.mubr.f32.mxu0 0.0
  %3673 = vmatmul.mubr.f32.gmra.mrb[0].mxu0 %v3589
  %v3674 = vpop.f32.mrb[0].mxu0
  %v3675 = vadd.f32 0.0, %v3674
  %v3676 = vpop.f32.mrb[0].mxu0
  %3677 = vmatprep.mubr.f32.mxu0 0.0
  %3678 = vmatmul.mubr.f32.gmra.mrb[0].mxu0 %v3592
  %v3679 = vpop.f32.mrb[0].mxu0
  %v3680 = vadd.f32 0.0, %v3679
  %v3681 = vpop.f32.mrb[0].mxu0
  %3682 = vmatprep.mubr.f32.mxu0 0.0
  %3683 = vmatmul.mubr.f32.gmra.mrb[0].mxu0 %v3595
  %v3684 = vpop.f32.mrb[0].mxu0
  %v3685 = vadd.f32 0.0, %v3684
  %v3686 = vpop.f32.mrb[0].mxu0
  %3687 = vmatprep.mubr.f32.mxu0 0.0
  %3688 = vmatmul.mubr.f32.gmra.mrb[0].mxu0 %v3598
  %v3689 = vpop.f32.mrb[0].mxu0
  %v3690 = vadd.f32 0.0, %v3689
  %v3691 = vpop.f32.mrb[0].mxu0
  %3692 = vmatprep.mubr.f32.mxu0 0.0
  %3693 = vmatmul.mubr.f32.gmra.mrb[0].mxu0 %v3601
  %v3694 = vpop.f32.mrb[0].mxu0
  %v3695 = vadd.f32 0.0, %v3694
  %v3696 = vpop.f32.mrb[0].mxu0
  %3697 = vdwg.mxu0
  %v3699 = vsel %vm528, %v2905, 0
  %v3702 = vsel %vm528, %v2910, 0
  %v3705 = vsel %vm528, %v2915, 0
  %v3708 = vsel %vm528, %v2920, 0
  %v3711 = vsel %vm528, %v2925, 0
  %v3714 = vsel %vm528, %v2930, 0
  %3716 = vmatprep.subr.mxu0 0.0
  %3717 = vmatpush1.msra.mxu0 %v2934
  %3718 = vmatprep.subr.mxu0 0.0
  %3719 = vmatpush1.msra.mxu0 %v2935
  %3720 = vmatprep.subr.mxu0 0.0
  %3721 = vmatpush1.msra.mxu0 0.0
  %3722 = vmatprep.subr.mxu0 0.0
  %3723 = vmatpush1.msra.mxu0 0.0
  %3724 = vmatprep.subr.mxu0 0.0
  %3725 = vmatpush1.msra.mxu0 0.0
  %3726 = vmatprep.subr.mxu0 0.0
  %3727 = vmatpush1.msra.mxu0 0.0
  %3728 = vmatprep.subr.mxu0 0.0
  %3729 = vmatpush1.msra.mxu0 0.0
  %3730 = vmatprep.subr.mxu0 0.0
  %3731 = vmatpush1.msra.mxu0 0.0
  %3732 = vmatprep.subr.mxu0 0.0
  %3733 = vmatpush1.msra.mxu0 0.0
  %3734 = vmatprep.subr.mxu0 0.0
  %3735 = vmatpush1.msra.mxu0 0.0
  %3736 = vmatprep.subr.mxu0 0.0
  %3737 = vmatpush1.msra.mxu0 0.0
  %3738 = vmatprep.subr.mxu0 0.0
  %3739 = vmatpush1.msra.mxu0 0.0
  %3740 = vmatprep.subr.mxu0 0.0
  %3741 = vmatpush1.msra.mxu0 0.0
  %3742 = vmatprep.subr.mxu0 0.0
  %3743 = vmatpush1.msra.mxu0 0.0
  %3744 = vmatprep.subr.mxu0 0.0
  %3745 = vmatpush1.msra.mxu0 0.0
  %3746 = vmatprep.subr.mxu0 0.0
  %3747 = vmatpush1.msra.mxu0 0.0
  %3748 = vmatprep.subr.mxu0 0.0
  %3749 = vmatpush1.msra.mxu0 0.0
  %3750 = vmatprep.subr.mxu0 0.0
  %3751 = vmatpush1.msra.mxu0 0.0
  %3752 = vmatprep.subr.mxu0 0.0
  %3753 = vmatpush1.msra.mxu0 0.0
  %3754 = vmatprep.subr.mxu0 0.0
  %3755 = vmatpush1.msra.mxu0 0.0
  %3756 = vmatprep.subr.mxu0 0.0
  %3757 = vmatpush1.msra.mxu0 0.0
  %3758 = vmatprep.subr.mxu0 0.0
  %3759 = vmatpush1.msra.mxu0 0.0
  %3760 = vmatprep.subr.mxu0 0.0
  %3761 = vmatpush1.msra.mxu0 0.0
  %3762 = vmatprep.subr.mxu0 0.0
  %3763 = vmatpush1.msra.mxu0 0.0
  %3764 = vmatprep.subr.mxu0 0.0
  %3765 = vmatpush1.msra.mxu0 0.0
  %3766 = vmatprep.subr.mxu0 0.0
  %3767 = vmatpush1.msra.mxu0 0.0
  %3768 = vmatprep.subr.mxu0 0.0
  %3769 = vmatpush1.msra.mxu0 0.0
  %3770 = vmatprep.subr.mxu0 0.0
  %3771 = vmatpush1.msra.mxu0 0.0
  %3772 = vmatprep.subr.mxu0 0.0
  %3773 = vmatpush1.msra.mxu0 0.0
  %3774 = vmatprep.subr.mxu0 0.0
  %3775 = vmatpush1.msra.mxu0 0.0
  %3776 = vmatprep.subr.mxu0 0.0
  %3777 = vmatpush1.msra.mxu0 0.0
  %3778 = vmatprep.subr.mxu0 0.0
  %3779 = vmatpush1.msra.mxu0 0.0
  %3780 = vmatprep.mubr.f32.mxu0 0.0
  %3781 = vmatmul.mubr.f32.gmra.mrb[0].mxu0 %v3699
  %v3782 = vpop.f32.mrb[0].mxu0
  %v3783 = vadd.f32 %v3670, %v3782
  %v3784 = vpop.f32.mrb[0].mxu0
  %3785 = vmatprep.mubr.f32.mxu0 0.0
  %3786 = vmatmul.mubr.f32.gmra.mrb[0].mxu0 %v3702
  %v3787 = vpop.f32.mrb[0].mxu0
  %v3788 = vadd.f32 %v3675, %v3787
  %v3789 = vpop.f32.mrb[0].mxu0
  %3790 = vmatprep.mubr.f32.mxu0 0.0
  %3791 = vmatmul.mubr.f32.gmra.mrb[0].mxu0 %v3705
  %v3792 = vpop.f32.mrb[0].mxu0
  %v3793 = vadd.f32 %v3680, %v3792
  %v3794 = vpop.f32.mrb[0].mxu0
  %3795 = vmatprep.mubr.f32.mxu0 0.0
  %3796 = vmatmul.mubr.f32.gmra.mrb[0].mxu0 %v3708
  %v3797 = vpop.f32.mrb[0].mxu0
  %v3798 = vadd.f32 %v3685, %v3797
  %v3799 = vpop.f32.mrb[0].mxu0
  %3800 = vmatprep.mubr.f32.mxu0 0.0
  %3801 = vmatmul.mubr.f32.gmra.mrb[0].mxu0 %v3711
  %v3802 = vpop.f32.mrb[0].mxu0
  %v3803 = vadd.f32 %v3690, %v3802
  %v3804 = vpop.f32.mrb[0].mxu0
  %3805 = vmatprep.mubr.f32.mxu0 0.0
  %3806 = vmatmul.mubr.f32.gmra.mrb[0].mxu0 %v3714
  %v3807 = vpop.f32.mrb[0].mxu0
  %v3808 = vadd.f32 %v3695, %v3807
  %v3809 = vpop.f32.mrb[0].mxu0
  %3810 = vdwg.mxu0
  %v3811 = vadd.f32 %v2263, %v3783
  %v3812 = vadd.f32 %v2264, %v3788
  %v3813 = vadd.f32 %v2265, %v3793
  %v3814 = vadd.f32 %v2266, %v3798
  %v3815 = vadd.f32 %v2267, %v3803
  %v3816 = vadd.f32 %v2268, %v3808
  %s3817 = scalar_lea.vmem %s11, 1
  %v3818 = vld [vmem:[%s3817] sm:$0x1]
  %v3820 = vlaneseq
  %v3821 = vshrl.u32 %v3820, 7
  %v3822 = vsub.s32 0, %v3821
  %v3823 = vrot.slane %v3818, %v3822
  %v3825 = vadd.f32 %v3811, %v3823
  %v3826 = vadd.f32 %v3812, %v3823
  %v3827 = vadd.f32 %v3813, %v3823
  %v3828 = vadd.f32 %v3814, %v3823
  %v3829 = vadd.f32 %v3815, %v3823
  %v3830 = vadd.f32 %v3816, %v3823
  %s3831 = scalar_lea.vmem %s12, 1
  %v3832 = vld [vmem:[%s3831] sm:$0x1]
  %s3833 = scalar_lea.vmem %s13, 1
  %v3834 = vld [vmem:[%s3833] sm:$0x1]
  %v3835 = vsel %vm82, %v3825, 0.0
  %3836 = vadd.xlane.f32.xlu0 %v3835
  %v3837 = vpop.xlane.xlu0 %3836
  %v3838 = vsel %vm82, %v3826, 0.0
  %3839 = vadd.xlane.f32.xlu0 %v3838
  %v3840 = vpop.xlane.xlu0 %3839
  %v3841 = vsel %vm82, %v3827, 0.0
  %3842 = vadd.xlane.f32.xlu0 %v3841
  %v3843 = vpop.xlane.xlu0 %3842
  %v3844 = vsel %vm82, %v3828, 0.0
  %3845 = vadd.xlane.f32.xlu0 %v3844
  %v3846 = vpop.xlane.xlu0 %3845
  %v3847 = vsel %vm82, %v3829, 0.0
  %3848 = vadd.xlane.f32.xlu0 %v3847
  %v3849 = vpop.xlane.xlu0 %3848
  %v3850 = vsel %vm82, %v3830, 0.0
  %3851 = vadd.xlane.f32.xlu0 %v3850
  %v3852 = vpop.xlane.xlu0 %3851
  %v3853 = vmul.f32 %v3837, %v101
  %v3854 = vmul.f32 %v3840, %v101
  %v3855 = vmul.f32 %v3843, %v101
  %v3856 = vmul.f32 %v3846, %v101
  %v3857 = vmul.f32 %v3849, %v101
  %v3858 = vmul.f32 %v3852, %v101
  %v3859 = vsub.f32 %v3825, %v3853
  %v3860 = vsub.f32 %v3826, %v3854
  %v3861 = vsub.f32 %v3827, %v3855
  %v3862 = vsub.f32 %v3828, %v3856
  %v3863 = vsub.f32 %v3829, %v3857
  %v3864 = vsub.f32 %v3830, %v3858
  %v3865 = vmul.f32 %v3859, %v3859
  %v3866 = vmul.f32 %v3860, %v3860
  %v3867 = vmul.f32 %v3861, %v3861
  %v3868 = vmul.f32 %v3862, %v3862
  %v3869 = vmul.f32 %v3863, %v3863
  %v3870 = vmul.f32 %v3864, %v3864
  %v3871 = vsel %vm82, %v3865, 0.0
  %3872 = vadd.xlane.f32.xlu0 %v3871
  %v3873 = vpop.xlane.xlu0 %3872
  %v3874 = vsel %vm82, %v3866, 0.0
  %3875 = vadd.xlane.f32.xlu0 %v3874
  %v3876 = vpop.xlane.xlu0 %3875
  %v3877 = vsel %vm82, %v3867, 0.0
  %3878 = vadd.xlane.f32.xlu0 %v3877
  %v3879 = vpop.xlane.xlu0 %3878
  %v3880 = vsel %vm82, %v3868, 0.0
  %3881 = vadd.xlane.f32.xlu0 %v3880
  %v3882 = vpop.xlane.xlu0 %3881
  %v3883 = vsel %vm82, %v3869, 0.0
  %3884 = vadd.xlane.f32.xlu0 %v3883
  %v3885 = vpop.xlane.xlu0 %3884
  %v3886 = vsel %vm82, %v3870, 0.0
  %3887 = vadd.xlane.f32.xlu0 %v3886
  %v3888 = vpop.xlane.xlu0 %3887
  %v3889 = vmul.f32 %v3873, %v101
  %v3890 = vmul.f32 %v3876, %v101
  %v3891 = vmul.f32 %v3879, %v101
  %v3892 = vmul.f32 %v3882, %v101
  %v3893 = vmul.f32 %v3885, %v101
  %v3894 = vmul.f32 %v3888, %v101
  %v3895 = vadd.f32 %v3889, 1e-12
  %v3896 = vadd.f32 %v3890, 1e-12
  %v3897 = vadd.f32 %v3891, 1e-12
  %v3898 = vadd.f32 %v3892, 1e-12
  %v3899 = vadd.f32 %v3893, 1e-12
  %v3900 = vadd.f32 %v3894, 1e-12
  %v3901 = vrsqrt.pop %v3895
  %v3902 = vrsqrt.pop %v3896
  %v3903 = vrsqrt.pop %v3897
  %v3904 = vrsqrt.pop %v3898
  %v3905 = vrsqrt.pop %v3899
  %v3906 = vrsqrt.pop %v3900
  %v3907 = vmul.f32 %v3859, %v3901
  %v3908 = vmul.f32 %v3860, %v3902
  %v3909 = vmul.f32 %v3861, %v3903
  %v3910 = vmul.f32 %v3862, %v3904
  %v3911 = vmul.f32 %v3863, %v3905
  %v3912 = vmul.f32 %v3864, %v3906
  %v3914 = vlaneseq
  %v3915 = vshrl.u32 %v3914, 7
  %v3916 = vsub.s32 0, %v3915
  %v3917 = vrot.slane %v3832, %v3916
  %v3919 = vmul.f32 %v3907, %v3917
  %v3920 = vmul.f32 %v3908, %v3917
  %v3921 = vmul.f32 %v3909, %v3917
  %v3922 = vmul.f32 %v3910, %v3917
  %v3923 = vmul.f32 %v3911, %v3917
  %v3924 = vmul.f32 %v3912, %v3917
  %v3926 = vlaneseq
  %v3927 = vshrl.u32 %v3926, 7
  %v3928 = vsub.s32 0, %v3927
  %v3929 = vrot.slane %v3834, %v3928
  %v3931 = vadd.f32 %v3919, %v3929
  %v3932 = vadd.f32 %v3920, %v3929
  %v3933 = vadd.f32 %v3921, %v3929
  %v3934 = vadd.f32 %v3922, %v3929
  %v3935 = vadd.f32 %v3923, %v3929
  %v3936 = vadd.f32 %v3924, %v3929
  %s3937 = scalar_lea.vmem %s14, 32
  %v3938 = vld [vmem:[%s3937] sm:$0xff]
  %v3939 = vld [vmem:[%s3937 + $0x8] sm:$0xff]
  %v3940 = vld [vmem:[%s3937 + $0x10] sm:$0xff]
  %v3941 = vld [vmem:[%s3937 + $0x18] sm:$0xff]
  %s3942 = scalar_lea.vmem %s15, 1
  %v3943 = vld [vmem:[%s3942] sm:$0x1]
  %v3945 = vlaneseq
  %v3946 = vshrl.u32 %v3945, 7
  %v3947 = vsub.s32 0, %v3946
  %v3948 = vrot.slane %v3943, %v3947
  %v3951 = vsel %vm82, %v3931, 0
  %v3954 = vsel %vm82, %v3932, 0
  %v3957 = vsel %vm82, %v3933, 0
  %v3960 = vsel %vm82, %v3934, 0
  %v3963 = vsel %vm82, %v3935, 0
  %v3966 = vsel %vm82, %v3936, 0
  %3968 = vmatprep.subr.mxu0 0.0
  %3969 = vmatpush1.msra.mxu0 %v3938
  %3970 = vmatprep.subr.mxu0 0.0
  %3971 = vmatpush1.msra.mxu0 %v3939
  %3972 = vmatprep.subr.mxu0 0.0
  %3973 = vmatpush1.msra.mxu0 %v3940
  %3974 = vmatprep.subr.mxu0 0.0
  %3975 = vmatpush1.msra.mxu0 %v3941
  %3976 = vmatprep.subr.mxu0 0.0
  %3977 = vmatpush1.msra.mxu0 0.0
  %3978 = vmatprep.subr.mxu0 0.0
  %3979 = vmatpush1.msra.mxu0 0.0
  %3980 = vmatprep.subr.mxu0 0.0
  %3981 = vmatpush1.msra.mxu0 0.0
  %3982 = vmatprep.subr.mxu0 0.0
  %3983 = vmatpush1.msra.mxu0 0.0
  %3984 = vmatprep.subr.mxu0 0.0
  %3985 = vmatpush1.msra.mxu0 0.0
  %3986 = vmatprep.subr.mxu0 0.0
  %3987 = vmatpush1.msra.mxu0 0.0
  %3988 = vmatprep.subr.mxu0 0.0
  %3989 = vmatpush1.msra.mxu0 0.0
  %3990 = vmatprep.subr.mxu0 0.0
  %3991 = vmatpush1.msra.mxu0 0.0
  %3992 = vmatprep.subr.mxu0 0.0
  %3993 = vmatpush1.msra.mxu0 0.0
  %3994 = vmatprep.subr.mxu0 0.0
  %3995 = vmatpush1.msra.mxu0 0.0
  %3996 = vmatprep.subr.mxu0 0.0
  %3997 = vmatpush1.msra.mxu0 0.0
  %3998 = vmatprep.subr.mxu0 0.0
  %3999 = vmatpush1.msra.mxu0 0.0
  %4000 = vmatprep.subr.mxu0 0.0
  %4001 = vmatpush1.msra.mxu0 0.0
  %4002 = vmatprep.subr.mxu0 0.0
  %4003 = vmatpush1.msra.mxu0 0.0
  %4004 = vmatprep.subr.mxu0 0.0
  %4005 = vmatpush1.msra.mxu0 0.0
  %4006 = vmatprep.subr.mxu0 0.0
  %4007 = vmatpush1.msra.mxu0 0.0
  %4008 = vmatprep.subr.mxu0 0.0
  %4009 = vmatpush1.msra.mxu0 0.0
  %4010 = vmatprep.subr.mxu0 0.0
  %4011 = vmatpush1.msra.mxu0 0.0
  %4012 = vmatprep.subr.mxu0 0.0
  %4013 = vmatpush1.msra.mxu0 0.0
  %4014 = vmatprep.subr.mxu0 0.0
  %4015 = vmatpush1.msra.mxu0 0.0
  %4016 = vmatprep.subr.mxu0 0.0
  %4017 = vmatpush1.msra.mxu0 0.0
  %4018 = vmatprep.subr.mxu0 0.0
  %4019 = vmatpush1.msra.mxu0 0.0
  %4020 = vmatprep.subr.mxu0 0.0
  %4021 = vmatpush1.msra.mxu0 0.0
  %4022 = vmatprep.subr.mxu0 0.0
  %4023 = vmatpush1.msra.mxu0 0.0
  %4024 = vmatprep.subr.mxu0 0.0
  %4025 = vmatpush1.msra.mxu0 0.0
  %4026 = vmatprep.subr.mxu0 0.0
  %4027 = vmatpush1.msra.mxu0 0.0
  %4028 = vmatprep.subr.mxu0 0.0
  %4029 = vmatpush1.msra.mxu0 0.0
  %4030 = vmatprep.subr.mxu0 0.0
  %4031 = vmatpush1.msra.mxu0 0.0
  %4032 = vmatprep.mubr.f32.mxu0 0.0
  %4033 = vmatmul.mubr.f32.gmra.mrb[0].mxu0 %v3951
  %v4034 = vpop.f32.mrb[0].mxu0
  %v4035 = vadd.f32 %v3948, %v4034
  %v4036 = vpop.f32.mrb[0].mxu0
  %4037 = vmatprep.mubr.f32.mxu0 0.0
  %4038 = vmatmul.mubr.f32.gmra.mrb[0].mxu0 %v3954
  %v4039 = vpop.f32.mrb[0].mxu0
  %v4040 = vadd.f32 %v3948, %v4039
  %v4041 = vpop.f32.mrb[0].mxu0
  %4042 = vmatprep.mubr.f32.mxu0 0.0
  %4043 = vmatmul.mubr.f32.gmra.mrb[0].mxu0 %v3957
  %v4044 = vpop.f32.mrb[0].mxu0
  %v4045 = vadd.f32 %v3948, %v4044
  %v4046 = vpop.f32.mrb[0].mxu0
  %4047 = vmatprep.mubr.f32.mxu0 0.0
  %4048 = vmatmul.mubr.f32.gmra.mrb[0].mxu0 %v3960
  %v4049 = vpop.f32.mrb[0].mxu0
  %v4050 = vadd.f32 %v3948, %v4049
  %v4051 = vpop.f32.mrb[0].mxu0
  %4052 = vmatprep.mubr.f32.mxu0 0.0
  %4053 = vmatmul.mubr.f32.gmra.mrb[0].mxu0 %v3963
  %v4054 = vpop.f32.mrb[0].mxu0
  %v4055 = vadd.f32 %v3948, %v4054
  %v4056 = vpop.f32.mrb[0].mxu0
  %4057 = vmatprep.mubr.f32.mxu0 0.0
  %4058 = vmatmul.mubr.f32.gmra.mrb[0].mxu0 %v3966
  %v4059 = vpop.f32.mrb[0].mxu0
  %v4060 = vadd.f32 %v3948, %v4059
  %v4061 = vpop.f32.mrb[0].mxu0
  %4062 = vdwg.mxu0
  %v4063 = vmul.f32 %v4035, 0.5
  %v4064 = vmul.f32 %v4040, 0.5
  %v4065 = vmul.f32 %v4045, 0.5
  %v4066 = vmul.f32 %v4050, 0.5
  %v4067 = vmul.f32 %v4055, 0.5
  %v4068 = vmul.f32 %v4060, 0.5
  %v4069 = vmul.f32 %v4035, 0.044715
  %v4070 = vmul.f32 %v4040, 0.044715
  %v4071 = vmul.f32 %v4045, 0.044715
  %v4072 = vmul.f32 %v4050, 0.044715
  %v4073 = vmul.f32 %v4055, 0.044715
  %v4074 = vmul.f32 %v4060, 0.044715
  %v4075 = vmul.f32 %v4069, %v4035
  %v4076 = vmul.f32 %v4070, %v4040
  %v4077 = vmul.f32 %v4071, %v4045
  %v4078 = vmul.f32 %v4072, %v4050
  %v4079 = vmul.f32 %v4073, %v4055
  %v4080 = vmul.f32 %v4074, %v4060
  %v4081 = vmul.f32 %v4075, %v4035
  %v4082 = vmul.f32 %v4076, %v4040
  %v4083 = vmul.f32 %v4077, %v4045
  %v4084 = vmul.f32 %v4078, %v4050
  %v4085 = vmul.f32 %v4079, %v4055
  %v4086 = vmul.f32 %v4080, %v4060
  %v4087 = vadd.f32 %v4035, %v4081
  %v4088 = vadd.f32 %v4040, %v4082
  %v4089 = vadd.f32 %v4045, %v4083
  %v4090 = vadd.f32 %v4050, %v4084
  %v4091 = vadd.f32 %v4055, %v4085
  %v4092 = vadd.f32 %v4060, %v4086
  %v4093 = vmul.f32 %v4087, 0.7978846
  %v4094 = vmul.f32 %v4088, 0.7978846
  %v4095 = vmul.f32 %v4089, 0.7978846
  %v4096 = vmul.f32 %v4090, 0.7978846
  %v4097 = vmul.f32 %v4091, 0.7978846
  %v4098 = vmul.f32 %v4092, 0.7978846
  %v4099 = vtanh.pop %v4093
  %v4100 = vtanh.pop %v4094
  %v4101 = vtanh.pop %v4095
  %v4102 = vtanh.pop %v4096
  %v4103 = vtanh.pop %v4097
  %v4104 = vtanh.pop %v4098
  %v4105 = vadd.f32 %v4099, 1.0
  %v4106 = vadd.f32 %v4100, 1.0
  %v4107 = vadd.f32 %v4101, 1.0
  %v4108 = vadd.f32 %v4102, 1.0
  %v4109 = vadd.f32 %v4103, 1.0
  %v4110 = vadd.f32 %v4104, 1.0
  %v4111 = vmul.f32 %v4063, %v4105
  %v4112 = vmul.f32 %v4064, %v4106
  %v4113 = vmul.f32 %v4065, %v4107
  %v4114 = vmul.f32 %v4066, %v4108
  %v4115 = vmul.f32 %v4067, %v4109
  %v4116 = vmul.f32 %v4068, %v4110
  %s4117 = scalar_lea.vmem %s16, 64
  %v4118 = vld [vmem:[%s4117] sm:$0xff]
  %v4119 = vld [vmem:[%s4117 + $0x8] sm:$0xff]
  %v4120 = vld [vmem:[%s4117 + $0x10] sm:$0xff]
  %v4121 = vld [vmem:[%s4117 + $0x18] sm:$0xff]
  %v4122 = vld [vmem:[%s4117 + $0x20] sm:$0xff]
  %v4123 = vld [vmem:[%s4117 + $0x28] sm:$0xff]
  %v4124 = vld [vmem:[%s4117 + $0x30] sm:$0xff]
  %v4125 = vld [vmem:[%s4117 + $0x38] sm:$0xff]
  %s4126 = scalar_lea.vmem %s17, 1
  %v4127 = vld [vmem:[%s4126] sm:$0x1]
  %v4129 = vlaneseq
  %v4130 = vshrl.u32 %v4129, 7
  %v4131 = vsub.s32 0, %v4130
  %v4132 = vrot.slane %v4127, %v4131
  %v4135 = vsel %vm2045, %v4111, 0
  %v4138 = vsel %vm2045, %v4112, 0
  %v4141 = vsel %vm2045, %v4113, 0
  %v4144 = vsel %vm2045, %v4114, 0
  %v4147 = vsel %vm2045, %v4115, 0
  %v4150 = vsel %vm2045, %v4116, 0
  %4152 = vmatprep.subr.mxu0 0.0
  %4153 = vmatpush1.msra.mxu0 %v4118
  %4154 = vmatprep.subr.mxu0 0.0
  %4155 = vmatpush1.msra.mxu0 %v4119
  %4156 = vmatprep.subr.mxu0 0.0
  %4157 = vmatpush1.msra.mxu0 %v4120
  %4158 = vmatprep.subr.mxu0 0.0
  %4159 = vmatpush1.msra.mxu0 %v4121
  %4160 = vmatprep.subr.mxu0 0.0
  %4161 = vmatpush1.msra.mxu0 %v4122
  %4162 = vmatprep.subr.mxu0 0.0
  %4163 = vmatpush1.msra.mxu0 %v4123
  %4164 = vmatprep.subr.mxu0 0.0
  %4165 = vmatpush1.msra.mxu0 %v4124
  %4166 = vmatprep.subr.mxu0 0.0
  %4167 = vmatpush1.msra.mxu0 %v4125
  %4168 = vmatprep.subr.mxu0 0.0
  %4169 = vmatpush1.msra.mxu0 0.0
  %4170 = vmatprep.subr.mxu0 0.0
  %4171 = vmatpush1.msra.mxu0 0.0
  %4172 = vmatprep.subr.mxu0 0.0
  %4173 = vmatpush1.msra.mxu0 0.0
  %4174 = vmatprep.subr.mxu0 0.0
  %4175 = vmatpush1.msra.mxu0 0.0
  %4176 = vmatprep.subr.mxu0 0.0
  %4177 = vmatpush1.msra.mxu0 0.0
  %4178 = vmatprep.subr.mxu0 0.0
  %4179 = vmatpush1.msra.mxu0 0.0
  %4180 = vmatprep.subr.mxu0 0.0
  %4181 = vmatpush1.msra.mxu0 0.0
  %4182 = vmatprep.subr.mxu0 0.0
  %4183 = vmatpush1.msra.mxu0 0.0
  %4184 = vmatprep.subr.mxu0 0.0
  %4185 = vmatpush1.msra.mxu0 0.0
  %4186 = vmatprep.subr.mxu0 0.0
  %4187 = vmatpush1.msra.mxu0 0.0
  %4188 = vmatprep.subr.mxu0 0.0
  %4189 = vmatpush1.msra.mxu0 0.0
  %4190 = vmatprep.subr.mxu0 0.0
  %4191 = vmatpush1.msra.mxu0 0.0
  %4192 = vmatprep.subr.mxu0 0.0
  %4193 = vmatpush1.msra.mxu0 0.0
  %4194 = vmatprep.subr.mxu0 0.0
  %4195 = vmatpush1.msra.mxu0 0.0
  %4196 = vmatprep.subr.mxu0 0.0
  %4197 = vmatpush1.msra.mxu0 0.0
  %4198 = vmatprep.subr.mxu0 0.0
  %4199 = vmatpush1.msra.mxu0 0.0
  %4200 = vmatprep.subr.mxu0 0.0
  %4201 = vmatpush1.msra.mxu0 0.0
  %4202 = vmatprep.subr.mxu0 0.0
  %4203 = vmatpush1.msra.mxu0 0.0
  %4204 = vmatprep.subr.mxu0 0.0
  %4205 = vmatpush1.msra.mxu0 0.0
  %4206 = vmatprep.subr.mxu0 0.0
  %4207 = vmatpush1.msra.mxu0 0.0
  %4208 = vmatprep.subr.mxu0 0.0
  %4209 = vmatpush1.msra.mxu0 0.0
  %4210 = vmatprep.subr.mxu0 0.0
  %4211 = vmatpush1.msra.mxu0 0.0
  %4212 = vmatprep.subr.mxu0 0.0
  %4213 = vmatpush1.msra.mxu0 0.0
  %4214 = vmatprep.subr.mxu0 0.0
  %4215 = vmatpush1.msra.mxu0 0.0
  %4216 = vmatprep.mubr.f32.mxu0 0.0
  %4217 = vmatmul.mubr.f32.gmra.mrb[0].mxu0 %v4135
  %v4218 = vpop.f32.mrb[0].mxu0
  %v4219 = vadd.f32 %v4132, %v4218
  %v4220 = vpop.f32.mrb[0].mxu0
  %4221 = vmatprep.mubr.f32.mxu0 0.0
  %4222 = vmatmul.mubr.f32.gmra.mrb[0].mxu0 %v4138
  %v4223 = vpop.f32.mrb[0].mxu0
  %v4224 = vadd.f32 %v4132, %v4223
  %v4225 = vpop.f32.mrb[0].mxu0
  %4226 = vmatprep.mubr.f32.mxu0 0.0
  %4227 = vmatmul.mubr.f32.gmra.mrb[0].mxu0 %v4141
  %v4228 = vpop.f32.mrb[0].mxu0
  %v4229 = vadd.f32 %v4132, %v4228
  %v4230 = vpop.f32.mrb[0].mxu0
  %4231 = vmatprep.mubr.f32.mxu0 0.0
  %4232 = vmatmul.mubr.f32.gmra.mrb[0].mxu0 %v4144
  %v4233 = vpop.f32.mrb[0].mxu0
  %v4234 = vadd.f32 %v4132, %v4233
  %v4235 = vpop.f32.mrb[0].mxu0
  %4236 = vmatprep.mubr.f32.mxu0 0.0
  %4237 = vmatmul.mubr.f32.gmra.mrb[0].mxu0 %v4147
  %v4238 = vpop.f32.mrb[0].mxu0
  %v4239 = vadd.f32 %v4132, %v4238
  %v4240 = vpop.f32.mrb[0].mxu0
  %4241 = vmatprep.mubr.f32.mxu0 0.0
  %4242 = vmatmul.mubr.f32.gmra.mrb[0].mxu0 %v4150
  %v4243 = vpop.f32.mrb[0].mxu0
  %v4244 = vadd.f32 %v4132, %v4243
  %v4245 = vpop.f32.mrb[0].mxu0
  %4246 = vdwg.mxu0
  %v4247 = vadd.f32 %v3931, %v4219
  %v4248 = vadd.f32 %v3932, %v4224
  %v4249 = vadd.f32 %v3933, %v4229
  %v4250 = vadd.f32 %v3934, %v4234
  %v4251 = vadd.f32 %v3935, %v4239
  %v4252 = vadd.f32 %v3936, %v4244
  %s4253 = scalar_lea.vmem %s18, 1
  %v4254 = vld [vmem:[%s4253] sm:$0x1]
  %s4255 = scalar_lea.vmem %s19, 1
  %v4256 = vld [vmem:[%s4255] sm:$0x1]
  %v4257 = vsel %vm82, %v4247, 0.0
  %4258 = vadd.xlane.f32.xlu0 %v4257
  %v4259 = vpop.xlane.xlu0 %4258
  %v4260 = vsel %vm82, %v4248, 0.0
  %4261 = vadd.xlane.f32.xlu0 %v4260
  %v4262 = vpop.xlane.xlu0 %4261
  %v4263 = vsel %vm82, %v4249, 0.0
  %4264 = vadd.xlane.f32.xlu0 %v4263
  %v4265 = vpop.xlane.xlu0 %4264
  %v4266 = vsel %vm82, %v4250, 0.0
  %4267 = vadd.xlane.f32.xlu0 %v4266
  %v4268 = vpop.xlane.xlu0 %4267
  %v4269 = vsel %vm82, %v4251, 0.0
  %4270 = vadd.xlane.f32.xlu0 %v4269
  %v4271 = vpop.xlane.xlu0 %4270
  %v4272 = vsel %vm82, %v4252, 0.0
  %4273 = vadd.xlane.f32.xlu0 %v4272
  %v4274 = vpop.xlane.xlu0 %4273
  %v4275 = vmul.f32 %v4259, %v101
  %v4276 = vmul.f32 %v4262, %v101
  %v4277 = vmul.f32 %v4265, %v101
  %v4278 = vmul.f32 %v4268, %v101
  %v4279 = vmul.f32 %v4271, %v101
  %v4280 = vmul.f32 %v4274, %v101
  %v4281 = vsub.f32 %v4247, %v4275
  %v4282 = vsub.f32 %v4248, %v4276
  %v4283 = vsub.f32 %v4249, %v4277
  %v4284 = vsub.f32 %v4250, %v4278
  %v4285 = vsub.f32 %v4251, %v4279
  %v4286 = vsub.f32 %v4252, %v4280
  %v4287 = vmul.f32 %v4281, %v4281
  %v4288 = vmul.f32 %v4282, %v4282
  %v4289 = vmul.f32 %v4283, %v4283
  %v4290 = vmul.f32 %v4284, %v4284
  %v4291 = vmul.f32 %v4285, %v4285
  %v4292 = vmul.f32 %v4286, %v4286
  %v4293 = vsel %vm82, %v4287, 0.0
  %4294 = vadd.xlane.f32.xlu0 %v4293
  %v4295 = vpop.xlane.xlu0 %4294
  %v4296 = vsel %vm82, %v4288, 0.0
  %4297 = vadd.xlane.f32.xlu0 %v4296
  %v4298 = vpop.xlane.xlu0 %4297
  %v4299 = vsel %vm82, %v4289, 0.0
  %4300 = vadd.xlane.f32.xlu0 %v4299
  %v4301 = vpop.xlane.xlu0 %4300
  %v4302 = vsel %vm82, %v4290, 0.0
  %4303 = vadd.xlane.f32.xlu0 %v4302
  %v4304 = vpop.xlane.xlu0 %4303
  %v4305 = vsel %vm82, %v4291, 0.0
  %4306 = vadd.xlane.f32.xlu0 %v4305
  %v4307 = vpop.xlane.xlu0 %4306
  %v4308 = vsel %vm82, %v4292, 0.0
  %4309 = vadd.xlane.f32.xlu0 %v4308
  %v4310 = vpop.xlane.xlu0 %4309
  %v4311 = vmul.f32 %v4295, %v101
  %v4312 = vmul.f32 %v4298, %v101
  %v4313 = vmul.f32 %v4301, %v101
  %v4314 = vmul.f32 %v4304, %v101
  %v4315 = vmul.f32 %v4307, %v101
  %v4316 = vmul.f32 %v4310, %v101
  %v4317 = vadd.f32 %v4311, 1e-12
  %v4318 = vadd.f32 %v4312, 1e-12
  %v4319 = vadd.f32 %v4313, 1e-12
  %v4320 = vadd.f32 %v4314, 1e-12
  %v4321 = vadd.f32 %v4315, 1e-12
  %v4322 = vadd.f32 %v4316, 1e-12
  %v4323 = vrsqrt.pop %v4317
  %v4324 = vrsqrt.pop %v4318
  %v4325 = vrsqrt.pop %v4319
  %v4326 = vrsqrt.pop %v4320
  %v4327 = vrsqrt.pop %v4321
  %v4328 = vrsqrt.pop %v4322
  %v4329 = vmul.f32 %v4281, %v4323
  %v4330 = vmul.f32 %v4282, %v4324
  %v4331 = vmul.f32 %v4283, %v4325
  %v4332 = vmul.f32 %v4284, %v4326
  %v4333 = vmul.f32 %v4285, %v4327
  %v4334 = vmul.f32 %v4286, %v4328
  %v4336 = vlaneseq
  %v4337 = vshrl.u32 %v4336, 7
  %v4338 = vsub.s32 0, %v4337
  %v4339 = vrot.slane %v4254, %v4338
  %v4341 = vmul.f32 %v4329, %v4339
  %v4342 = vmul.f32 %v4330, %v4339
  %v4343 = vmul.f32 %v4331, %v4339
  %v4344 = vmul.f32 %v4332, %v4339
  %v4345 = vmul.f32 %v4333, %v4339
  %v4346 = vmul.f32 %v4334, %v4339
  %v4348 = vlaneseq
  %v4349 = vshrl.u32 %v4348, 7
  %v4350 = vsub.s32 0, %v4349
  %v4351 = vrot.slane %v4256, %v4350
  %v4353 = vadd.f32 %v4341, %v4351
  %v4354 = vadd.f32 %v4342, %v4351
  %v4355 = vadd.f32 %v4343, %v4351
  %v4356 = vadd.f32 %v4344, %v4351
  %v4357 = vadd.f32 %v4345, %v4351
  %v4358 = vadd.f32 %v4346, %v4351
  %v4359 = vld [vmem:[%s20] sm:$0x3]
  %v4361 = vsel %vm672, %v4359, 0
  %4363 = vmatprep.subr.mxu0 0.0
  %4364 = vmatpush1.msra.mxu0 %v4353
  %4365 = vmatprep.subr.mxu0 0.0
  %4366 = vmatpush1.msra.mxu0 %v4354
  %4367 = vmatprep.subr.mxu0 0.0
  %4368 = vmatpush1.msra.mxu0 %v4355
  %4369 = vmatprep.subr.mxu0 0.0
  %4370 = vmatpush1.msra.mxu0 %v4356
  %4371 = vmatprep.subr.mxu0 0.0
  %4372 = vmatpush1.msra.mxu0 %v4357
  %4373 = vmatprep.subr.mxu0 0.0
  %4374 = vmatpush1.msra.mxu0 %v4358
  %4375 = vmatprep.subr.mxu0 0.0
  %4376 = vmatpush1.msra.mxu0 0.0
  %4377 = vmatprep.subr.mxu0 0.0
  %4378 = vmatpush1.msra.mxu0 0.0
  %4379 = vmatprep.subr.mxu0 0.0
  %4380 = vmatpush1.msra.mxu0 0.0
  %4381 = vmatprep.subr.mxu0 0.0
  %4382 = vmatpush1.msra.mxu0 0.0
  %4383 = vmatprep.subr.mxu0 0.0
  %4384 = vmatpush1.msra.mxu0 0.0
  %4385 = vmatprep.subr.mxu0 0.0
  %4386 = vmatpush1.msra.mxu0 0.0
  %4387 = vmatprep.subr.mxu0 0.0
  %4388 = vmatpush1.msra.mxu0 0.0
  %4389 = vmatprep.subr.mxu0 0.0
  %4390 = vmatpush1.msra.mxu0 0.0
  %4391 = vmatprep.subr.mxu0 0.0
  %4392 = vmatpush1.msra.mxu0 0.0
  %4393 = vmatprep.subr.mxu0 0.0
  %4394 = vmatpush1.msra.mxu0 0.0
  %4395 = vmatprep.subr.mxu0 0.0
  %4396 = vmatpush1.msra.mxu0 0.0
  %4397 = vmatprep.subr.mxu0 0.0
  %4398 = vmatpush1.msra.mxu0 0.0
  %4399 = vmatprep.subr.mxu0 0.0
  %4400 = vmatpush1.msra.mxu0 0.0
  %4401 = vmatprep.subr.mxu0 0.0
  %4402 = vmatpush1.msra.mxu0 0.0
  %4403 = vmatprep.subr.mxu0 0.0
  %4404 = vmatpush1.msra.mxu0 0.0
  %4405 = vmatprep.subr.mxu0 0.0
  %4406 = vmatpush1.msra.mxu0 0.0
  %4407 = vmatprep.subr.mxu0 0.0
  %4408 = vmatpush1.msra.mxu0 0.0
  %4409 = vmatprep.subr.mxu0 0.0
  %4410 = vmatpush1.msra.mxu0 0.0
  %4411 = vmatprep.subr.mxu0 0.0
  %4412 = vmatpush1.msra.mxu0 0.0
  %4413 = vmatprep.subr.mxu0 0.0
  %4414 = vmatpush1.msra.mxu0 0.0
  %4415 = vmatprep.subr.mxu0 0.0
  %4416 = vmatpush1.msra.mxu0 0.0
  %4417 = vmatprep.subr.mxu0 0.0
  %4418 = vmatpush1.msra.mxu0 0.0
  %4419 = vmatprep.subr.mxu0 0.0
  %4420 = vmatpush1.msra.mxu0 0.0
  %4421 = vmatprep.subr.mxu0 0.0
  %4422 = vmatpush1.msra.mxu0 0.0
  %4423 = vmatprep.subr.mxu0 0.0
  %4424 = vmatpush1.msra.mxu0 0.0
  %4425 = vmatprep.subr.mxu0 0.0
  %4426 = vmatpush1.msra.mxu0 0.0
  %4427 = vmatprep.mubr.f32.mxu0 0.0
  %4428 = vmatmul.mubr.f32.gmra.mrb[0].mxu0 %v4361
  %v4429 = vpop.f32.mrb[0].mxu0
  %v4430 = vadd.f32 0.0, %v4429
  %v4431 = vpop.f32.mrb[0].mxu0
  %4432 = vdwg.mxu0
  %v4433 = vld [vmem:[%s21] sm:$0xff]
  %v4434 = vld [vmem:[%s21 + $0x8] sm:$0xff]
  %v4435 = vld [vmem:[%s21 + $0x10] sm:$0xff]
  %v4436 = vld [vmem:[%s21 + $0x18] sm:$0xff]
  %v4437 = vld [vmem:[%s22] sm:$0x1]
  %v4439 = vlaneseq
  %v4440 = vshrl.u32 %v4439, 7
  %v4441 = vsub.s32 0, %v4440
  %v4442 = vrot.slane %v4437, %v4441
  %v4445 = vsel %vm82, %v4430, 0
  %4447 = vmatprep.subr.mxu0 0.0
  %4448 = vmatpush1.msra.mxu0 %v4433
  %4449 = vmatprep.subr.mxu0 0.0
  %4450 = vmatpush1.msra.mxu0 %v4434
  %4451 = vmatprep.subr.mxu0 0.0
  %4452 = vmatpush1.msra.mxu0 %v4435
  %4453 = vmatprep.subr.mxu0 0.0
  %4454 = vmatpush1.msra.mxu0 %v4436
  %4455 = vmatprep.subr.mxu0 0.0
  %4456 = vmatpush1.msra.mxu0 0.0
  %4457 = vmatprep.subr.mxu0 0.0
  %4458 = vmatpush1.msra.mxu0 0.0
  %4459 = vmatprep.subr.mxu0 0.0
  %4460 = vmatpush1.msra.mxu0 0.0
  %4461 = vmatprep.subr.mxu0 0.0
  %4462 = vmatpush1.msra.mxu0 0.0
  %4463 = vmatprep.subr.mxu0 0.0
  %4464 = vmatpush1.msra.mxu0 0.0
  %4465 = vmatprep.subr.mxu0 0.0
  %4466 = vmatpush1.msra.mxu0 0.0
  %4467 = vmatprep.subr.mxu0 0.0
  %4468 = vmatpush1.msra.mxu0 0.0
  %4469 = vmatprep.subr.mxu0 0.0
  %4470 = vmatpush1.msra.mxu0 0.0
  %4471 = vmatprep.subr.mxu0 0.0
  %4472 = vmatpush1.msra.mxu0 0.0
  %4473 = vmatprep.subr.mxu0 0.0
  %4474 = vmatpush1.msra.mxu0 0.0
  %4475 = vmatprep.subr.mxu0 0.0
  %4476 = vmatpush1.msra.mxu0 0.0
  %4477 = vmatprep.subr.mxu0 0.0
  %4478 = vmatpush1.msra.mxu0 0.0
  %4479 = vmatprep.subr.mxu0 0.0
  %4480 = vmatpush1.msra.mxu0 0.0
  %4481 = vmatprep.subr.mxu0 0.0
  %4482 = vmatpush1.msra.mxu0 0.0
  %4483 = vmatprep.subr.mxu0 0.0
  %4484 = vmatpush1.msra.mxu0 0.0
  %4485 = vmatprep.subr.mxu0 0.0
  %4486 = vmatpush1.msra.mxu0 0.0
  %4487 = vmatprep.subr.mxu0 0.0
  %4488 = vmatpush1.msra.mxu0 0.0
  %4489 = vmatprep.subr.mxu0 0.0
  %4490 = vmatpush1.msra.mxu0 0.0
  %4491 = vmatprep.subr.mxu0 0.0
  %4492 = vmatpush1.msra.mxu0 0.0
  %4493 = vmatprep.subr.mxu0 0.0
  %4494 = vmatpush1.msra.mxu0 0.0
  %4495 = vmatprep.subr.mxu0 0.0
  %4496 = vmatpush1.msra.mxu0 0.0
  %4497 = vmatprep.subr.mxu0 0.0
  %4498 = vmatpush1.msra.mxu0 0.0
  %4499 = vmatprep.subr.mxu0 0.0
  %4500 = vmatpush1.msra.mxu0 0.0
  %4501 = vmatprep.subr.mxu0 0.0
  %4502 = vmatpush1.msra.mxu0 0.0
  %4503 = vmatprep.subr.mxu0 0.0
  %4504 = vmatpush1.msra.mxu0 0.0
  %4505 = vmatprep.subr.mxu0 0.0
  %4506 = vmatpush1.msra.mxu0 0.0
  %4507 = vmatprep.subr.mxu0 0.0
  %4508 = vmatpush1.msra.mxu0 0.0
  %4509 = vmatprep.subr.mxu0 0.0
  %4510 = vmatpush1.msra.mxu0 0.0
  %4511 = vmatprep.mubr.f32.mxu0 0.0
  %4512 = vmatmul.mubr.f32.gmra.mrb[0].mxu0 %v4445
  %v4513 = vpop.f32.mrb[0].mxu0
  %v4514 = vadd.f32 %v4442, %v4513
  %v4515 = vpop.f32.mrb[0].mxu0
  %4516 = vdwg.mxu0
  %vm4517 = vcmask 58368
  %4518 = vst.msk [vmem:[%s23] sm:$0x3] %vm4517, %v4514
  // Predicated region
  $region94: #{bert_module_forward.1} parent=0 // pred_check
    _
  $region95: #{bert_module_forward.1} parent=0 // pred_check_branch
    %4520 = sbr.rel (0) target = $region97
  $region96: #{bert_module_forward.1} parent=0 // pred_region
    _
  $region97: #{bert_module_forward.1} parent=0 // pred_fallthru
    _
  // Predicated region
  $region98: #{bert_module_forward.1} parent=0 // pred_check
    _
  $region99: #{bert_module_forward.1} parent=0 // pred_check_branch
    %4522 = sbr.rel (0) target = $region101
  $region100: #{bert_module_forward.1} parent=0 // pred_region
    _
  $region101: #{bert_module_forward.1} parent=0 // pred_fallthru
    _

</llo_original>
